<compile_context>
chip_gen: v6e
topology: v6e:2x2x1
jax: 0.10.0
libtpu: 0.0.40
codegen_flags: <defaults>
</compile_context>

<pallas_src>
import functools

import jax
import jax.numpy as jnp
from jax.experimental import pallas as pl
from jax.experimental.pallas import tpu as pltpu


def _cross_attn_kernel(x1_ref, x2_ref, wq_ref, wk_ref, wv_ref, wp_ref, bp_ref,
                       o_ref, *, num_heads, head_dim, block_b, seq):
    """One grid step = `block_b` batch elements, all heads.

    Blocks:
      x1_ref / x2_ref / o_ref : (block_b, N, D)
      wq_ref / wk_ref / wv_ref: (H, D, hd)  per-head projections (scale folded into Wq)
      wp_ref                  : (H, hd, D)  per-head rows of the output projection
      bp_ref                  : (1, D)      projection bias (f32)
    """
    dim = num_heads * head_dim
    rows = block_b * seq
    mm_dtype = x1_ref.dtype  # bf16 on the fast path

    # Leading-dim-only reshapes: no lane/sublane relayout.
    x1 = x1_ref[...].reshape(rows, dim)
    x2 = x2_ref[...].reshape(rows, dim)

    acc = None
    # Static (trace-time) loop over heads. The head split lives in the weight
    # refs (static leading-dim index), so the kernel never lane-slices
    # activations, never transposes K, and never concatenates head outputs.
    for h in range(num_heads):
        qh = jnp.dot(x1, wq_ref[h], preferred_element_type=jnp.float32)  # (rows, hd)
        kh = jnp.dot(x2, wk_ref[h], preferred_element_type=jnp.float32)
        vh = jnp.dot(x2, wv_ref[h], preferred_element_type=jnp.float32)

        q3 = qh.reshape(block_b, seq, head_dim).astype(mm_dtype)
        k3 = kh.reshape(block_b, seq, head_dim).astype(mm_dtype)
        v3 = vh.reshape(block_b, seq, head_dim).astype(mm_dtype)

        # Scores + softmax in f32 (scale already folded into Wq).
        s = jnp.einsum("bqd,bkd->bqk", q3, k3,
                       preferred_element_type=jnp.float32)               # (bb, N, N)
        s = s - jnp.max(s, axis=-1, keepdims=True)
        p = jnp.exp(s)
        # EUP approximate reciprocal instead of a VPU divide.
        p = p * pl.reciprocal(jnp.sum(p, axis=-1, keepdims=True), approx=True)

        ctx = jnp.einsum("bqk,bkd->bqd", p.astype(mm_dtype), v3,
                         preferred_element_type=jnp.float32)             # (bb, N, hd)

        # Per-head slice of the output projection, accumulated full-width in
        # f32 (this replaces the head concat of the previous version).
        contrib = jnp.dot(ctx.reshape(rows, head_dim).astype(mm_dtype), wp_ref[h],
                          preferred_element_type=jnp.float32)            # (rows, D)
        acc = contrib if acc is None else acc + contrib

    out = acc + bp_ref[...].astype(jnp.float32)
    o_ref[...] = out.reshape(block_b, seq, dim).astype(o_ref.dtype)


def _pick_batch_block(batch, seq):
    """Rows-per-step heuristic: ~128 M-rows to feed the MXU, but keep >= 2 grid
    steps when possible so both v7x TensorCores get work."""
    bb = max(1, min(batch, pl.cdiv(128, max(seq, 1))))
    while batch % bb:
        bb -= 1
    if batch >= 2 and batch // bb < 2:
        for cand in range(bb - 1, 0, -1):
            if batch % cand == 0 and (cand * seq >= 128 or bb * seq < 128):
                bb = cand
                break
    return bb


def cross_attention_pallas(x1, x2, wq_t, wk_t, wv_t, wp_t, bp, *, num_heads,
                           matmul_dtype=jnp.bfloat16):
    """x1, x2: (B, N, D). w*_t: (D, D) pre-transposed nn.Linear weights
    (y = x @ w_t + b). bp: (D,). Returns (B, N, D) in x1.dtype."""
    assert x1.shape == x2.shape, "x1 and x2 must have the same shape"
    B, N, D = x1.shape
    assert D % num_heads == 0, "dim should be divisible by num_heads"
    hd = D // num_heads
    scale = hd ** (-0.5)
    out_dtype = x1.dtype

    # Wrapper-side prep (pure XLA, once per call):
    #  * fold softmax scale into Wq,
    #  * split Wq/Wk/Wv per head -> (H, D, hd); per-head rows of Wp -> (H, hd, D),
    #  * cast MXU operands to bf16 (f32 accumulation / softmax stay in-kernel).
    wq_h = (wq_t * scale).reshape(D, num_heads, hd).transpose(1, 0, 2).astype(matmul_dtype)
    wk_h = wk_t.reshape(D, num_heads, hd).transpose(1, 0, 2).astype(matmul_dtype)
    wv_h = wv_t.reshape(D, num_heads, hd).transpose(1, 0, 2).astype(matmul_dtype)
    wp_h = wp_t.reshape(num_heads, hd, D).astype(matmul_dtype)
    bp2 = bp.reshape(1, D).astype(jnp.float32)
    x1c = x1.astype(matmul_dtype)
    x2c = x2.astype(matmul_dtype)

    bb = _pick_batch_block(B, N)
    grid = (B // bb,)

    kernel = functools.partial(_cross_attn_kernel, num_heads=num_heads,
                               head_dim=hd, block_b=bb, seq=N)

    grid_spec = pltpu.PrefetchScalarGridSpec(
        num_scalar_prefetch=0,
        grid=grid,
        in_specs=[
            pl.BlockSpec((bb, N, D), lambda i: (i, 0, 0)),           # x1
            pl.BlockSpec((bb, N, D), lambda i: (i, 0, 0)),           # x2
            pl.BlockSpec((num_heads, D, hd), lambda i: (0, 0, 0)),   # Wq (scaled, per head)
            pl.BlockSpec((num_heads, D, hd), lambda i: (0, 0, 0)),   # Wk (per head)
            pl.BlockSpec((num_heads, D, hd), lambda i: (0, 0, 0)),   # Wv (per head)
            pl.BlockSpec((num_heads, hd, D), lambda i: (0, 0, 0)),   # Wproj (per head)
            pl.BlockSpec((1, D), lambda i: (0, 0)),                  # bproj
        ],
        out_specs=pl.BlockSpec((bb, N, D), lambda i: (i, 0, 0)),
    )

    return pl.pallas_call(
        kernel,
        out_shape=jax.ShapeDtypeStruct((B, N, D), out_dtype),
        grid_spec=grid_spec,
        compiler_params=pltpu.CompilerParams(
            dimension_semantics=("parallel",),
        ),
    )(x1c, x2c, wq_h, wk_h, wv_h, wp_h, bp2)


def cross_attention_ref(x1, x2, wq_t, wk_t, wv_t, wp_t, bp, *, num_heads):
    """Pure-JAX f32 reference mirroring the PyTorch forward."""
    B, N, D = x1.shape
    hd = D // num_heads
    scale = hd ** (-0.5)
    q = (x1 @ wq_t).reshape(B, N, num_heads, hd).transpose(0, 2, 1, 3)
    k = (x2 @ wk_t).reshape(B, N, num_heads, hd).transpose(0, 2, 1, 3)
    v = (x2 @ wv_t).reshape(B, N, num_heads, hd).transpose(0, 2, 1, 3)
    attn = jnp.einsum("bhqd,bhkd->bhqk", q, k) * scale
    attn = jax.nn.softmax(attn, axis=-1)
    x = jnp.einsum("bhqk,bhkd->bhqd", attn, v).transpose(0, 2, 1, 3).reshape(B, N, D)
    return x @ wp_t + bp


if __name__ == "__main__":
    # Small shapes consistent with the module defaults: dim=64, num_heads=8.
    B, N, D = 2, 8, 64
    num_heads = 8

    key = jax.random.PRNGKey(0)
    k1, k2, kq, kk, kv, kp, kb = jax.random.split(key, 7)

    x1 = jax.random.normal(k1, (B, N, D), dtype=jnp.float32)
    x2 = jax.random.normal(k2, (B, N, D), dtype=jnp.float32)

    # Deterministic parameters (qkv_bias=False -> no q/k/v bias; proj has bias).
    # Weights stored directly in transposed (D_in, D_out) form.
    wq_t = jax.random.normal(kq, (D, D), dtype=jnp.float32) * 0.05
    wk_t = jax.random.normal(kk, (D, D), dtype=jnp.float32) * 0.05
    wv_t = jax.random.normal(kv, (D, D), dtype=jnp.float32) * 0.05
    wp_t = jax.random.normal(kp, (D, D), dtype=jnp.float32) * 0.05
    bp = jax.random.normal(kb, (D,), dtype=jnp.float32) * 0.05

    out = cross_attention_pallas(x1, x2, wq_t, wk_t, wv_t, wp_t, bp,
                                 num_heads=num_heads)
    out = jax.block_until_ready(out)

    ref = cross_attention_ref(x1, x2, wq_t, wk_t, wv_t, wp_t, bp,
                              num_heads=num_heads)
    assert out.shape == (B, N, D)
    # bf16 MXU operands + approx reciprocal vs a pure-f32 reference.
    max_diff = jnp.max(jnp.abs(out - ref))
    assert jnp.allclose(out, ref, atol=2e-2, rtol=2e-2), \
        f"max abs diff {max_diff}"

    print("KERNEL_OK")
</pallas_src>

<mosaic_0001>
module attributes {stable_mosaic.version = 11 : i64} {
  func.func @_cross_attn_kernel(%arg0: i32, %arg1: memref<1x8x64xbf16, #tpu.memory_space<vmem>>, %arg2: memref<1x8x64xbf16, #tpu.memory_space<vmem>>, %arg3: memref<8x64x8xbf16, #tpu.memory_space<vmem>>, %arg4: memref<8x64x8xbf16, #tpu.memory_space<vmem>>, %arg5: memref<8x64x8xbf16, #tpu.memory_space<vmem>>, %arg6: memref<8x8x64xbf16, #tpu.memory_space<vmem>>, %arg7: memref<1x64xf32, #tpu.memory_space<vmem>>, %arg8: memref<1x8x64xf32, #tpu.memory_space<vmem>>) attributes {dimension_semantics = [#tpu.dimension_semantics<parallel>], iteration_bounds = array<i64: 2>, scalar_prefetch = 0 : i64, scratch_operands = 0 : i64, tpu.core_type = #tpu.core_type<tc>, window_params = [{transform_indices = @transform_0, window_bounds = array<i64: 1, 8, 64>}, {transform_indices = @transform_1, window_bounds = array<i64: 1, 8, 64>}, {pipeline_mode = #tpu.pipeline_mode<synchronous>, transform_indices = @transform_2, window_bounds = array<i64: 8, 64, 8>}, {pipeline_mode = #tpu.pipeline_mode<synchronous>, transform_indices = @transform_3, window_bounds = array<i64: 8, 64, 8>}, {pipeline_mode = #tpu.pipeline_mode<synchronous>, transform_indices = @transform_4, window_bounds = array<i64: 8, 64, 8>}, {pipeline_mode = #tpu.pipeline_mode<synchronous>, transform_indices = @transform_5, window_bounds = array<i64: 8, 8, 64>}, {pipeline_mode = #tpu.pipeline_mode<synchronous>, transform_indices = @transform_6, window_bounds = array<i64: 1, 64>}, {transform_indices = @transform_7, window_bounds = array<i64: 1, 8, 64>}]} {
    %c0 = arith.constant 0 : index
    %c0_0 = arith.constant 0 : index
    %c0_1 = arith.constant 0 : index
    %0 = vector.load %arg1[%c0, %c0_0, %c0_1] : memref<1x8x64xbf16, #tpu.memory_space<vmem>>, vector<1x8x64xbf16>
    %1 = vector.shape_cast %0 : vector<1x8x64xbf16> to vector<8x64xbf16>
    %c0_2 = arith.constant 0 : index
    %c0_3 = arith.constant 0 : index
    %c0_4 = arith.constant 0 : index
    %2 = vector.load %arg2[%c0_2, %c0_3, %c0_4] : memref<1x8x64xbf16, #tpu.memory_space<vmem>>, vector<1x8x64xbf16>
    %3 = vector.shape_cast %2 : vector<1x8x64xbf16> to vector<8x64xbf16>
    %c0_5 = arith.constant 0 : index
    %c0_6 = arith.constant 0 : index
    %c0_7 = arith.constant 0 : index
    %4 = vector.load %arg3[%c0_5, %c0_6, %c0_7] : memref<8x64x8xbf16, #tpu.memory_space<vmem>>, vector<1x64x8xbf16>
    %5 = vector.shape_cast %4 : vector<1x64x8xbf16> to vector<64x8xbf16>
    %cst = arith.constant dense<0.000000e+00> : vector<8x8xf32>
    %6 = tpu.matmul %1, %5, %cst {dimension_numbers = #tpu.dot_dimension_numbers<[1], [0], [0], [1], [0, 0, 1, 1], [], []>} : vector<8x64xbf16>, vector<64x8xbf16>, vector<8x8xf32> -> vector<8x8xf32>
    %c0_8 = arith.constant 0 : index
    %c0_9 = arith.constant 0 : index
    %c0_10 = arith.constant 0 : index
    %7 = vector.load %arg4[%c0_8, %c0_9, %c0_10] : memref<8x64x8xbf16, #tpu.memory_space<vmem>>, vector<1x64x8xbf16>
    %8 = vector.shape_cast %7 : vector<1x64x8xbf16> to vector<64x8xbf16>
    %cst_11 = arith.constant dense<0.000000e+00> : vector<8x8xf32>
    %9 = tpu.matmul %3, %8, %cst_11 {dimension_numbers = #tpu.dot_dimension_numbers<[1], [0], [0], [1], [0, 0, 1, 1], [], []>} : vector<8x64xbf16>, vector<64x8xbf16>, vector<8x8xf32> -> vector<8x8xf32>
    %c0_12 = arith.constant 0 : index
    %c0_13 = arith.constant 0 : index
    %c0_14 = arith.constant 0 : index
    %10 = vector.load %arg5[%c0_12, %c0_13, %c0_14] : memref<8x64x8xbf16, #tpu.memory_space<vmem>>, vector<1x64x8xbf16>
    %11 = vector.shape_cast %10 : vector<1x64x8xbf16> to vector<64x8xbf16>
    %cst_15 = arith.constant dense<0.000000e+00> : vector<8x8xf32>
    %12 = tpu.matmul %3, %11, %cst_15 {dimension_numbers = #tpu.dot_dimension_numbers<[1], [0], [0], [1], [0, 0, 1, 1], [], []>} : vector<8x64xbf16>, vector<64x8xbf16>, vector<8x8xf32> -> vector<8x8xf32>
    %13 = vector.shape_cast %6 : vector<8x8xf32> to vector<1x8x8xf32>
    %14 = arith.truncf %13 : vector<1x8x8xf32> to vector<1x8x8xbf16>
    %15 = vector.shape_cast %9 : vector<8x8xf32> to vector<1x8x8xf32>
    %16 = arith.truncf %15 : vector<1x8x8xf32> to vector<1x8x8xbf16>
    %17 = vector.shape_cast %12 : vector<8x8xf32> to vector<1x8x8xf32>
    %18 = arith.truncf %17 : vector<1x8x8xf32> to vector<1x8x8xbf16>
    "tpu.trace_start"() <{level = 10 : i32, message = "bqd,bkd->bqk"}> : () -> ()
    %cst_16 = arith.constant dense<0.000000e+00> : vector<1x8x8xf32>
    %19 = tpu.matmul %14, %16, %cst_16 {dimension_numbers = #tpu.dot_dimension_numbers<[2], [2], [1], [1], [0, 0, 0, 1, 1, 1], [0], [0]>} : vector<1x8x8xbf16>, vector<1x8x8xbf16>, vector<1x8x8xf32> -> vector<1x8x8xf32>
    "tpu.trace_stop"() : () -> ()
    %cst_17 = arith.constant dense<0xFF800000> : vector<1x8xf32>
    %20 = vector.multi_reduction <maximumf>, %19, %cst_17 [2] : vector<1x8x8xf32> to vector<1x8xf32>
    %21 = vector.shape_cast %20 : vector<1x8xf32> to vector<1x8x1xf32>
    %22 = vector.broadcast %21 : vector<1x8x1xf32> to vector<1x8x8xf32>
    %23 = arith.subf %19, %22 : vector<1x8x8xf32>
    %24 = math.exp %23 : vector<1x8x8xf32>
    %cst_18 = arith.constant dense<0.000000e+00> : vector<1x8xf32>
    %25 = vector.multi_reduction <add>, %24, %cst_18 [2] : vector<1x8x8xf32> to vector<1x8xf32>
    %26 = vector.shape_cast %25 : vector<1x8xf32> to vector<1x8x1xf32>
    %27 = tpu.reciprocal %26 {approx = true} : vector<1x8x1xf32> -> vector<1x8x1xf32>
    %28 = vector.broadcast %27 : vector<1x8x1xf32> to vector<1x8x8xf32>
    %29 = arith.mulf %24, %28 : vector<1x8x8xf32>
    %30 = arith.truncf %29 : vector<1x8x8xf32> to vector<1x8x8xbf16>
    "tpu.trace_start"() <{level = 10 : i32, message = "bqk,bkd->bqd"}> : () -> ()
    %cst_19 = arith.constant dense<0.000000e+00> : vector<1x8x8xf32>
    %31 = tpu.matmul %30, %18, %cst_19 {dimension_numbers = #tpu.dot_dimension_numbers<[2], [1], [1], [2], [0, 0, 0, 1, 1, 2], [0], [0]>} : vector<1x8x8xbf16>, vector<1x8x8xbf16>, vector<1x8x8xf32> -> vector<1x8x8xf32>
    "tpu.trace_stop"() : () -> ()
    %32 = vector.shape_cast %31 : vector<1x8x8xf32> to vector<8x8xf32>
    %33 = arith.truncf %32 : vector<8x8xf32> to vector<8x8xbf16>
    %c0_20 = arith.constant 0 : index
    %c0_21 = arith.constant 0 : index
    %c0_22 = arith.constant 0 : index
    %34 = vector.load %arg6[%c0_20, %c0_21, %c0_22] : memref<8x8x64xbf16, #tpu.memory_space<vmem>>, vector<1x8x64xbf16>
    %35 = vector.shape_cast %34 : vector<1x8x64xbf16> to vector<8x64xbf16>
    %cst_23 = arith.constant dense<0.000000e+00> : vector<8x64xf32>
    %36 = tpu.matmul %33, %35, %cst_23 {dimension_numbers = #tpu.dot_dimension_numbers<[1], [0], [0], [1], [0, 0, 1, 1], [], []>} : vector<8x8xbf16>, vector<8x64xbf16>, vector<8x64xf32> -> vector<8x64xf32>
    %c1 = arith.constant 1 : index
    %c0_24 = arith.constant 0 : index
    %c0_25 = arith.constant 0 : index
    %37 = vector.load %arg3[%c1, %c0_24, %c0_25] : memref<8x64x8xbf16, #tpu.memory_space<vmem>>, vector<1x64x8xbf16>
    %38 = vector.shape_cast %37 : vector<1x64x8xbf16> to vector<64x8xbf16>
    %cst_26 = arith.constant dense<0.000000e+00> : vector<8x8xf32>
    %39 = tpu.matmul %1, %38, %cst_26 {dimension_numbers = #tpu.dot_dimension_numbers<[1], [0], [0], [1], [0, 0, 1, 1], [], []>} : vector<8x64xbf16>, vector<64x8xbf16>, vector<8x8xf32> -> vector<8x8xf32>
    %c1_27 = arith.constant 1 : index
    %c0_28 = arith.constant 0 : index
    %c0_29 = arith.constant 0 : index
    %40 = vector.load %arg4[%c1_27, %c0_28, %c0_29] : memref<8x64x8xbf16, #tpu.memory_space<vmem>>, vector<1x64x8xbf16>
    %41 = vector.shape_cast %40 : vector<1x64x8xbf16> to vector<64x8xbf16>
    %cst_30 = arith.constant dense<0.000000e+00> : vector<8x8xf32>
    %42 = tpu.matmul %3, %41, %cst_30 {dimension_numbers = #tpu.dot_dimension_numbers<[1], [0], [0], [1], [0, 0, 1, 1], [], []>} : vector<8x64xbf16>, vector<64x8xbf16>, vector<8x8xf32> -> vector<8x8xf32>
    %c1_31 = arith.constant 1 : index
    %c0_32 = arith.constant 0 : index
    %c0_33 = arith.constant 0 : index
    %43 = vector.load %arg5[%c1_31, %c0_32, %c0_33] : memref<8x64x8xbf16, #tpu.memory_space<vmem>>, vector<1x64x8xbf16>
    %44 = vector.shape_cast %43 : vector<1x64x8xbf16> to vector<64x8xbf16>
    %cst_34 = arith.constant dense<0.000000e+00> : vector<8x8xf32>
    %45 = tpu.matmul %3, %44, %cst_34 {dimension_numbers = #tpu.dot_dimension_numbers<[1], [0], [0], [1], [0, 0, 1, 1], [], []>} : vector<8x64xbf16>, vector<64x8xbf16>, vector<8x8xf32> -> vector<8x8xf32>
    %46 = vector.shape_cast %39 : vector<8x8xf32> to vector<1x8x8xf32>
    %47 = arith.truncf %46 : vector<1x8x8xf32> to vector<1x8x8xbf16>
    %48 = vector.shape_cast %42 : vector<8x8xf32> to vector<1x8x8xf32>
    %49 = arith.truncf %48 : vector<1x8x8xf32> to vector<1x8x8xbf16>
    %50 = vector.shape_cast %45 : vector<8x8xf32> to vector<1x8x8xf32>
    %51 = arith.truncf %50 : vector<1x8x8xf32> to vector<1x8x8xbf16>
    "tpu.trace_start"() <{level = 10 : i32, message = "bqd,bkd->bqk"}> : () -> ()
    %cst_35 = arith.constant dense<0.000000e+00> : vector<1x8x8xf32>
    %52 = tpu.matmul %47, %49, %cst_35 {dimension_numbers = #tpu.dot_dimension_numbers<[2], [2], [1], [1], [0, 0, 0, 1, 1, 1], [0], [0]>} : vector<1x8x8xbf16>, vector<1x8x8xbf16>, vector<1x8x8xf32> -> vector<1x8x8xf32>
    "tpu.trace_stop"() : () -> ()
    %cst_36 = arith.constant dense<0xFF800000> : vector<1x8xf32>
    %53 = vector.multi_reduction <maximumf>, %52, %cst_36 [2] : vector<1x8x8xf32> to vector<1x8xf32>
    %54 = vector.shape_cast %53 : vector<1x8xf32> to vector<1x8x1xf32>
    %55 = vector.broadcast %54 : vector<1x8x1xf32> to vector<1x8x8xf32>
    %56 = arith.subf %52, %55 : vector<1x8x8xf32>
    %57 = math.exp %56 : vector<1x8x8xf32>
    %cst_37 = arith.constant dense<0.000000e+00> : vector<1x8xf32>
    %58 = vector.multi_reduction <add>, %57, %cst_37 [2] : vector<1x8x8xf32> to vector<1x8xf32>
    %59 = vector.shape_cast %58 : vector<1x8xf32> to vector<1x8x1xf32>
    %60 = tpu.reciprocal %59 {approx = true} : vector<1x8x1xf32> -> vector<1x8x1xf32>
    %61 = vector.broadcast %60 : vector<1x8x1xf32> to vector<1x8x8xf32>
    %62 = arith.mulf %57, %61 : vector<1x8x8xf32>
    %63 = arith.truncf %62 : vector<1x8x8xf32> to vector<1x8x8xbf16>
    "tpu.trace_start"() <{level = 10 : i32, message = "bqk,bkd->bqd"}> : () -> ()
    %cst_38 = arith.constant dense<0.000000e+00> : vector<1x8x8xf32>
    %64 = tpu.matmul %63, %51, %cst_38 {dimension_numbers = #tpu.dot_dimension_numbers<[2], [1], [1], [2], [0, 0, 0, 1, 1, 2], [0], [0]>} : vector<1x8x8xbf16>, vector<1x8x8xbf16>, vector<1x8x8xf32> -> vector<1x8x8xf32>
    "tpu.trace_stop"() : () -> ()
    %65 = vector.shape_cast %64 : vector<1x8x8xf32> to vector<8x8xf32>
    %66 = arith.truncf %65 : vector<8x8xf32> to vector<8x8xbf16>
    %c1_39 = arith.constant 1 : index
    %c0_40 = arith.constant 0 : index
    %c0_41 = arith.constant 0 : index
    %67 = vector.load %arg6[%c1_39, %c0_40, %c0_41] : memref<8x8x64xbf16, #tpu.memory_space<vmem>>, vector<1x8x64xbf16>
    %68 = vector.shape_cast %67 : vector<1x8x64xbf16> to vector<8x64xbf16>
    %cst_42 = arith.constant dense<0.000000e+00> : vector<8x64xf32>
    %69 = tpu.matmul %66, %68, %cst_42 {dimension_numbers = #tpu.dot_dimension_numbers<[1], [0], [0], [1], [0, 0, 1, 1], [], []>} : vector<8x8xbf16>, vector<8x64xbf16>, vector<8x64xf32> -> vector<8x64xf32>
    %70 = arith.addf %36, %69 : vector<8x64xf32>
    %c2 = arith.constant 2 : index
    %c0_43 = arith.constant 0 : index
    %c0_44 = arith.constant 0 : index
    %71 = vector.load %arg3[%c2, %c0_43, %c0_44] : memref<8x64x8xbf16, #tpu.memory_space<vmem>>, vector<1x64x8xbf16>
    %72 = vector.shape_cast %71 : vector<1x64x8xbf16> to vector<64x8xbf16>
    %cst_45 = arith.constant dense<0.000000e+00> : vector<8x8xf32>
    %73 = tpu.matmul %1, %72, %cst_45 {dimension_numbers = #tpu.dot_dimension_numbers<[1], [0], [0], [1], [0, 0, 1, 1], [], []>} : vector<8x64xbf16>, vector<64x8xbf16>, vector<8x8xf32> -> vector<8x8xf32>
    %c2_46 = arith.constant 2 : index
    %c0_47 = arith.constant 0 : index
    %c0_48 = arith.constant 0 : index
    %74 = vector.load %arg4[%c2_46, %c0_47, %c0_48] : memref<8x64x8xbf16, #tpu.memory_space<vmem>>, vector<1x64x8xbf16>
    %75 = vector.shape_cast %74 : vector<1x64x8xbf16> to vector<64x8xbf16>
    %cst_49 = arith.constant dense<0.000000e+00> : vector<8x8xf32>
    %76 = tpu.matmul %3, %75, %cst_49 {dimension_numbers = #tpu.dot_dimension_numbers<[1], [0], [0], [1], [0, 0, 1, 1], [], []>} : vector<8x64xbf16>, vector<64x8xbf16>, vector<8x8xf32> -> vector<8x8xf32>
    %c2_50 = arith.constant 2 : index
    %c0_51 = arith.constant 0 : index
    %c0_52 = arith.constant 0 : index
    %77 = vector.load %arg5[%c2_50, %c0_51, %c0_52] : memref<8x64x8xbf16, #tpu.memory_space<vmem>>, vector<1x64x8xbf16>
    %78 = vector.shape_cast %77 : vector<1x64x8xbf16> to vector<64x8xbf16>
    %cst_53 = arith.constant dense<0.000000e+00> : vector<8x8xf32>
    %79 = tpu.matmul %3, %78, %cst_53 {dimension_numbers = #tpu.dot_dimension_numbers<[1], [0], [0], [1], [0, 0, 1, 1], [], []>} : vector<8x64xbf16>, vector<64x8xbf16>, vector<8x8xf32> -> vector<8x8xf32>
    %80 = vector.shape_cast %73 : vector<8x8xf32> to vector<1x8x8xf32>
    %81 = arith.truncf %80 : vector<1x8x8xf32> to vector<1x8x8xbf16>
    %82 = vector.shape_cast %76 : vector<8x8xf32> to vector<1x8x8xf32>
    %83 = arith.truncf %82 : vector<1x8x8xf32> to vector<1x8x8xbf16>
    %84 = vector.shape_cast %79 : vector<8x8xf32> to vector<1x8x8xf32>
    %85 = arith.truncf %84 : vector<1x8x8xf32> to vector<1x8x8xbf16>
    "tpu.trace_start"() <{level = 10 : i32, message = "bqd,bkd->bqk"}> : () -> ()
    %cst_54 = arith.constant dense<0.000000e+00> : vector<1x8x8xf32>
    %86 = tpu.matmul %81, %83, %cst_54 {dimension_numbers = #tpu.dot_dimension_numbers<[2], [2], [1], [1], [0, 0, 0, 1, 1, 1], [0], [0]>} : vector<1x8x8xbf16>, vector<1x8x8xbf16>, vector<1x8x8xf32> -> vector<1x8x8xf32>
    "tpu.trace_stop"() : () -> ()
    %cst_55 = arith.constant dense<0xFF800000> : vector<1x8xf32>
    %87 = vector.multi_reduction <maximumf>, %86, %cst_55 [2] : vector<1x8x8xf32> to vector<1x8xf32>
    %88 = vector.shape_cast %87 : vector<1x8xf32> to vector<1x8x1xf32>
    %89 = vector.broadcast %88 : vector<1x8x1xf32> to vector<1x8x8xf32>
    %90 = arith.subf %86, %89 : vector<1x8x8xf32>
    %91 = math.exp %90 : vector<1x8x8xf32>
    %cst_56 = arith.constant dense<0.000000e+00> : vector<1x8xf32>
    %92 = vector.multi_reduction <add>, %91, %cst_56 [2] : vector<1x8x8xf32> to vector<1x8xf32>
    %93 = vector.shape_cast %92 : vector<1x8xf32> to vector<1x8x1xf32>
    %94 = tpu.reciprocal %93 {approx = true} : vector<1x8x1xf32> -> vector<1x8x1xf32>
    %95 = vector.broadcast %94 : vector<1x8x1xf32> to vector<1x8x8xf32>
    %96 = arith.mulf %91, %95 : vector<1x8x8xf32>
    %97 = arith.truncf %96 : vector<1x8x8xf32> to vector<1x8x8xbf16>
    "tpu.trace_start"() <{level = 10 : i32, message = "bqk,bkd->bqd"}> : () -> ()
    %cst_57 = arith.constant dense<0.000000e+00> : vector<1x8x8xf32>
    %98 = tpu.matmul %97, %85, %cst_57 {dimension_numbers = #tpu.dot_dimension_numbers<[2], [1], [1], [2], [0, 0, 0, 1, 1, 2], [0], [0]>} : vector<1x8x8xbf16>, vector<1x8x8xbf16>, vector<1x8x8xf32> -> vector<1x8x8xf32>
    "tpu.trace_stop"() : () -> ()
    %99 = vector.shape_cast %98 : vector<1x8x8xf32> to vector<8x8xf32>
    %100 = arith.truncf %99 : vector<8x8xf32> to vector<8x8xbf16>
    %c2_58 = arith.constant 2 : index
    %c0_59 = arith.constant 0 : index
    %c0_60 = arith.constant 0 : index
    %101 = vector.load %arg6[%c2_58, %c0_59, %c0_60] : memref<8x8x64xbf16, #tpu.memory_space<vmem>>, vector<1x8x64xbf16>
    %102 = vector.shape_cast %101 : vector<1x8x64xbf16> to vector<8x64xbf16>
    %cst_61 = arith.constant dense<0.000000e+00> : vector<8x64xf32>
    %103 = tpu.matmul %100, %102, %cst_61 {dimension_numbers = #tpu.dot_dimension_numbers<[1], [0], [0], [1], [0, 0, 1, 1], [], []>} : vector<8x8xbf16>, vector<8x64xbf16>, vector<8x64xf32> -> vector<8x64xf32>
    %104 = arith.addf %70, %103 : vector<8x64xf32>
    %c3 = arith.constant 3 : index
    %c0_62 = arith.constant 0 : index
    %c0_63 = arith.constant 0 : index
    %105 = vector.load %arg3[%c3, %c0_62, %c0_63] : memref<8x64x8xbf16, #tpu.memory_space<vmem>>, vector<1x64x8xbf16>
    %106 = vector.shape_cast %105 : vector<1x64x8xbf16> to vector<64x8xbf16>
    %cst_64 = arith.constant dense<0.000000e+00> : vector<8x8xf32>
    %107 = tpu.matmul %1, %106, %cst_64 {dimension_numbers = #tpu.dot_dimension_numbers<[1], [0], [0], [1], [0, 0, 1, 1], [], []>} : vector<8x64xbf16>, vector<64x8xbf16>, vector<8x8xf32> -> vector<8x8xf32>
    %c3_65 = arith.constant 3 : index
    %c0_66 = arith.constant 0 : index
    %c0_67 = arith.constant 0 : index
    %108 = vector.load %arg4[%c3_65, %c0_66, %c0_67] : memref<8x64x8xbf16, #tpu.memory_space<vmem>>, vector<1x64x8xbf16>
    %109 = vector.shape_cast %108 : vector<1x64x8xbf16> to vector<64x8xbf16>
    %cst_68 = arith.constant dense<0.000000e+00> : vector<8x8xf32>
    %110 = tpu.matmul %3, %109, %cst_68 {dimension_numbers = #tpu.dot_dimension_numbers<[1], [0], [0], [1], [0, 0, 1, 1], [], []>} : vector<8x64xbf16>, vector<64x8xbf16>, vector<8x8xf32> -> vector<8x8xf32>
    %c3_69 = arith.constant 3 : index
    %c0_70 = arith.constant 0 : index
    %c0_71 = arith.constant 0 : index
    %111 = vector.load %arg5[%c3_69, %c0_70, %c0_71] : memref<8x64x8xbf16, #tpu.memory_space<vmem>>, vector<1x64x8xbf16>
    %112 = vector.shape_cast %111 : vector<1x64x8xbf16> to vector<64x8xbf16>
    %cst_72 = arith.constant dense<0.000000e+00> : vector<8x8xf32>
    %113 = tpu.matmul %3, %112, %cst_72 {dimension_numbers = #tpu.dot_dimension_numbers<[1], [0], [0], [1], [0, 0, 1, 1], [], []>} : vector<8x64xbf16>, vector<64x8xbf16>, vector<8x8xf32> -> vector<8x8xf32>
    %114 = vector.shape_cast %107 : vector<8x8xf32> to vector<1x8x8xf32>
    %115 = arith.truncf %114 : vector<1x8x8xf32> to vector<1x8x8xbf16>
    %116 = vector.shape_cast %110 : vector<8x8xf32> to vector<1x8x8xf32>
    %117 = arith.truncf %116 : vector<1x8x8xf32> to vector<1x8x8xbf16>
    %118 = vector.shape_cast %113 : vector<8x8xf32> to vector<1x8x8xf32>
    %119 = arith.truncf %118 : vector<1x8x8xf32> to vector<1x8x8xbf16>
    "tpu.trace_start"() <{level = 10 : i32, message = "bqd,bkd->bqk"}> : () -> ()
    %cst_73 = arith.constant dense<0.000000e+00> : vector<1x8x8xf32>
    %120 = tpu.matmul %115, %117, %cst_73 {dimension_numbers = #tpu.dot_dimension_numbers<[2], [2], [1], [1], [0, 0, 0, 1, 1, 1], [0], [0]>} : vector<1x8x8xbf16>, vector<1x8x8xbf16>, vector<1x8x8xf32> -> vector<1x8x8xf32>
    "tpu.trace_stop"() : () -> ()
    %cst_74 = arith.constant dense<0xFF800000> : vector<1x8xf32>
    %121 = vector.multi_reduction <maximumf>, %120, %cst_74 [2] : vector<1x8x8xf32> to vector<1x8xf32>
    %122 = vector.shape_cast %121 : vector<1x8xf32> to vector<1x8x1xf32>
    %123 = vector.broadcast %122 : vector<1x8x1xf32> to vector<1x8x8xf32>
    %124 = arith.subf %120, %123 : vector<1x8x8xf32>
    %125 = math.exp %124 : vector<1x8x8xf32>
    %cst_75 = arith.constant dense<0.000000e+00> : vector<1x8xf32>
    %126 = vector.multi_reduction <add>, %125, %cst_75 [2] : vector<1x8x8xf32> to vector<1x8xf32>
    %127 = vector.shape_cast %126 : vector<1x8xf32> to vector<1x8x1xf32>
    %128 = tpu.reciprocal %127 {approx = true} : vector<1x8x1xf32> -> vector<1x8x1xf32>
    %129 = vector.broadcast %128 : vector<1x8x1xf32> to vector<1x8x8xf32>
    %130 = arith.mulf %125, %129 : vector<1x8x8xf32>
    %131 = arith.truncf %130 : vector<1x8x8xf32> to vector<1x8x8xbf16>
    "tpu.trace_start"() <{level = 10 : i32, message = "bqk,bkd->bqd"}> : () -> ()
    %cst_76 = arith.constant dense<0.000000e+00> : vector<1x8x8xf32>
    %132 = tpu.matmul %131, %119, %cst_76 {dimension_numbers = #tpu.dot_dimension_numbers<[2], [1], [1], [2], [0, 0, 0, 1, 1, 2], [0], [0]>} : vector<1x8x8xbf16>, vector<1x8x8xbf16>, vector<1x8x8xf32> -> vector<1x8x8xf32>
    "tpu.trace_stop"() : () -> ()
    %133 = vector.shape_cast %132 : vector<1x8x8xf32> to vector<8x8xf32>
    %134 = arith.truncf %133 : vector<8x8xf32> to vector<8x8xbf16>
    %c3_77 = arith.constant 3 : index
    %c0_78 = arith.constant 0 : index
    %c0_79 = arith.constant 0 : index
    %135 = vector.load %arg6[%c3_77, %c0_78, %c0_79] : memref<8x8x64xbf16, #tpu.memory_space<vmem>>, vector<1x8x64xbf16>
    %136 = vector.shape_cast %135 : vector<1x8x64xbf16> to vector<8x64xbf16>
    %cst_80 = arith.constant dense<0.000000e+00> : vector<8x64xf32>
    %137 = tpu.matmul %134, %136, %cst_80 {dimension_numbers = #tpu.dot_dimension_numbers<[1], [0], [0], [1], [0, 0, 1, 1], [], []>} : vector<8x8xbf16>, vector<8x64xbf16>, vector<8x64xf32> -> vector<8x64xf32>
    %138 = arith.addf %104, %137 : vector<8x64xf32>
    %c4 = arith.constant 4 : index
    %c0_81 = arith.constant 0 : index
    %c0_82 = arith.constant 0 : index
    %139 = vector.load %arg3[%c4, %c0_81, %c0_82] : memref<8x64x8xbf16, #tpu.memory_space<vmem>>, vector<1x64x8xbf16>
    %140 = vector.shape_cast %139 : vector<1x64x8xbf16> to vector<64x8xbf16>
    %cst_83 = arith.constant dense<0.000000e+00> : vector<8x8xf32>
    %141 = tpu.matmul %1, %140, %cst_83 {dimension_numbers = #tpu.dot_dimension_numbers<[1], [0], [0], [1], [0, 0, 1, 1], [], []>} : vector<8x64xbf16>, vector<64x8xbf16>, vector<8x8xf32> -> vector<8x8xf32>
    %c4_84 = arith.constant 4 : index
    %c0_85 = arith.constant 0 : index
    %c0_86 = arith.constant 0 : index
    %142 = vector.load %arg4[%c4_84, %c0_85, %c0_86] : memref<8x64x8xbf16, #tpu.memory_space<vmem>>, vector<1x64x8xbf16>
    %143 = vector.shape_cast %142 : vector<1x64x8xbf16> to vector<64x8xbf16>
    %cst_87 = arith.constant dense<0.000000e+00> : vector<8x8xf32>
    %144 = tpu.matmul %3, %143, %cst_87 {dimension_numbers = #tpu.dot_dimension_numbers<[1], [0], [0], [1], [0, 0, 1, 1], [], []>} : vector<8x64xbf16>, vector<64x8xbf16>, vector<8x8xf32> -> vector<8x8xf32>
    %c4_88 = arith.constant 4 : index
    %c0_89 = arith.constant 0 : index
    %c0_90 = arith.constant 0 : index
    %145 = vector.load %arg5[%c4_88, %c0_89, %c0_90] : memref<8x64x8xbf16, #tpu.memory_space<vmem>>, vector<1x64x8xbf16>
    %146 = vector.shape_cast %145 : vector<1x64x8xbf16> to vector<64x8xbf16>
    %cst_91 = arith.constant dense<0.000000e+00> : vector<8x8xf32>
    %147 = tpu.matmul %3, %146, %cst_91 {dimension_numbers = #tpu.dot_dimension_numbers<[1], [0], [0], [1], [0, 0, 1, 1], [], []>} : vector<8x64xbf16>, vector<64x8xbf16>, vector<8x8xf32> -> vector<8x8xf32>
    %148 = vector.shape_cast %141 : vector<8x8xf32> to vector<1x8x8xf32>
    %149 = arith.truncf %148 : vector<1x8x8xf32> to vector<1x8x8xbf16>
    %150 = vector.shape_cast %144 : vector<8x8xf32> to vector<1x8x8xf32>
    %151 = arith.truncf %150 : vector<1x8x8xf32> to vector<1x8x8xbf16>
    %152 = vector.shape_cast %147 : vector<8x8xf32> to vector<1x8x8xf32>
    %153 = arith.truncf %152 : vector<1x8x8xf32> to vector<1x8x8xbf16>
    "tpu.trace_start"() <{level = 10 : i32, message = "bqd,bkd->bqk"}> : () -> ()
    %cst_92 = arith.constant dense<0.000000e+00> : vector<1x8x8xf32>
    %154 = tpu.matmul %149, %151, %cst_92 {dimension_numbers = #tpu.dot_dimension_numbers<[2], [2], [1], [1], [0, 0, 0, 1, 1, 1], [0], [0]>} : vector<1x8x8xbf16>, vector<1x8x8xbf16>, vector<1x8x8xf32> -> vector<1x8x8xf32>
    "tpu.trace_stop"() : () -> ()
    %cst_93 = arith.constant dense<0xFF800000> : vector<1x8xf32>
    %155 = vector.multi_reduction <maximumf>, %154, %cst_93 [2] : vector<1x8x8xf32> to vector<1x8xf32>
    %156 = vector.shape_cast %155 : vector<1x8xf32> to vector<1x8x1xf32>
    %157 = vector.broadcast %156 : vector<1x8x1xf32> to vector<1x8x8xf32>
    %158 = arith.subf %154, %157 : vector<1x8x8xf32>
    %159 = math.exp %158 : vector<1x8x8xf32>
    %cst_94 = arith.constant dense<0.000000e+00> : vector<1x8xf32>
    %160 = vector.multi_reduction <add>, %159, %cst_94 [2] : vector<1x8x8xf32> to vector<1x8xf32>
    %161 = vector.shape_cast %160 : vector<1x8xf32> to vector<1x8x1xf32>
    %162 = tpu.reciprocal %161 {approx = true} : vector<1x8x1xf32> -> vector<1x8x1xf32>
    %163 = vector.broadcast %162 : vector<1x8x1xf32> to vector<1x8x8xf32>
    %164 = arith.mulf %159, %163 : vector<1x8x8xf32>
    %165 = arith.truncf %164 : vector<1x8x8xf32> to vector<1x8x8xbf16>
    "tpu.trace_start"() <{level = 10 : i32, message = "bqk,bkd->bqd"}> : () -> ()
    %cst_95 = arith.constant dense<0.000000e+00> : vector<1x8x8xf32>
    %166 = tpu.matmul %165, %153, %cst_95 {dimension_numbers = #tpu.dot_dimension_numbers<[2], [1], [1], [2], [0, 0, 0, 1, 1, 2], [0], [0]>} : vector<1x8x8xbf16>, vector<1x8x8xbf16>, vector<1x8x8xf32> -> vector<1x8x8xf32>
    "tpu.trace_stop"() : () -> ()
    %167 = vector.shape_cast %166 : vector<1x8x8xf32> to vector<8x8xf32>
    %168 = arith.truncf %167 : vector<8x8xf32> to vector<8x8xbf16>
    %c4_96 = arith.constant 4 : index
    %c0_97 = arith.constant 0 : index
    %c0_98 = arith.constant 0 : index
    %169 = vector.load %arg6[%c4_96, %c0_97, %c0_98] : memref<8x8x64xbf16, #tpu.memory_space<vmem>>, vector<1x8x64xbf16>
    %170 = vector.shape_cast %169 : vector<1x8x64xbf16> to vector<8x64xbf16>
    %cst_99 = arith.constant dense<0.000000e+00> : vector<8x64xf32>
    %171 = tpu.matmul %168, %170, %cst_99 {dimension_numbers = #tpu.dot_dimension_numbers<[1], [0], [0], [1], [0, 0, 1, 1], [], []>} : vector<8x8xbf16>, vector<8x64xbf16>, vector<8x64xf32> -> vector<8x64xf32>
    %172 = arith.addf %138, %171 : vector<8x64xf32>
    %c5 = arith.constant 5 : index
    %c0_100 = arith.constant 0 : index
    %c0_101 = arith.constant 0 : index
    %173 = vector.load %arg3[%c5, %c0_100, %c0_101] : memref<8x64x8xbf16, #tpu.memory_space<vmem>>, vector<1x64x8xbf16>
    %174 = vector.shape_cast %173 : vector<1x64x8xbf16> to vector<64x8xbf16>
    %cst_102 = arith.constant dense<0.000000e+00> : vector<8x8xf32>
    %175 = tpu.matmul %1, %174, %cst_102 {dimension_numbers = #tpu.dot_dimension_numbers<[1], [0], [0], [1], [0, 0, 1, 1], [], []>} : vector<8x64xbf16>, vector<64x8xbf16>, vector<8x8xf32> -> vector<8x8xf32>
    %c5_103 = arith.constant 5 : index
    %c0_104 = arith.constant 0 : index
    %c0_105 = arith.constant 0 : index
    %176 = vector.load %arg4[%c5_103, %c0_104, %c0_105] : memref<8x64x8xbf16, #tpu.memory_space<vmem>>, vector<1x64x8xbf16>
    %177 = vector.shape_cast %176 : vector<1x64x8xbf16> to vector<64x8xbf16>
    %cst_106 = arith.constant dense<0.000000e+00> : vector<8x8xf32>
    %178 = tpu.matmul %3, %177, %cst_106 {dimension_numbers = #tpu.dot_dimension_numbers<[1], [0], [0], [1], [0, 0, 1, 1], [], []>} : vector<8x64xbf16>, vector<64x8xbf16>, vector<8x8xf32> -> vector<8x8xf32>
    %c5_107 = arith.constant 5 : index
    %c0_108 = arith.constant 0 : index
    %c0_109 = arith.constant 0 : index
    %179 = vector.load %arg5[%c5_107, %c0_108, %c0_109] : memref<8x64x8xbf16, #tpu.memory_space<vmem>>, vector<1x64x8xbf16>
    %180 = vector.shape_cast %179 : vector<1x64x8xbf16> to vector<64x8xbf16>
    %cst_110 = arith.constant dense<0.000000e+00> : vector<8x8xf32>
    %181 = tpu.matmul %3, %180, %cst_110 {dimension_numbers = #tpu.dot_dimension_numbers<[1], [0], [0], [1], [0, 0, 1, 1], [], []>} : vector<8x64xbf16>, vector<64x8xbf16>, vector<8x8xf32> -> vector<8x8xf32>
    %182 = vector.shape_cast %175 : vector<8x8xf32> to vector<1x8x8xf32>
    %183 = arith.truncf %182 : vector<1x8x8xf32> to vector<1x8x8xbf16>
    %184 = vector.shape_cast %178 : vector<8x8xf32> to vector<1x8x8xf32>
    %185 = arith.truncf %184 : vector<1x8x8xf32> to vector<1x8x8xbf16>
    %186 = vector.shape_cast %181 : vector<8x8xf32> to vector<1x8x8xf32>
    %187 = arith.truncf %186 : vector<1x8x8xf32> to vector<1x8x8xbf16>
    "tpu.trace_start"() <{level = 10 : i32, message = "bqd,bkd->bqk"}> : () -> ()
    %cst_111 = arith.constant dense<0.000000e+00> : vector<1x8x8xf32>
    %188 = tpu.matmul %183, %185, %cst_111 {dimension_numbers = #tpu.dot_dimension_numbers<[2], [2], [1], [1], [0, 0, 0, 1, 1, 1], [0], [0]>} : vector<1x8x8xbf16>, vector<1x8x8xbf16>, vector<1x8x8xf32> -> vector<1x8x8xf32>
    "tpu.trace_stop"() : () -> ()
    %cst_112 = arith.constant dense<0xFF800000> : vector<1x8xf32>
    %189 = vector.multi_reduction <maximumf>, %188, %cst_112 [2] : vector<1x8x8xf32> to vector<1x8xf32>
    %190 = vector.shape_cast %189 : vector<1x8xf32> to vector<1x8x1xf32>
    %191 = vector.broadcast %190 : vector<1x8x1xf32> to vector<1x8x8xf32>
    %192 = arith.subf %188, %191 : vector<1x8x8xf32>
    %193 = math.exp %192 : vector<1x8x8xf32>
    %cst_113 = arith.constant dense<0.000000e+00> : vector<1x8xf32>
    %194 = vector.multi_reduction <add>, %193, %cst_113 [2] : vector<1x8x8xf32> to vector<1x8xf32>
    %195 = vector.shape_cast %194 : vector<1x8xf32> to vector<1x8x1xf32>
    %196 = tpu.reciprocal %195 {approx = true} : vector<1x8x1xf32> -> vector<1x8x1xf32>
    %197 = vector.broadcast %196 : vector<1x8x1xf32> to vector<1x8x8xf32>
    %198 = arith.mulf %193, %197 : vector<1x8x8xf32>
    %199 = arith.truncf %198 : vector<1x8x8xf32> to vector<1x8x8xbf16>
    "tpu.trace_start"() <{level = 10 : i32, message = "bqk,bkd->bqd"}> : () -> ()
    %cst_114 = arith.constant dense<0.000000e+00> : vector<1x8x8xf32>
    %200 = tpu.matmul %199, %187, %cst_114 {dimension_numbers = #tpu.dot_dimension_numbers<[2], [1], [1], [2], [0, 0, 0, 1, 1, 2], [0], [0]>} : vector<1x8x8xbf16>, vector<1x8x8xbf16>, vector<1x8x8xf32> -> vector<1x8x8xf32>
    "tpu.trace_stop"() : () -> ()
    %201 = vector.shape_cast %200 : vector<1x8x8xf32> to vector<8x8xf32>
    %202 = arith.truncf %201 : vector<8x8xf32> to vector<8x8xbf16>
    %c5_115 = arith.constant 5 : index
    %c0_116 = arith.constant 0 : index
    %c0_117 = arith.constant 0 : index
    %203 = vector.load %arg6[%c5_115, %c0_116, %c0_117] : memref<8x8x64xbf16, #tpu.memory_space<vmem>>, vector<1x8x64xbf16>
    %204 = vector.shape_cast %203 : vector<1x8x64xbf16> to vector<8x64xbf16>
    %cst_118 = arith.constant dense<0.000000e+00> : vector<8x64xf32>
    %205 = tpu.matmul %202, %204, %cst_118 {dimension_numbers = #tpu.dot_dimension_numbers<[1], [0], [0], [1], [0, 0, 1, 1], [], []>} : vector<8x8xbf16>, vector<8x64xbf16>, vector<8x64xf32> -> vector<8x64xf32>
    %206 = arith.addf %172, %205 : vector<8x64xf32>
    %c6 = arith.constant 6 : index
    %c0_119 = arith.constant 0 : index
    %c0_120 = arith.constant 0 : index
    %207 = vector.load %arg3[%c6, %c0_119, %c0_120] : memref<8x64x8xbf16, #tpu.memory_space<vmem>>, vector<1x64x8xbf16>
    %208 = vector.shape_cast %207 : vector<1x64x8xbf16> to vector<64x8xbf16>
    %cst_121 = arith.constant dense<0.000000e+00> : vector<8x8xf32>
    %209 = tpu.matmul %1, %208, %cst_121 {dimension_numbers = #tpu.dot_dimension_numbers<[1], [0], [0], [1], [0, 0, 1, 1], [], []>} : vector<8x64xbf16>, vector<64x8xbf16>, vector<8x8xf32> -> vector<8x8xf32>
    %c6_122 = arith.constant 6 : index
    %c0_123 = arith.constant 0 : index
    %c0_124 = arith.constant 0 : index
    %210 = vector.load %arg4[%c6_122, %c0_123, %c0_124] : memref<8x64x8xbf16, #tpu.memory_space<vmem>>, vector<1x64x8xbf16>
    %211 = vector.shape_cast %210 : vector<1x64x8xbf16> to vector<64x8xbf16>
    %cst_125 = arith.constant dense<0.000000e+00> : vector<8x8xf32>
    %212 = tpu.matmul %3, %211, %cst_125 {dimension_numbers = #tpu.dot_dimension_numbers<[1], [0], [0], [1], [0, 0, 1, 1], [], []>} : vector<8x64xbf16>, vector<64x8xbf16>, vector<8x8xf32> -> vector<8x8xf32>
    %c6_126 = arith.constant 6 : index
    %c0_127 = arith.constant 0 : index
    %c0_128 = arith.constant 0 : index
    %213 = vector.load %arg5[%c6_126, %c0_127, %c0_128] : memref<8x64x8xbf16, #tpu.memory_space<vmem>>, vector<1x64x8xbf16>
    %214 = vector.shape_cast %213 : vector<1x64x8xbf16> to vector<64x8xbf16>
    %cst_129 = arith.constant dense<0.000000e+00> : vector<8x8xf32>
    %215 = tpu.matmul %3, %214, %cst_129 {dimension_numbers = #tpu.dot_dimension_numbers<[1], [0], [0], [1], [0, 0, 1, 1], [], []>} : vector<8x64xbf16>, vector<64x8xbf16>, vector<8x8xf32> -> vector<8x8xf32>
    %216 = vector.shape_cast %209 : vector<8x8xf32> to vector<1x8x8xf32>
    %217 = arith.truncf %216 : vector<1x8x8xf32> to vector<1x8x8xbf16>
    %218 = vector.shape_cast %212 : vector<8x8xf32> to vector<1x8x8xf32>
    %219 = arith.truncf %218 : vector<1x8x8xf32> to vector<1x8x8xbf16>
    %220 = vector.shape_cast %215 : vector<8x8xf32> to vector<1x8x8xf32>
    %221 = arith.truncf %220 : vector<1x8x8xf32> to vector<1x8x8xbf16>
    "tpu.trace_start"() <{level = 10 : i32, message = "bqd,bkd->bqk"}> : () -> ()
    %cst_130 = arith.constant dense<0.000000e+00> : vector<1x8x8xf32>
    %222 = tpu.matmul %217, %219, %cst_130 {dimension_numbers = #tpu.dot_dimension_numbers<[2], [2], [1], [1], [0, 0, 0, 1, 1, 1], [0], [0]>} : vector<1x8x8xbf16>, vector<1x8x8xbf16>, vector<1x8x8xf32> -> vector<1x8x8xf32>
    "tpu.trace_stop"() : () -> ()
    %cst_131 = arith.constant dense<0xFF800000> : vector<1x8xf32>
    %223 = vector.multi_reduction <maximumf>, %222, %cst_131 [2] : vector<1x8x8xf32> to vector<1x8xf32>
    %224 = vector.shape_cast %223 : vector<1x8xf32> to vector<1x8x1xf32>
    %225 = vector.broadcast %224 : vector<1x8x1xf32> to vector<1x8x8xf32>
    %226 = arith.subf %222, %225 : vector<1x8x8xf32>
    %227 = math.exp %226 : vector<1x8x8xf32>
    %cst_132 = arith.constant dense<0.000000e+00> : vector<1x8xf32>
    %228 = vector.multi_reduction <add>, %227, %cst_132 [2] : vector<1x8x8xf32> to vector<1x8xf32>
    %229 = vector.shape_cast %228 : vector<1x8xf32> to vector<1x8x1xf32>
    %230 = tpu.reciprocal %229 {approx = true} : vector<1x8x1xf32> -> vector<1x8x1xf32>
    %231 = vector.broadcast %230 : vector<1x8x1xf32> to vector<1x8x8xf32>
    %232 = arith.mulf %227, %231 : vector<1x8x8xf32>
    %233 = arith.truncf %232 : vector<1x8x8xf32> to vector<1x8x8xbf16>
    "tpu.trace_start"() <{level = 10 : i32, message = "bqk,bkd->bqd"}> : () -> ()
    %cst_133 = arith.constant dense<0.000000e+00> : vector<1x8x8xf32>
    %234 = tpu.matmul %233, %221, %cst_133 {dimension_numbers = #tpu.dot_dimension_numbers<[2], [1], [1], [2], [0, 0, 0, 1, 1, 2], [0], [0]>} : vector<1x8x8xbf16>, vector<1x8x8xbf16>, vector<1x8x8xf32> -> vector<1x8x8xf32>
    "tpu.trace_stop"() : () -> ()
    %235 = vector.shape_cast %234 : vector<1x8x8xf32> to vector<8x8xf32>
    %236 = arith.truncf %235 : vector<8x8xf32> to vector<8x8xbf16>
    %c6_134 = arith.constant 6 : index
    %c0_135 = arith.constant 0 : index
    %c0_136 = arith.constant 0 : index
    %237 = vector.load %arg6[%c6_134, %c0_135, %c0_136] : memref<8x8x64xbf16, #tpu.memory_space<vmem>>, vector<1x8x64xbf16>
    %238 = vector.shape_cast %237 : vector<1x8x64xbf16> to vector<8x64xbf16>
    %cst_137 = arith.constant dense<0.000000e+00> : vector<8x64xf32>
    %239 = tpu.matmul %236, %238, %cst_137 {dimension_numbers = #tpu.dot_dimension_numbers<[1], [0], [0], [1], [0, 0, 1, 1], [], []>} : vector<8x8xbf16>, vector<8x64xbf16>, vector<8x64xf32> -> vector<8x64xf32>
    %240 = arith.addf %206, %239 : vector<8x64xf32>
    %c7 = arith.constant 7 : index
    %c0_138 = arith.constant 0 : index
    %c0_139 = arith.constant 0 : index
    %241 = vector.load %arg3[%c7, %c0_138, %c0_139] : memref<8x64x8xbf16, #tpu.memory_space<vmem>>, vector<1x64x8xbf16>
    %242 = vector.shape_cast %241 : vector<1x64x8xbf16> to vector<64x8xbf16>
    %cst_140 = arith.constant dense<0.000000e+00> : vector<8x8xf32>
    %243 = tpu.matmul %1, %242, %cst_140 {dimension_numbers = #tpu.dot_dimension_numbers<[1], [0], [0], [1], [0, 0, 1, 1], [], []>} : vector<8x64xbf16>, vector<64x8xbf16>, vector<8x8xf32> -> vector<8x8xf32>
    %c7_141 = arith.constant 7 : index
    %c0_142 = arith.constant 0 : index
    %c0_143 = arith.constant 0 : index
    %244 = vector.load %arg4[%c7_141, %c0_142, %c0_143] : memref<8x64x8xbf16, #tpu.memory_space<vmem>>, vector<1x64x8xbf16>
    %245 = vector.shape_cast %244 : vector<1x64x8xbf16> to vector<64x8xbf16>
    %cst_144 = arith.constant dense<0.000000e+00> : vector<8x8xf32>
    %246 = tpu.matmul %3, %245, %cst_144 {dimension_numbers = #tpu.dot_dimension_numbers<[1], [0], [0], [1], [0, 0, 1, 1], [], []>} : vector<8x64xbf16>, vector<64x8xbf16>, vector<8x8xf32> -> vector<8x8xf32>
    %c7_145 = arith.constant 7 : index
    %c0_146 = arith.constant 0 : index
    %c0_147 = arith.constant 0 : index
    %247 = vector.load %arg5[%c7_145, %c0_146, %c0_147] : memref<8x64x8xbf16, #tpu.memory_space<vmem>>, vector<1x64x8xbf16>
    %248 = vector.shape_cast %247 : vector<1x64x8xbf16> to vector<64x8xbf16>
    %cst_148 = arith.constant dense<0.000000e+00> : vector<8x8xf32>
    %249 = tpu.matmul %3, %248, %cst_148 {dimension_numbers = #tpu.dot_dimension_numbers<[1], [0], [0], [1], [0, 0, 1, 1], [], []>} : vector<8x64xbf16>, vector<64x8xbf16>, vector<8x8xf32> -> vector<8x8xf32>
    %250 = vector.shape_cast %243 : vector<8x8xf32> to vector<1x8x8xf32>
    %251 = arith.truncf %250 : vector<1x8x8xf32> to vector<1x8x8xbf16>
    %252 = vector.shape_cast %246 : vector<8x8xf32> to vector<1x8x8xf32>
    %253 = arith.truncf %252 : vector<1x8x8xf32> to vector<1x8x8xbf16>
    %254 = vector.shape_cast %249 : vector<8x8xf32> to vector<1x8x8xf32>
    %255 = arith.truncf %254 : vector<1x8x8xf32> to vector<1x8x8xbf16>
    "tpu.trace_start"() <{level = 10 : i32, message = "bqd,bkd->bqk"}> : () -> ()
    %cst_149 = arith.constant dense<0.000000e+00> : vector<1x8x8xf32>
    %256 = tpu.matmul %251, %253, %cst_149 {dimension_numbers = #tpu.dot_dimension_numbers<[2], [2], [1], [1], [0, 0, 0, 1, 1, 1], [0], [0]>} : vector<1x8x8xbf16>, vector<1x8x8xbf16>, vector<1x8x8xf32> -> vector<1x8x8xf32>
    "tpu.trace_stop"() : () -> ()
    %cst_150 = arith.constant dense<0xFF800000> : vector<1x8xf32>
    %257 = vector.multi_reduction <maximumf>, %256, %cst_150 [2] : vector<1x8x8xf32> to vector<1x8xf32>
    %258 = vector.shape_cast %257 : vector<1x8xf32> to vector<1x8x1xf32>
    %259 = vector.broadcast %258 : vector<1x8x1xf32> to vector<1x8x8xf32>
    %260 = arith.subf %256, %259 : vector<1x8x8xf32>
    %261 = math.exp %260 : vector<1x8x8xf32>
    %cst_151 = arith.constant dense<0.000000e+00> : vector<1x8xf32>
    %262 = vector.multi_reduction <add>, %261, %cst_151 [2] : vector<1x8x8xf32> to vector<1x8xf32>
    %263 = vector.shape_cast %262 : vector<1x8xf32> to vector<1x8x1xf32>
    %264 = tpu.reciprocal %263 {approx = true} : vector<1x8x1xf32> -> vector<1x8x1xf32>
    %265 = vector.broadcast %264 : vector<1x8x1xf32> to vector<1x8x8xf32>
    %266 = arith.mulf %261, %265 : vector<1x8x8xf32>
    %267 = arith.truncf %266 : vector<1x8x8xf32> to vector<1x8x8xbf16>
    "tpu.trace_start"() <{level = 10 : i32, message = "bqk,bkd->bqd"}> : () -> ()
    %cst_152 = arith.constant dense<0.000000e+00> : vector<1x8x8xf32>
    %268 = tpu.matmul %267, %255, %cst_152 {dimension_numbers = #tpu.dot_dimension_numbers<[2], [1], [1], [2], [0, 0, 0, 1, 1, 2], [0], [0]>} : vector<1x8x8xbf16>, vector<1x8x8xbf16>, vector<1x8x8xf32> -> vector<1x8x8xf32>
    "tpu.trace_stop"() : () -> ()
    %269 = vector.shape_cast %268 : vector<1x8x8xf32> to vector<8x8xf32>
    %270 = arith.truncf %269 : vector<8x8xf32> to vector<8x8xbf16>
    %c7_153 = arith.constant 7 : index
    %c0_154 = arith.constant 0 : index
    %c0_155 = arith.constant 0 : index
    %271 = vector.load %arg6[%c7_153, %c0_154, %c0_155] : memref<8x8x64xbf16, #tpu.memory_space<vmem>>, vector<1x8x64xbf16>
    %272 = vector.shape_cast %271 : vector<1x8x64xbf16> to vector<8x64xbf16>
    %cst_156 = arith.constant dense<0.000000e+00> : vector<8x64xf32>
    %273 = tpu.matmul %270, %272, %cst_156 {dimension_numbers = #tpu.dot_dimension_numbers<[1], [0], [0], [1], [0, 0, 1, 1], [], []>} : vector<8x8xbf16>, vector<8x64xbf16>, vector<8x64xf32> -> vector<8x64xf32>
    %274 = arith.addf %240, %273 : vector<8x64xf32>
    %c0_157 = arith.constant 0 : index
    %c0_158 = arith.constant 0 : index
    %275 = vector.load %arg7[%c0_157, %c0_158] : memref<1x64xf32, #tpu.memory_space<vmem>>, vector<1x64xf32>
    %276 = vector.broadcast %275 : vector<1x64xf32> to vector<8x64xf32>
    %277 = arith.addf %274, %276 : vector<8x64xf32>
    %278 = vector.shape_cast %277 : vector<8x64xf32> to vector<1x8x64xf32>
    %c0_159 = arith.constant 0 : index
    %c0_160 = arith.constant 0 : index
    %c0_161 = arith.constant 0 : index
    %279 = vector.load %arg8[%c0_159, %c0_160, %c0_161] : memref<1x8x64xf32, #tpu.memory_space<vmem>>, vector<1x8x64xf32>
    tpu.vector_store %arg8[%c0_159, %c0_160, %c0_161], %278 {strides = array<i32>} : memref<1x8x64xf32, #tpu.memory_space<vmem>>, vector<1x8x64xf32>,
    return
  }
  func.func @transform_0(%arg0: i32) -> (i32, i32, i32) {
    %c0_i32 = arith.constant 0 : i32
    %c0_i32_0 = arith.constant 0 : i32
    %c0_i32_1 = arith.constant 0 : i32
    return %arg0, %c0_i32, %c0_i32_0 : i32, i32, i32
  }
  func.func @transform_1(%arg0: i32) -> (i32, i32, i32) {
    %c0_i32 = arith.constant 0 : i32
    %c0_i32_0 = arith.constant 0 : i32
    %c0_i32_1 = arith.constant 0 : i32
    return %arg0, %c0_i32, %c0_i32_0 : i32, i32, i32
  }
  func.func @transform_2(%arg0: i32) -> (i32, i32, i32) {
    %c0_i32 = arith.constant 0 : i32
    %c0_i32_0 = arith.constant 0 : i32
    %c0_i32_1 = arith.constant 0 : i32
    %c0_i32_2 = arith.constant 0 : i32
    return %c0_i32, %c0_i32_0, %c0_i32_1 : i32, i32, i32
  }
  func.func @transform_3(%arg0: i32) -> (i32, i32, i32) {
    %c0_i32 = arith.constant 0 : i32
    %c0_i32_0 = arith.constant 0 : i32
    %c0_i32_1 = arith.constant 0 : i32
    %c0_i32_2 = arith.constant 0 : i32
    return %c0_i32, %c0_i32_0, %c0_i32_1 : i32, i32, i32
  }
  func.func @transform_4(%arg0: i32) -> (i32, i32, i32) {
    %c0_i32 = arith.constant 0 : i32
    %c0_i32_0 = arith.constant 0 : i32
    %c0_i32_1 = arith.constant 0 : i32
    %c0_i32_2 = arith.constant 0 : i32
    return %c0_i32, %c0_i32_0, %c0_i32_1 : i32, i32, i32
  }
  func.func @transform_5(%arg0: i32) -> (i32, i32, i32) {
    %c0_i32 = arith.constant 0 : i32
    %c0_i32_0 = arith.constant 0 : i32
    %c0_i32_1 = arith.constant 0 : i32
    %c0_i32_2 = arith.constant 0 : i32
    return %c0_i32, %c0_i32_0, %c0_i32_1 : i32, i32, i32
  }
  func.func @transform_6(%arg0: i32) -> (i32, i32) {
    %c0_i32 = arith.constant 0 : i32
    %c0_i32_0 = arith.constant 0 : i32
    %c0_i32_1 = arith.constant 0 : i32
    return %c0_i32, %c0_i32_0 : i32, i32
  }
  func.func @transform_7(%arg0: i32) -> (i32, i32, i32) {
    %c0_i32 = arith.constant 0 : i32
    %c0_i32_0 = arith.constant 0 : i32
    %c0_i32_1 = arith.constant 0 : i32
    return %arg0, %c0_i32, %c0_i32_0 : i32, i32, i32
  }
}

</mosaic_0001>

<llo_original>
// kernel: tpu_custom_call.1
$region0: #{tpu_custom_call.1}
  #allocation0 [shape = 'u32[]', space=smem, size = 0x4, offset = 0x4, fixed_abs, tag = 'smem constant byte address 0x4 - core index']
  #allocation1 [shape = 'u32[144,128]{1,0:T(1,128)}', space=vmem, size = 0x12000, scoped, tag = 'internal scratch']
  %s0 = inlined_call_operand.vmem [shape: bf16[2,8,64], index: 0, kind: input, shape index: {}]
  %s1 = inlined_call_operand.vmem [shape: bf16[2,8,64], index: 1, kind: input, shape index: {}]
  %s2 = inlined_call_operand.vmem [shape: bf16[8,64,8], index: 2, kind: input, shape index: {}]
  %s3 = inlined_call_operand.vmem [shape: bf16[8,64,8], index: 3, kind: input, shape index: {}]
  %s4 = inlined_call_operand.vmem [shape: bf16[8,64,8], index: 4, kind: input, shape index: {}]
  %s5 = inlined_call_operand.vmem [shape: bf16[8,8,64], index: 5, kind: input, shape index: {}]
  %s6 = inlined_call_operand.vmem [shape: f32[1,64], index: 6, kind: input, shape index: {}]
  %s7 = inlined_call_operand.hbm [shape: f32[2,8,64], index: 7, kind: output, shape index: {}]
  %s8 = sld [smem:[#allocation0]]
  $region61: #{tpu_custom_call.1} parent=0
    _
  %s10 = ssub.s32 1, %s8
  %s11 = scalar_select 0, %s10, %s8
  $region1: #{tpu_custom_call.1} parent=0
    #allocation2 [shape = 'u8[8192]{0}', space=vmem, size = 0x2000, scoped, tag = 'output window, operand 0']
    #allocation3 [shape = 's32[2]{0}', space=sflag, size = 0x8, scoped, tag = 'scoped memory for tpu_custom_call.1']
    %12 = vsyncpa [#allocation3], 0
    %s13 = scalar_lea.sflag [#allocation3], 1
    %14 = vsyncpa %s13, 0
    loop: start=0, step=1, limit=4
    $region2: #{tpu_custom_call.1} parent=1 // loop_pre_header
      _
    $region3: #{tpu_custom_call.1} parent=1 // loop_header
      %s16 = sphi 0, %s20
      %p17 = scmp.ge.s32.totalorder %s16, 4
      %s26 = sphi 0, %s28
      %s29 = sphi 0, %s26
      %s30 = sphi 0, %s29
      %s46 = sphi 0, %s30
      %s52 = sphi 0, %s54
      %s55 = sphi 0, %s52
      %s56 = sphi 0, %s55
      %s72 = sphi 0, %s56
      %s76 = sphi 0, %s76
      %s78 = sphi 0, %s76
      %s79 = sphi 0, %s78
      %s93 = sphi 0, %s79
      %s97 = sphi 0, %s97
      %s99 = sphi 0, %s97
      %s100 = sphi 0, %s99
      %s114 = sphi 0, %s100
      %s118 = sphi 0, %s118
      %s120 = sphi 0, %s118
      %s121 = sphi 0, %s120
      %s135 = sphi 0, %s121
      %s139 = sphi 0, %s139
      %s141 = sphi 0, %s139
      %s142 = sphi 0, %s141
      %s156 = sphi 0, %s142
      %s160 = sphi 0, %s160
      %s162 = sphi 0, %s160
      %s163 = sphi 0, %s162
      %s177 = sphi 0, %s163
      %s183 = sphi 0, %s185
      %s186 = sphi 0, %s183
      %s187 = sphi 0, %s186
      %s203 = sphi 0, %s187
    $region4: #{tpu_custom_call.1} parent=1 // loop_header_branch
      %19 = sbr.rel (%p17) target = $region8
    $region5: #{tpu_custom_call.1} parent=1 // loop_body
      %s21 = ssub.s32 %s16, 1
      %s22 = ssub.s32 %s16, 2
      %s23 = sadd.s32 %s16, 1
      %s24 = ssub.s32 %s16, %s23
      %p25 = scmp.eq.s32.totalorder %s24, 0
      %s27 = sadd.s32 %s26, 1
      %s28 = scalar_select %p25, %s26, %s27
      %p31 = pneg %p25
      %p32 = scmp.eq.s32.totalorder %s16, 1
      %p33 = por %p31, %p32
      %p34 = scmp.ne.s32.totalorder %s26, %s29
      %p35 = scmp.eq.s32.totalorder %s16, 0
      %p36 = por %p34, %p35
      %p37 = scmp.ne.s32.totalorder %s26, %s29
      %p38 = scmp.eq.s32.totalorder %s21, 1
      %p39 = por %p37, %p38
      %p40 = scmp.ne.s32.totalorder %s29, %s30
      %p41 = scmp.eq.s32.totalorder %s21, 0
      %p42 = por %p40, %p41
      %p43 = scmp.ne.s32.totalorder %s29, %s30
      %p44 = scmp.eq.s32.totalorder %s22, 1
      %p45 = por %p43, %p44
      %p47 = scmp.ne.s32.totalorder %s30, %s46
      %p48 = scmp.eq.s32.totalorder %s22, 0
      %p49 = por %p47, %p48
      %s50 = ssub.s32 %s16, %s23
      %p51 = scmp.eq.s32.totalorder %s50, 0
      %s53 = sadd.s32 %s52, 1
      %s54 = scalar_select %p51, %s52, %s53
      %p57 = pneg %p51
      %p58 = scmp.eq.s32.totalorder %s16, 1
      %p59 = por %p57, %p58
      %p60 = scmp.ne.s32.totalorder %s52, %s55
      %p61 = scmp.eq.s32.totalorder %s16, 0
      %p62 = por %p60, %p61
      %p63 = scmp.ne.s32.totalorder %s52, %s55
      %p64 = scmp.eq.s32.totalorder %s21, 1
      %p65 = por %p63, %p64
      %p66 = scmp.ne.s32.totalorder %s55, %s56
      %p67 = scmp.eq.s32.totalorder %s21, 0
      %p68 = por %p66, %p67
      %p69 = scmp.ne.s32.totalorder %s55, %s56
      %p70 = scmp.eq.s32.totalorder %s22, 1
      %p71 = por %p69, %p70
      %p73 = scmp.ne.s32.totalorder %s56, %s72
      %p74 = scmp.eq.s32.totalorder %s22, 0
      %p75 = por %p73, %p74
      %s77 = sadd.s32 %s76, 1
      %p80 = scmp.eq.s32.totalorder %s16, 1
      %p81 = scmp.ne.s32.totalorder %s76, %s78
      %p82 = scmp.eq.s32.totalorder %s16, 0
      %p83 = por %p81, %p82
      %p84 = scmp.ne.s32.totalorder %s76, %s78
      %p85 = scmp.eq.s32.totalorder %s21, 1
      %p86 = por %p84, %p85
      %p87 = scmp.ne.s32.totalorder %s78, %s79
      %p88 = scmp.eq.s32.totalorder %s21, 0
      %p89 = por %p87, %p88
      %p90 = scmp.ne.s32.totalorder %s78, %s79
      %p91 = scmp.eq.s32.totalorder %s22, 1
      %p92 = por %p90, %p91
      %p94 = scmp.ne.s32.totalorder %s79, %s93
      %p95 = scmp.eq.s32.totalorder %s22, 0
      %p96 = por %p94, %p95
      %s98 = sadd.s32 %s97, 1
      %p101 = scmp.eq.s32.totalorder %s16, 1
      %p102 = scmp.ne.s32.totalorder %s97, %s99
      %p103 = scmp.eq.s32.totalorder %s16, 0
      %p104 = por %p102, %p103
      %p105 = scmp.ne.s32.totalorder %s97, %s99
      %p106 = scmp.eq.s32.totalorder %s21, 1
      %p107 = por %p105, %p106
      %p108 = scmp.ne.s32.totalorder %s99, %s100
      %p109 = scmp.eq.s32.totalorder %s21, 0
      %p110 = por %p108, %p109
      %p111 = scmp.ne.s32.totalorder %s99, %s100
      %p112 = scmp.eq.s32.totalorder %s22, 1
      %p113 = por %p111, %p112
      %p115 = scmp.ne.s32.totalorder %s100, %s114
      %p116 = scmp.eq.s32.totalorder %s22, 0
      %p117 = por %p115, %p116
      %s119 = sadd.s32 %s118, 1
      %p122 = scmp.eq.s32.totalorder %s16, 1
      %p123 = scmp.ne.s32.totalorder %s118, %s120
      %p124 = scmp.eq.s32.totalorder %s16, 0
      %p125 = por %p123, %p124
      %p126 = scmp.ne.s32.totalorder %s118, %s120
      %p127 = scmp.eq.s32.totalorder %s21, 1
      %p128 = por %p126, %p127
      %p129 = scmp.ne.s32.totalorder %s120, %s121
      %p130 = scmp.eq.s32.totalorder %s21, 0
      %p131 = por %p129, %p130
      %p132 = scmp.ne.s32.totalorder %s120, %s121
      %p133 = scmp.eq.s32.totalorder %s22, 1
      %p134 = por %p132, %p133
      %p136 = scmp.ne.s32.totalorder %s121, %s135
      %p137 = scmp.eq.s32.totalorder %s22, 0
      %p138 = por %p136, %p137
      %s140 = sadd.s32 %s139, 1
      %p143 = scmp.eq.s32.totalorder %s16, 1
      %p144 = scmp.ne.s32.totalorder %s139, %s141
      %p145 = scmp.eq.s32.totalorder %s16, 0
      %p146 = por %p144, %p145
      %p147 = scmp.ne.s32.totalorder %s139, %s141
      %p148 = scmp.eq.s32.totalorder %s21, 1
      %p149 = por %p147, %p148
      %p150 = scmp.ne.s32.totalorder %s141, %s142
      %p151 = scmp.eq.s32.totalorder %s21, 0
      %p152 = por %p150, %p151
      %p153 = scmp.ne.s32.totalorder %s141, %s142
      %p154 = scmp.eq.s32.totalorder %s22, 1
      %p155 = por %p153, %p154
      %p157 = scmp.ne.s32.totalorder %s142, %s156
      %p158 = scmp.eq.s32.totalorder %s22, 0
      %p159 = por %p157, %p158
      %s161 = sadd.s32 %s160, 1
      %p164 = scmp.eq.s32.totalorder %s16, 1
      %p165 = scmp.ne.s32.totalorder %s160, %s162
      %p166 = scmp.eq.s32.totalorder %s16, 0
      %p167 = por %p165, %p166
      %p168 = scmp.ne.s32.totalorder %s160, %s162
      %p169 = scmp.eq.s32.totalorder %s21, 1
      %p170 = por %p168, %p169
      %p171 = scmp.ne.s32.totalorder %s162, %s163
      %p172 = scmp.eq.s32.totalorder %s21, 0
      %p173 = por %p171, %p172
      %p174 = scmp.ne.s32.totalorder %s162, %s163
      %p175 = scmp.eq.s32.totalorder %s22, 1
      %p176 = por %p174, %p175
      %p178 = scmp.ne.s32.totalorder %s163, %s177
      %p179 = scmp.eq.s32.totalorder %s22, 0
      %p180 = por %p178, %p179
      %s181 = ssub.s32 %s16, %s23
      %p182 = scmp.eq.s32.totalorder %s181, 0
      %s184 = sadd.s32 %s183, 1
      %s185 = scalar_select %p182, %s183, %s184
      %p188 = pneg %p182
      %p189 = scmp.eq.s32.totalorder %s16, 1
      %p190 = por %p188, %p189
      %p191 = scmp.ne.s32.totalorder %s183, %s186
      %p192 = scmp.eq.s32.totalorder %s16, 0
      %p193 = por %p191, %p192
      %p194 = scmp.ne.s32.totalorder %s183, %s186
      %p195 = scmp.eq.s32.totalorder %s21, 1
      %p196 = por %p194, %p195
      %p197 = scmp.ne.s32.totalorder %s186, %s187
      %p198 = scmp.eq.s32.totalorder %s21, 0
      %p199 = por %p197, %p198
      %p200 = scmp.ne.s32.totalorder %s186, %s187
      %p201 = scmp.eq.s32.totalorder %s22, 1
      %p202 = por %p200, %p201
      %p204 = scmp.ne.s32.totalorder %s187, %s203
      %p205 = scmp.eq.s32.totalorder %s22, 0
      %p206 = por %p204, %p205
      %p207 = scmp.le.s32.totalorder 1, %s16
      %p208 = scmp.lt.s32.totalorder %s16, 3
      %p209 = pnand %p207, %p208
      %p210 = pneg %p209
      // Predicated region
      $region9: #{tpu_custom_call.1} parent=5 // pred_check
        _
      $region10: #{tpu_custom_call.1} parent=5 // pred_check_branch
        %212 = sbr.rel (%p209) target = $region12
      $region11: #{tpu_custom_call.1} parent=5 // pred_region
        %s213 = ssub.s32 %s16, 1
        // Predicated region
        $region13: #{tpu_custom_call.1} parent=11 // pred_check
          %p214 = pneg %p89
        $region14: #{tpu_custom_call.1} parent=11 // pred_check_branch
          %216 = sbr.rel (%p214) target = $region16
        $region15: #{tpu_custom_call.1} parent=11 // pred_region
          _
        $region16: #{tpu_custom_call.1} parent=11 // pred_fallthru
          _
        // Predicated region
        $region17: #{tpu_custom_call.1} parent=11 // pred_check
          %p217 = pneg %p110
        $region18: #{tpu_custom_call.1} parent=11 // pred_check_branch
          %219 = sbr.rel (%p217) target = $region20
        $region19: #{tpu_custom_call.1} parent=11 // pred_region
          _
        $region20: #{tpu_custom_call.1} parent=11 // pred_fallthru
          _
        // Predicated region
        $region21: #{tpu_custom_call.1} parent=11 // pred_check
          %p220 = pneg %p131
        $region22: #{tpu_custom_call.1} parent=11 // pred_check_branch
          %222 = sbr.rel (%p220) target = $region24
        $region23: #{tpu_custom_call.1} parent=11 // pred_region
          _
        $region24: #{tpu_custom_call.1} parent=11 // pred_fallthru
          _
        // Predicated region
        $region25: #{tpu_custom_call.1} parent=11 // pred_check
          %p223 = pneg %p152
        $region26: #{tpu_custom_call.1} parent=11 // pred_check_branch
          %225 = sbr.rel (%p223) target = $region28
        $region27: #{tpu_custom_call.1} parent=11 // pred_region
          _
        $region28: #{tpu_custom_call.1} parent=11 // pred_fallthru
          _
        // Predicated region
        $region29: #{tpu_custom_call.1} parent=11 // pred_check
          %p226 = pneg %p173
        $region30: #{tpu_custom_call.1} parent=11 // pred_check_branch
          %228 = sbr.rel (%p226) target = $region32
        $region31: #{tpu_custom_call.1} parent=11 // pred_region
          _
        $region32: #{tpu_custom_call.1} parent=11 // pred_fallthru
          _
      $region12: #{tpu_custom_call.1} parent=5 // pred_fallthru
        _
      %p229 = scmp.lt.s32.totalorder %s16, 2
      // Predicated region
      $region33: #{tpu_custom_call.1} parent=5 // pred_check
        %p230 = pneg %p229
      $region34: #{tpu_custom_call.1} parent=5 // pred_check_branch
        %232 = sbr.rel (%p230) target = $region36
      $region35: #{tpu_custom_call.1} parent=5 // pred_region
        // Predicated region
        $region37: #{tpu_custom_call.1} parent=35 // pred_check
          %p233 = pneg %p36
        $region38: #{tpu_custom_call.1} parent=35 // pred_check_branch
          %235 = sbr.rel (%p233) target = $region40
        $region39: #{tpu_custom_call.1} parent=35 // pred_region
          %p236 = scmp.lt.s32.totalorder %s16, 1
          %s237 = scalar_select %p236, %s16, 1
          %s238 = smul.addr %s237, 4
          %s239 = scalar_lea.vmem %s0, %s238
        $region40: #{tpu_custom_call.1} parent=35 // pred_fallthru
          _
        // Predicated region
        $region41: #{tpu_custom_call.1} parent=35 // pred_check
          %p240 = pneg %p62
        $region42: #{tpu_custom_call.1} parent=35 // pred_check_branch
          %242 = sbr.rel (%p240) target = $region44
        $region43: #{tpu_custom_call.1} parent=35 // pred_region
          %p243 = scmp.lt.s32.totalorder %s16, 1
          %s244 = scalar_select %p243, %s16, 1
          %s245 = smul.addr %s244, 4
          %s246 = scalar_lea.vmem %s1, %s245
        $region44: #{tpu_custom_call.1} parent=35 // pred_fallthru
          _
      $region36: #{tpu_custom_call.1} parent=5 // pred_fallthru
        _
      %p247 = scmp.le.s32.totalorder 1, %s16
      %p248 = scmp.lt.s32.totalorder %s16, 3
      %p249 = pnand %p247, %p248
      %p250 = pneg %p249
      // Predicated region
      $region45: #{tpu_custom_call.1} parent=5 // pred_check
        _
      $region46: #{tpu_custom_call.1} parent=5 // pred_check_branch
        %252 = sbr.rel (%p249) target = $region48
      $region47: #{tpu_custom_call.1} parent=5 // pred_region
        %s253 = ssub.s32 %s16, 1
        %p254 = scmp.lt.s32.totalorder %s21, 1
        %s255 = scalar_select %p254, %s21, 1
        %s256 = smul.addr %s255, 4
        %s257 = scalar_lea.vmem %s0, %s256
        %p258 = pneg %p42
        %p259 = pneg %p39
        %p260 = scmp.lt.s32.totalorder %s21, 1
        %s261 = scalar_select %p260, %s21, 1
        %s262 = smul.addr %s261, 4
        %s263 = scalar_lea.vmem %s1, %s262
        %p264 = pneg %p68
        %p265 = pneg %p65
        %p266 = pneg %p89
        %p267 = pneg %p86
        %p268 = pneg %p110
        %p269 = pneg %p107
        %p270 = pneg %p131
        %p271 = pneg %p128
        %p272 = pneg %p152
        %p273 = pneg %p149
        %p274 = pneg %p173
        %p275 = pneg %p170
        %p276 = pneg %p199
        %p277 = pneg %p196
        %s278 = sand.u32 %s186, 1
        %s279 = scalar_lea.sflag [#allocation3], %s278
        %s280 = sand.u32 %s186, 1
        %s281 = smul.addr %s280, 8
        %s282 = scalar_lea.vmem [#allocation2], %s281
        %p283 = scmp.lt.s32.totalorder %s21, 1
        %s284 = scalar_select %p283, %s21, 1
        %s285 = smul.addr %s284, 4
        %s286 = scalar_lea.vmem %s0, %s285
        %p287 = scmp.lt.s32.totalorder %s21, 1
        %s288 = scalar_select %p287, %s21, 1
        %s289 = smul.addr %s288, 4
        %s290 = scalar_lea.vmem %s1, %s289
        %v292 = vld [vmem:[%s286] sm:$0xf]
        %v293 = vld [vmem:[%s290] sm:$0xf]
        %v294 = vld [vmem:[%s2] sm:$0xf]
        %v295 = vld [vmem:[%s2 + $0x4] sm:$0xf]
        %v296 = vld [vmem:[%s2 + $0x8] sm:$0xf]
        %v297 = vld [vmem:[%s2 + $0xc] sm:$0xf]
        %v298 = vld [vmem:[%s2 + $0x10] sm:$0xf]
        %v299 = vld [vmem:[%s2 + $0x14] sm:$0xf]
        %v300 = vld [vmem:[%s2 + $0x18] sm:$0xf]
        %v301 = vld [vmem:[%s2 + $0x1c] sm:$0xf]
        %v310 = vunpack.c.l.b16 %v294
        %v311 = vunpack.c.l.b16 %v295
        %v312 = vunpack.c.l.b16 %v296
        %v313 = vunpack.c.l.b16 %v297
        %v314 = vunpack.c.l.b16 %v298
        %v315 = vunpack.c.l.b16 %v299
        %v316 = vunpack.c.l.b16 %v300
        %v317 = vunpack.c.l.b16 %v301
        %v318 = vpack.c.b16 %v311, %v310
        %v319 = vpack.c.b16 %v313, %v312
        %v320 = vpack.c.b16 %v315, %v314
        %v321 = vpack.c.b16 %v317, %v316
        %vm326 = vcmask 523264
        %v328 = vsel %vm326, %v292, 0
        %330 = vmatprep.subr.bf16.mxu0 0
        %331 = vmatpush1.bf16.msra.mxu0 0
        %332 = vmatprep.subr.bf16.mxu0 0
        %333 = vmatpush1.bf16.msra.mxu0 0
        %334 = vmatprep.subr.bf16.mxu0 0
        %335 = vmatpush1.bf16.msra.mxu0 0
        %336 = vmatprep.subr.bf16.mxu0 0
        %337 = vmatpush1.bf16.msra.mxu0 0
        %338 = vmatprep.subr.bf16.mxu0 0
        %339 = vmatpush1.bf16.msra.mxu0 %v321
        %340 = vmatprep.subr.bf16.mxu0 0
        %341 = vmatpush1.bf16.msra.mxu0 %v320
        %342 = vmatprep.subr.bf16.mxu0 0
        %343 = vmatpush1.bf16.msra.mxu0 %v319
        %344 = vmatprep.subr.bf16.mxu0 0
        %345 = vmatpush1.bf16.msra.mxu0 %v318
        %346 = vmatprep.subr.bf16.mxu0 0
        %347 = vmatpush2.bf16.msra.mxu0 0
        %348 = vmatprep.subr.bf16.mxu0 0
        %349 = vmatpush2.bf16.msra.mxu0 0
        %350 = vmatprep.subr.bf16.mxu0 0
        %351 = vmatpush2.bf16.msra.mxu0 0
        %352 = vmatprep.subr.bf16.mxu0 0
        %353 = vmatpush2.bf16.msra.mxu0 0
        %354 = vmatprep.subr.bf16.mxu0 0
        %355 = vmatpush2.bf16.msra.mxu0 0
        %356 = vmatprep.subr.bf16.mxu0 0
        %357 = vmatpush2.bf16.msra.mxu0 0
        %358 = vmatprep.subr.bf16.mxu0 0
        %359 = vmatpush2.bf16.msra.mxu0 0
        %360 = vmatprep.subr.bf16.mxu0 0
        %361 = vmatpush2.bf16.msra.mxu0 0
        %362 = vmatprep.mubr.bf16.mxu0 0
        %363 = vmatmul.mubr.bf16.gmra.mxu0 %v328
        %v364 = vpop.f32.mrf.mxu0
        %v365 = vadd.f32 0.0, %v364
        %v366 = vpop.f32.mrf.mxu0
        %v367 = vpop.f32.mrf.mxu0
        %v368 = vpop.f32.mrf.mxu0
        %369 = vdwg.mxu0
        %v370 = vld [vmem:[%s3] sm:$0xf]
        %v371 = vld [vmem:[%s3 + $0x4] sm:$0xf]
        %v372 = vld [vmem:[%s3 + $0x8] sm:$0xf]
        %v373 = vld [vmem:[%s3 + $0xc] sm:$0xf]
        %v374 = vld [vmem:[%s3 + $0x10] sm:$0xf]
        %v375 = vld [vmem:[%s3 + $0x14] sm:$0xf]
        %v376 = vld [vmem:[%s3 + $0x18] sm:$0xf]
        %v377 = vld [vmem:[%s3 + $0x1c] sm:$0xf]
        %v386 = vunpack.c.l.b16 %v370
        %v387 = vunpack.c.l.b16 %v371
        %v388 = vunpack.c.l.b16 %v372
        %v389 = vunpack.c.l.b16 %v373
        %v390 = vunpack.c.l.b16 %v374
        %v391 = vunpack.c.l.b16 %v375
        %v392 = vunpack.c.l.b16 %v376
        %v393 = vunpack.c.l.b16 %v377
        %v394 = vpack.c.b16 %v387, %v386
        %v395 = vpack.c.b16 %v389, %v388
        %v396 = vpack.c.b16 %v391, %v390
        %v397 = vpack.c.b16 %v393, %v392
        %v403 = vsel %vm326, %v293, 0
        %405 = vmatprep.subr.bf16.mxu0 0
        %406 = vmatpush1.bf16.msra.mxu0 0
        %407 = vmatprep.subr.bf16.mxu0 0
        %408 = vmatpush1.bf16.msra.mxu0 0
        %409 = vmatprep.subr.bf16.mxu0 0
        %410 = vmatpush1.bf16.msra.mxu0 0
        %411 = vmatprep.subr.bf16.mxu0 0
        %412 = vmatpush1.bf16.msra.mxu0 0
        %413 = vmatprep.subr.bf16.mxu0 0
        %414 = vmatpush1.bf16.msra.mxu0 %v397
        %415 = vmatprep.subr.bf16.mxu0 0
        %416 = vmatpush1.bf16.msra.mxu0 %v396
        %417 = vmatprep.subr.bf16.mxu0 0
        %418 = vmatpush1.bf16.msra.mxu0 %v395
        %419 = vmatprep.subr.bf16.mxu0 0
        %420 = vmatpush1.bf16.msra.mxu0 %v394
        %421 = vmatprep.subr.bf16.mxu0 0
        %422 = vmatpush2.bf16.msra.mxu0 0
        %423 = vmatprep.subr.bf16.mxu0 0
        %424 = vmatpush2.bf16.msra.mxu0 0
        %425 = vmatprep.subr.bf16.mxu0 0
        %426 = vmatpush2.bf16.msra.mxu0 0
        %427 = vmatprep.subr.bf16.mxu0 0
        %428 = vmatpush2.bf16.msra.mxu0 0
        %429 = vmatprep.subr.bf16.mxu0 0
        %430 = vmatpush2.bf16.msra.mxu0 0
        %431 = vmatprep.subr.bf16.mxu0 0
        %432 = vmatpush2.bf16.msra.mxu0 0
        %433 = vmatprep.subr.bf16.mxu0 0
        %434 = vmatpush2.bf16.msra.mxu0 0
        %435 = vmatprep.subr.bf16.mxu0 0
        %436 = vmatpush2.bf16.msra.mxu0 0
        %437 = vmatprep.mubr.bf16.mxu0 0
        %438 = vmatmul.mubr.bf16.gmra.mxu0 %v403
        %v439 = vpop.f32.mrf.mxu0
        %v440 = vadd.f32 0.0, %v439
        %v441 = vpop.f32.mrf.mxu0
        %v442 = vpop.f32.mrf.mxu0
        %v443 = vpop.f32.mrf.mxu0
        %444 = vdwg.mxu0
        %v445 = vld [vmem:[%s4] sm:$0xf]
        %v446 = vld [vmem:[%s4 + $0x4] sm:$0xf]
        %v447 = vld [vmem:[%s4 + $0x8] sm:$0xf]
        %v448 = vld [vmem:[%s4 + $0xc] sm:$0xf]
        %v449 = vld [vmem:[%s4 + $0x10] sm:$0xf]
        %v450 = vld [vmem:[%s4 + $0x14] sm:$0xf]
        %v451 = vld [vmem:[%s4 + $0x18] sm:$0xf]
        %v452 = vld [vmem:[%s4 + $0x1c] sm:$0xf]
        %v461 = vunpack.c.l.b16 %v445
        %v462 = vunpack.c.l.b16 %v446
        %v463 = vunpack.c.l.b16 %v447
        %v464 = vunpack.c.l.b16 %v448
        %v465 = vunpack.c.l.b16 %v449
        %v466 = vunpack.c.l.b16 %v450
        %v467 = vunpack.c.l.b16 %v451
        %v468 = vunpack.c.l.b16 %v452
        %v469 = vpack.c.b16 %v462, %v461
        %v470 = vpack.c.b16 %v464, %v463
        %v471 = vpack.c.b16 %v466, %v465
        %v472 = vpack.c.b16 %v468, %v467
        %477 = vmatprep.subr.bf16.mxu0 0
        %478 = vmatpush1.bf16.msra.mxu0 0
        %479 = vmatprep.subr.bf16.mxu0 0
        %480 = vmatpush1.bf16.msra.mxu0 0
        %481 = vmatprep.subr.bf16.mxu0 0
        %482 = vmatpush1.bf16.msra.mxu0 0
        %483 = vmatprep.subr.bf16.mxu0 0
        %484 = vmatpush1.bf16.msra.mxu0 0
        %485 = vmatprep.subr.bf16.mxu0 0
        %486 = vmatpush1.bf16.msra.mxu0 %v472
        %487 = vmatprep.subr.bf16.mxu0 0
        %488 = vmatpush1.bf16.msra.mxu0 %v471
        %489 = vmatprep.subr.bf16.mxu0 0
        %490 = vmatpush1.bf16.msra.mxu0 %v470
        %491 = vmatprep.subr.bf16.mxu0 0
        %492 = vmatpush1.bf16.msra.mxu0 %v469
        %493 = vmatprep.subr.bf16.mxu0 0
        %494 = vmatpush2.bf16.msra.mxu0 0
        %495 = vmatprep.subr.bf16.mxu0 0
        %496 = vmatpush2.bf16.msra.mxu0 0
        %497 = vmatprep.subr.bf16.mxu0 0
        %498 = vmatpush2.bf16.msra.mxu0 0
        %499 = vmatprep.subr.bf16.mxu0 0
        %500 = vmatpush2.bf16.msra.mxu0 0
        %501 = vmatprep.subr.bf16.mxu0 0
        %502 = vmatpush2.bf16.msra.mxu0 0
        %503 = vmatprep.subr.bf16.mxu0 0
        %504 = vmatpush2.bf16.msra.mxu0 0
        %505 = vmatprep.subr.bf16.mxu0 0
        %506 = vmatpush2.bf16.msra.mxu0 0
        %507 = vmatprep.subr.bf16.mxu0 0
        %508 = vmatpush2.bf16.msra.mxu0 0
        %509 = vmatprep.mubr.bf16.mxu0 0
        %510 = vmatmul.mubr.bf16.gmra.mxu0 %v403
        %v511 = vpop.f32.mrf.mxu0
        %v512 = vadd.f32 0.0, %v511
        %v513 = vpop.f32.mrf.mxu0
        %v514 = vpop.f32.mrf.mxu0
        %v515 = vpop.f32.mrf.mxu0
        %516 = vdwg.mxu0
        %v517 = vpack.c.bf16 %v365, %v365
        %v518 = vpack.c.bf16 %v440, %v440
        %v519 = vpack.c.bf16 %v512, %v512
        %vm520 = vcmask 64512
        %v522 = vsel %vm520, %v517, 0
        %v525 = vsel %vm520, %v518, 0
        %527 = vmatprep.subr.bf16.mxu0 0
        %528 = vmatpush1.bf16.xpose.msra.mxu0 0
        %529 = vmatprep.subr.bf16.mxu0 0
        %530 = vmatpush1.bf16.xpose.msra.mxu0 0
        %531 = vmatprep.subr.bf16.mxu0 0
        %532 = vmatpush1.bf16.xpose.msra.mxu0 0
        %533 = vmatprep.subr.bf16.mxu0 0
        %534 = vmatpush1.bf16.xpose.msra.mxu0 0
        %535 = vmatprep.subr.bf16.mxu0 0
        %536 = vmatpush1.bf16.xpose.msra.mxu0 0
        %537 = vmatprep.subr.bf16.mxu0 0
        %538 = vmatpush1.bf16.xpose.msra.mxu0 0
        %539 = vmatprep.subr.bf16.mxu0 0
        %540 = vmatpush1.bf16.xpose.msra.mxu0 0
        %541 = vmatprep.subr.bf16.mxu0 0
        %542 = vmatpush1.bf16.xpose.msra.mxu0 %v525
        %543 = vmatprep.subr.bf16.mxu0 0
        %544 = vmatpush2.bf16.xpose.msra.mxu0 0
        %545 = vmatprep.subr.bf16.mxu0 0
        %546 = vmatpush2.bf16.xpose.msra.mxu0 0
        %547 = vmatprep.subr.bf16.mxu0 0
        %548 = vmatpush2.bf16.xpose.msra.mxu0 0
        %549 = vmatprep.subr.bf16.mxu0 0
        %550 = vmatpush2.bf16.xpose.msra.mxu0 0
        %551 = vmatprep.subr.bf16.mxu0 0
        %552 = vmatpush2.bf16.xpose.msra.mxu0 0
        %553 = vmatprep.subr.bf16.mxu0 0
        %554 = vmatpush2.bf16.xpose.msra.mxu0 0
        %555 = vmatprep.subr.bf16.mxu0 0
        %556 = vmatpush2.bf16.xpose.msra.mxu0 0
        %557 = vmatprep.subr.bf16.mxu0 0
        %558 = vmatpush2.bf16.xpose.msra.mxu0 0
        %559 = vmatprep.mubr.bf16.mxu0 0
        %560 = vmatmul.mubr.bf16.gmra.mxu0 %v522
        %v561 = vpop.f32.mrf.mxu0
        %v562 = vadd.f32 0.0, %v561
        %v563 = vpop.f32.mrf.mxu0
        %v564 = vpop.f32.mrf.mxu0
        %v565 = vpop.f32.mrf.mxu0
        %566 = vdwg.mxu0
        %v567 = vsel %vm520, %v562, -inf
        %568 = vmax.xlane.f32.xlu0 %v567
        %v569 = vpop.xlane.xlu0 %568
        %v570 = vsub.f32 %v562, %v569
        %v571 = vmul.f32 %v570, 1.442695
        %v572 = vpow.pop %v571
        %v573 = vsel %vm520, %v572, 0.0
        %574 = vadd.xlane.f32.xlu0 %v573
        %v575 = vpop.xlane.xlu0 %574
        %v576 = vrcp.pop %v575
        %v577 = vmul.f32 %v572, %v576
        %v578 = vpack.c.bf16 %v577, %v577
        %v580 = vsel %vm520, %v578, 0
        %vm582 = vcmask 1043456
        %v584 = vsel %vm582, %v519, 0
        %586 = vmatprep.subr.bf16.mxu0 0
        %587 = vmatpush1.bf16.msra.mxu0 0
        %588 = vmatprep.subr.bf16.mxu0 0
        %589 = vmatpush1.bf16.msra.mxu0 0
        %590 = vmatprep.subr.bf16.mxu0 0
        %591 = vmatpush1.bf16.msra.mxu0 0
        %592 = vmatprep.subr.bf16.mxu0 0
        %593 = vmatpush1.bf16.msra.mxu0 0
        %594 = vmatprep.subr.bf16.mxu0 0
        %595 = vmatpush1.bf16.msra.mxu0 0
        %596 = vmatprep.subr.bf16.mxu0 0
        %597 = vmatpush1.bf16.msra.mxu0 0
        %598 = vmatprep.subr.bf16.mxu0 0
        %599 = vmatpush1.bf16.msra.mxu0 0
        %600 = vmatprep.subr.bf16.mxu0 0
        %601 = vmatpush1.bf16.msra.mxu0 %v584
        %602 = vmatprep.subr.bf16.mxu0 0
        %603 = vmatpush2.bf16.msra.mxu0 0
        %604 = vmatprep.subr.bf16.mxu0 0
        %605 = vmatpush2.bf16.msra.mxu0 0
        %606 = vmatprep.subr.bf16.mxu0 0
        %607 = vmatpush2.bf16.msra.mxu0 0
        %608 = vmatprep.subr.bf16.mxu0 0
        %609 = vmatpush2.bf16.msra.mxu0 0
        %610 = vmatprep.subr.bf16.mxu0 0
        %611 = vmatpush2.bf16.msra.mxu0 0
        %612 = vmatprep.subr.bf16.mxu0 0
        %613 = vmatpush2.bf16.msra.mxu0 0
        %614 = vmatprep.subr.bf16.mxu0 0
        %615 = vmatpush2.bf16.msra.mxu0 0
        %616 = vmatprep.subr.bf16.mxu0 0
        %617 = vmatpush2.bf16.msra.mxu0 0
        %618 = vmatprep.mubr.bf16.mxu0 0
        %619 = vmatmul.mubr.bf16.gmra.mxu0 %v580
        %v620 = vpop.f32.mrf.mxu0
        %v621 = vadd.f32 0.0, %v620
        %v622 = vpop.f32.mrf.mxu0
        %v623 = vpop.f32.mrf.mxu0
        %v624 = vpop.f32.mrf.mxu0
        %625 = vdwg.mxu0
        %v626 = vpack.c.bf16 %v621, %v621
        %v627 = vld [vmem:[%s5] sm:$0xf]
        %s628 = scalar_lea.vmem %s2, 32
        %v629 = vld [vmem:[%s628] sm:$0xf]
        %v630 = vld [vmem:[%s628 + $0x4] sm:$0xf]
        %v631 = vld [vmem:[%s628 + $0x8] sm:$0xf]
        %v632 = vld [vmem:[%s628 + $0xc] sm:$0xf]
        %v633 = vld [vmem:[%s628 + $0x10] sm:$0xf]
        %v634 = vld [vmem:[%s628 + $0x14] sm:$0xf]
        %v635 = vld [vmem:[%s628 + $0x18] sm:$0xf]
        %v636 = vld [vmem:[%s628 + $0x1c] sm:$0xf]
        %v645 = vunpack.c.l.b16 %v629
        %v646 = vunpack.c.l.b16 %v630
        %v647 = vunpack.c.l.b16 %v631
        %v648 = vunpack.c.l.b16 %v632
        %v649 = vunpack.c.l.b16 %v633
        %v650 = vunpack.c.l.b16 %v634
        %v651 = vunpack.c.l.b16 %v635
        %v652 = vunpack.c.l.b16 %v636
        %v653 = vpack.c.b16 %v646, %v645
        %v654 = vpack.c.b16 %v648, %v647
        %v655 = vpack.c.b16 %v650, %v649
        %v656 = vpack.c.b16 %v652, %v651
        %661 = vmatprep.subr.bf16.mxu0 0
        %662 = vmatpush1.bf16.msra.mxu0 0
        %663 = vmatprep.subr.bf16.mxu0 0
        %664 = vmatpush1.bf16.msra.mxu0 0
        %665 = vmatprep.subr.bf16.mxu0 0
        %666 = vmatpush1.bf16.msra.mxu0 0
        %667 = vmatprep.subr.bf16.mxu0 0
        %668 = vmatpush1.bf16.msra.mxu0 0
        %669 = vmatprep.subr.bf16.mxu0 0
        %670 = vmatpush1.bf16.msra.mxu0 %v656
        %671 = vmatprep.subr.bf16.mxu0 0
        %672 = vmatpush1.bf16.msra.mxu0 %v655
        %673 = vmatprep.subr.bf16.mxu0 0
        %674 = vmatpush1.bf16.msra.mxu0 %v654
        %675 = vmatprep.subr.bf16.mxu0 0
        %676 = vmatpush1.bf16.msra.mxu0 %v653
        %677 = vmatprep.subr.bf16.mxu0 0
        %678 = vmatpush2.bf16.msra.mxu0 0
        %679 = vmatprep.subr.bf16.mxu0 0
        %680 = vmatpush2.bf16.msra.mxu0 0
        %681 = vmatprep.subr.bf16.mxu0 0
        %682 = vmatpush2.bf16.msra.mxu0 0
        %683 = vmatprep.subr.bf16.mxu0 0
        %684 = vmatpush2.bf16.msra.mxu0 0
        %685 = vmatprep.subr.bf16.mxu0 0
        %686 = vmatpush2.bf16.msra.mxu0 0
        %687 = vmatprep.subr.bf16.mxu0 0
        %688 = vmatpush2.bf16.msra.mxu0 0
        %689 = vmatprep.subr.bf16.mxu0 0
        %690 = vmatpush2.bf16.msra.mxu0 0
        %691 = vmatprep.subr.bf16.mxu0 0
        %692 = vmatpush2.bf16.msra.mxu0 0
        %693 = vmatprep.mubr.bf16.mxu0 0
        %694 = vmatmul.mubr.bf16.gmra.mxu0 %v328
        %v695 = vpop.f32.mrf.mxu0
        %v696 = vadd.f32 0.0, %v695
        %v697 = vpop.f32.mrf.mxu0
        %v698 = vpop.f32.mrf.mxu0
        %v699 = vpop.f32.mrf.mxu0
        %700 = vdwg.mxu0
        %s701 = scalar_lea.vmem %s3, 32
        %v702 = vld [vmem:[%s701] sm:$0xf]
        %v703 = vld [vmem:[%s701 + $0x4] sm:$0xf]
        %v704 = vld [vmem:[%s701 + $0x8] sm:$0xf]
        %v705 = vld [vmem:[%s701 + $0xc] sm:$0xf]
        %v706 = vld [vmem:[%s701 + $0x10] sm:$0xf]
        %v707 = vld [vmem:[%s701 + $0x14] sm:$0xf]
        %v708 = vld [vmem:[%s701 + $0x18] sm:$0xf]
        %v709 = vld [vmem:[%s701 + $0x1c] sm:$0xf]
        %v718 = vunpack.c.l.b16 %v702
        %v719 = vunpack.c.l.b16 %v703
        %v720 = vunpack.c.l.b16 %v704
        %v721 = vunpack.c.l.b16 %v705
        %v722 = vunpack.c.l.b16 %v706
        %v723 = vunpack.c.l.b16 %v707
        %v724 = vunpack.c.l.b16 %v708
        %v725 = vunpack.c.l.b16 %v709
        %v726 = vpack.c.b16 %v719, %v718
        %v727 = vpack.c.b16 %v721, %v720
        %v728 = vpack.c.b16 %v723, %v722
        %v729 = vpack.c.b16 %v725, %v724
        %734 = vmatprep.subr.bf16.mxu0 0
        %735 = vmatpush1.bf16.msra.mxu0 0
        %736 = vmatprep.subr.bf16.mxu0 0
        %737 = vmatpush1.bf16.msra.mxu0 0
        %738 = vmatprep.subr.bf16.mxu0 0
        %739 = vmatpush1.bf16.msra.mxu0 0
        %740 = vmatprep.subr.bf16.mxu0 0
        %741 = vmatpush1.bf16.msra.mxu0 0
        %742 = vmatprep.subr.bf16.mxu0 0
        %743 = vmatpush1.bf16.msra.mxu0 %v729
        %744 = vmatprep.subr.bf16.mxu0 0
        %745 = vmatpush1.bf16.msra.mxu0 %v728
        %746 = vmatprep.subr.bf16.mxu0 0
        %747 = vmatpush1.bf16.msra.mxu0 %v727
        %748 = vmatprep.subr.bf16.mxu0 0
        %749 = vmatpush1.bf16.msra.mxu0 %v726
        %750 = vmatprep.subr.bf16.mxu0 0
        %751 = vmatpush2.bf16.msra.mxu0 0
        %752 = vmatprep.subr.bf16.mxu0 0
        %753 = vmatpush2.bf16.msra.mxu0 0
        %754 = vmatprep.subr.bf16.mxu0 0
        %755 = vmatpush2.bf16.msra.mxu0 0
        %756 = vmatprep.subr.bf16.mxu0 0
        %757 = vmatpush2.bf16.msra.mxu0 0
        %758 = vmatprep.subr.bf16.mxu0 0
        %759 = vmatpush2.bf16.msra.mxu0 0
        %760 = vmatprep.subr.bf16.mxu0 0
        %761 = vmatpush2.bf16.msra.mxu0 0
        %762 = vmatprep.subr.bf16.mxu0 0
        %763 = vmatpush2.bf16.msra.mxu0 0
        %764 = vmatprep.subr.bf16.mxu0 0
        %765 = vmatpush2.bf16.msra.mxu0 0
        %766 = vmatprep.mubr.bf16.mxu0 0
        %767 = vmatmul.mubr.bf16.gmra.mxu0 %v403
        %v768 = vpop.f32.mrf.mxu0
        %v769 = vadd.f32 0.0, %v768
        %v770 = vpop.f32.mrf.mxu0
        %v771 = vpop.f32.mrf.mxu0
        %v772 = vpop.f32.mrf.mxu0
        %773 = vdwg.mxu0
        %s774 = scalar_lea.vmem %s4, 32
        %v775 = vld [vmem:[%s774] sm:$0xf]
        %v776 = vld [vmem:[%s774 + $0x4] sm:$0xf]
        %v777 = vld [vmem:[%s774 + $0x8] sm:$0xf]
        %v778 = vld [vmem:[%s774 + $0xc] sm:$0xf]
        %v779 = vld [vmem:[%s774 + $0x10] sm:$0xf]
        %v780 = vld [vmem:[%s774 + $0x14] sm:$0xf]
        %v781 = vld [vmem:[%s774 + $0x18] sm:$0xf]
        %v782 = vld [vmem:[%s774 + $0x1c] sm:$0xf]
        %v791 = vunpack.c.l.b16 %v775
        %v792 = vunpack.c.l.b16 %v776
        %v793 = vunpack.c.l.b16 %v777
        %v794 = vunpack.c.l.b16 %v778
        %v795 = vunpack.c.l.b16 %v779
        %v796 = vunpack.c.l.b16 %v780
        %v797 = vunpack.c.l.b16 %v781
        %v798 = vunpack.c.l.b16 %v782
        %v799 = vpack.c.b16 %v792, %v791
        %v800 = vpack.c.b16 %v794, %v793
        %v801 = vpack.c.b16 %v796, %v795
        %v802 = vpack.c.b16 %v798, %v797
        %807 = vmatprep.subr.bf16.mxu0 0
        %808 = vmatpush1.bf16.msra.mxu0 0
        %809 = vmatprep.subr.bf16.mxu0 0
        %810 = vmatpush1.bf16.msra.mxu0 0
        %811 = vmatprep.subr.bf16.mxu0 0
        %812 = vmatpush1.bf16.msra.mxu0 0
        %813 = vmatprep.subr.bf16.mxu0 0
        %814 = vmatpush1.bf16.msra.mxu0 0
        %815 = vmatprep.subr.bf16.mxu0 0
        %816 = vmatpush1.bf16.msra.mxu0 %v802
        %817 = vmatprep.subr.bf16.mxu0 0
        %818 = vmatpush1.bf16.msra.mxu0 %v801
        %819 = vmatprep.subr.bf16.mxu0 0
        %820 = vmatpush1.bf16.msra.mxu0 %v800
        %821 = vmatprep.subr.bf16.mxu0 0
        %822 = vmatpush1.bf16.msra.mxu0 %v799
        %823 = vmatprep.subr.bf16.mxu0 0
        %824 = vmatpush2.bf16.msra.mxu0 0
        %825 = vmatprep.subr.bf16.mxu0 0
        %826 = vmatpush2.bf16.msra.mxu0 0
        %827 = vmatprep.subr.bf16.mxu0 0
        %828 = vmatpush2.bf16.msra.mxu0 0
        %829 = vmatprep.subr.bf16.mxu0 0
        %830 = vmatpush2.bf16.msra.mxu0 0
        %831 = vmatprep.subr.bf16.mxu0 0
        %832 = vmatpush2.bf16.msra.mxu0 0
        %833 = vmatprep.subr.bf16.mxu0 0
        %834 = vmatpush2.bf16.msra.mxu0 0
        %835 = vmatprep.subr.bf16.mxu0 0
        %836 = vmatpush2.bf16.msra.mxu0 0
        %837 = vmatprep.subr.bf16.mxu0 0
        %838 = vmatpush2.bf16.msra.mxu0 0
        %839 = vmatprep.mubr.bf16.mxu0 0
        %840 = vmatmul.mubr.bf16.gmra.mxu0 %v403
        %v841 = vpop.f32.mrf.mxu0
        %v842 = vadd.f32 0.0, %v841
        %v843 = vpop.f32.mrf.mxu0
        %v844 = vpop.f32.mrf.mxu0
        %v845 = vpop.f32.mrf.mxu0
        %846 = vdwg.mxu0
        %v847 = vpack.c.bf16 %v696, %v696
        %v848 = vpack.c.bf16 %v769, %v769
        %v849 = vpack.c.bf16 %v842, %v842
        %v851 = vsel %vm520, %v847, 0
        %v854 = vsel %vm520, %v848, 0
        %856 = vmatprep.subr.bf16.mxu0 0
        %857 = vmatpush1.bf16.xpose.msra.mxu0 0
        %858 = vmatprep.subr.bf16.mxu0 0
        %859 = vmatpush1.bf16.xpose.msra.mxu0 0
        %860 = vmatprep.subr.bf16.mxu0 0
        %861 = vmatpush1.bf16.xpose.msra.mxu0 0
        %862 = vmatprep.subr.bf16.mxu0 0
        %863 = vmatpush1.bf16.xpose.msra.mxu0 0
        %864 = vmatprep.subr.bf16.mxu0 0
        %865 = vmatpush1.bf16.xpose.msra.mxu0 0
        %866 = vmatprep.subr.bf16.mxu0 0
        %867 = vmatpush1.bf16.xpose.msra.mxu0 0
        %868 = vmatprep.subr.bf16.mxu0 0
        %869 = vmatpush1.bf16.xpose.msra.mxu0 0
        %870 = vmatprep.subr.bf16.mxu0 0
        %871 = vmatpush1.bf16.xpose.msra.mxu0 %v854
        %872 = vmatprep.subr.bf16.mxu0 0
        %873 = vmatpush2.bf16.xpose.msra.mxu0 0
        %874 = vmatprep.subr.bf16.mxu0 0
        %875 = vmatpush2.bf16.xpose.msra.mxu0 0
        %876 = vmatprep.subr.bf16.mxu0 0
        %877 = vmatpush2.bf16.xpose.msra.mxu0 0
        %878 = vmatprep.subr.bf16.mxu0 0
        %879 = vmatpush2.bf16.xpose.msra.mxu0 0
        %880 = vmatprep.subr.bf16.mxu0 0
        %881 = vmatpush2.bf16.xpose.msra.mxu0 0
        %882 = vmatprep.subr.bf16.mxu0 0
        %883 = vmatpush2.bf16.xpose.msra.mxu0 0
        %884 = vmatprep.subr.bf16.mxu0 0
        %885 = vmatpush2.bf16.xpose.msra.mxu0 0
        %886 = vmatprep.subr.bf16.mxu0 0
        %887 = vmatpush2.bf16.xpose.msra.mxu0 0
        %888 = vmatprep.mubr.bf16.mxu0 0
        %889 = vmatmul.mubr.bf16.gmra.mxu0 %v851
        %v890 = vpop.f32.mrf.mxu0
        %v891 = vadd.f32 0.0, %v890
        %v892 = vpop.f32.mrf.mxu0
        %v893 = vpop.f32.mrf.mxu0
        %v894 = vpop.f32.mrf.mxu0
        %895 = vdwg.mxu0
        %v896 = vsel %vm520, %v891, -inf
        %897 = vmax.xlane.f32.xlu0 %v896
        %v898 = vpop.xlane.xlu0 %897
        %v899 = vsub.f32 %v891, %v898
        %v900 = vmul.f32 %v899, 1.442695
        %v901 = vpow.pop %v900
        %v902 = vsel %vm520, %v901, 0.0
        %903 = vadd.xlane.f32.xlu0 %v902
        %v904 = vpop.xlane.xlu0 %903
        %v905 = vrcp.pop %v904
        %v906 = vmul.f32 %v901, %v905
        %v907 = vpack.c.bf16 %v906, %v906
        %v909 = vsel %vm520, %v907, 0
        %v912 = vsel %vm582, %v849, 0
        %914 = vmatprep.subr.bf16.mxu0 0
        %915 = vmatpush1.bf16.msra.mxu0 0
        %916 = vmatprep.subr.bf16.mxu0 0
        %917 = vmatpush1.bf16.msra.mxu0 0
        %918 = vmatprep.subr.bf16.mxu0 0
        %919 = vmatpush1.bf16.msra.mxu0 0
        %920 = vmatprep.subr.bf16.mxu0 0
        %921 = vmatpush1.bf16.msra.mxu0 0
        %922 = vmatprep.subr.bf16.mxu0 0
        %923 = vmatpush1.bf16.msra.mxu0 0
        %924 = vmatprep.subr.bf16.mxu0 0
        %925 = vmatpush1.bf16.msra.mxu0 0
        %926 = vmatprep.subr.bf16.mxu0 0
        %927 = vmatpush1.bf16.msra.mxu0 0
        %928 = vmatprep.subr.bf16.mxu0 0
        %929 = vmatpush1.bf16.msra.mxu0 %v912
        %930 = vmatprep.subr.bf16.mxu0 0
        %931 = vmatpush2.bf16.msra.mxu0 0
        %932 = vmatprep.subr.bf16.mxu0 0
        %933 = vmatpush2.bf16.msra.mxu0 0
        %934 = vmatprep.subr.bf16.mxu0 0
        %935 = vmatpush2.bf16.msra.mxu0 0
        %936 = vmatprep.subr.bf16.mxu0 0
        %937 = vmatpush2.bf16.msra.mxu0 0
        %938 = vmatprep.subr.bf16.mxu0 0
        %939 = vmatpush2.bf16.msra.mxu0 0
        %940 = vmatprep.subr.bf16.mxu0 0
        %941 = vmatpush2.bf16.msra.mxu0 0
        %942 = vmatprep.subr.bf16.mxu0 0
        %943 = vmatpush2.bf16.msra.mxu0 0
        %944 = vmatprep.subr.bf16.mxu0 0
        %945 = vmatpush2.bf16.msra.mxu0 0
        %946 = vmatprep.mubr.bf16.mxu0 0
        %947 = vmatmul.mubr.bf16.gmra.mxu0 %v909
        %v948 = vpop.f32.mrf.mxu0
        %v949 = vadd.f32 0.0, %v948
        %v950 = vpop.f32.mrf.mxu0
        %v951 = vpop.f32.mrf.mxu0
        %v952 = vpop.f32.mrf.mxu0
        %953 = vdwg.mxu0
        %v954 = vpack.c.bf16 %v949, %v949
        %s955 = scalar_lea.vmem %s5, 4
        %v956 = vld [vmem:[%s955] sm:$0xf]
        %v958 = vsel %vm520, %v954, 0
        %v961 = vsel %vm582, %v956, 0
        %963 = vmatprep.subr.bf16.mxu0 0
        %964 = vmatpush1.bf16.msra.mxu0 0
        %965 = vmatprep.subr.bf16.mxu0 0
        %966 = vmatpush1.bf16.msra.mxu0 0
        %967 = vmatprep.subr.bf16.mxu0 0
        %968 = vmatpush1.bf16.msra.mxu0 0
        %969 = vmatprep.subr.bf16.mxu0 0
        %970 = vmatpush1.bf16.msra.mxu0 0
        %971 = vmatprep.subr.bf16.mxu0 0
        %972 = vmatpush1.bf16.msra.mxu0 0
        %973 = vmatprep.subr.bf16.mxu0 0
        %974 = vmatpush1.bf16.msra.mxu0 0
        %975 = vmatprep.subr.bf16.mxu0 0
        %976 = vmatpush1.bf16.msra.mxu0 0
        %977 = vmatprep.subr.bf16.mxu0 0
        %978 = vmatpush1.bf16.msra.mxu0 %v961
        %979 = vmatprep.subr.bf16.mxu0 0
        %980 = vmatpush2.bf16.msra.mxu0 0
        %981 = vmatprep.subr.bf16.mxu0 0
        %982 = vmatpush2.bf16.msra.mxu0 0
        %983 = vmatprep.subr.bf16.mxu0 0
        %984 = vmatpush2.bf16.msra.mxu0 0
        %985 = vmatprep.subr.bf16.mxu0 0
        %986 = vmatpush2.bf16.msra.mxu0 0
        %987 = vmatprep.subr.bf16.mxu0 0
        %988 = vmatpush2.bf16.msra.mxu0 0
        %989 = vmatprep.subr.bf16.mxu0 0
        %990 = vmatpush2.bf16.msra.mxu0 0
        %991 = vmatprep.subr.bf16.mxu0 0
        %992 = vmatpush2.bf16.msra.mxu0 0
        %993 = vmatprep.subr.bf16.mxu0 0
        %994 = vmatpush2.bf16.msra.mxu0 0
        %995 = vmatprep.mubr.bf16.mxu0 0
        %996 = vmatmul.mubr.bf16.gmra.mxu0 %v958
        %v997 = vpop.f32.mrf.mxu0
        %v998 = vadd.f32 0.0, %v997
        %v999 = vpop.f32.mrf.mxu0
        %v1000 = vpop.f32.mrf.mxu0
        %v1001 = vpop.f32.mrf.mxu0
        %1002 = vdwg.mxu0
        %v1004 = vsel %vm520, %v626, 0
        %v1007 = vsel %vm582, %v627, 0
        %1009 = vmatprep.subr.bf16.mxu0 0
        %1010 = vmatpush1.bf16.msra.mxu0 0
        %1011 = vmatprep.subr.bf16.mxu0 0
        %1012 = vmatpush1.bf16.msra.mxu0 0
        %1013 = vmatprep.subr.bf16.mxu0 0
        %1014 = vmatpush1.bf16.msra.mxu0 0
        %1015 = vmatprep.subr.bf16.mxu0 0
        %1016 = vmatpush1.bf16.msra.mxu0 0
        %1017 = vmatprep.subr.bf16.mxu0 0
        %1018 = vmatpush1.bf16.msra.mxu0 0
        %1019 = vmatprep.subr.bf16.mxu0 0
        %1020 = vmatpush1.bf16.msra.mxu0 0
        %1021 = vmatprep.subr.bf16.mxu0 0
        %1022 = vmatpush1.bf16.msra.mxu0 0
        %1023 = vmatprep.subr.bf16.mxu0 0
        %1024 = vmatpush1.bf16.msra.mxu0 %v1007
        %1025 = vmatprep.subr.bf16.mxu0 0
        %1026 = vmatpush2.bf16.msra.mxu0 0
        %1027 = vmatprep.subr.bf16.mxu0 0
        %1028 = vmatpush2.bf16.msra.mxu0 0
        %1029 = vmatprep.subr.bf16.mxu0 0
        %1030 = vmatpush2.bf16.msra.mxu0 0
        %1031 = vmatprep.subr.bf16.mxu0 0
        %1032 = vmatpush2.bf16.msra.mxu0 0
        %1033 = vmatprep.subr.bf16.mxu0 0
        %1034 = vmatpush2.bf16.msra.mxu0 0
        %1035 = vmatprep.subr.bf16.mxu0 0
        %1036 = vmatpush2.bf16.msra.mxu0 0
        %1037 = vmatprep.subr.bf16.mxu0 0
        %1038 = vmatpush2.bf16.msra.mxu0 0
        %1039 = vmatprep.subr.bf16.mxu0 0
        %1040 = vmatpush2.bf16.msra.mxu0 0
        %1041 = vmatprep.mubr.bf16.mxu0 0
        %1042 = vmatmul.mubr.bf16.gmra.mxu0 %v1004
        %v1043 = vpop.f32.mrf.mxu0
        %v1044 = vadd.f32 %v998, %v1043
        %v1045 = vpop.f32.mrf.mxu0
        %v1046 = vpop.f32.mrf.mxu0
        %v1047 = vpop.f32.mrf.mxu0
        %1048 = vdwg.mxu0
        %s1049 = scalar_lea.vmem %s2, 64
        %v1050 = vld [vmem:[%s1049] sm:$0xf]
        %v1051 = vld [vmem:[%s1049 + $0x4] sm:$0xf]
        %v1052 = vld [vmem:[%s1049 + $0x8] sm:$0xf]
        %v1053 = vld [vmem:[%s1049 + $0xc] sm:$0xf]
        %v1054 = vld [vmem:[%s1049 + $0x10] sm:$0xf]
        %v1055 = vld [vmem:[%s1049 + $0x14] sm:$0xf]
        %v1056 = vld [vmem:[%s1049 + $0x18] sm:$0xf]
        %v1057 = vld [vmem:[%s1049 + $0x1c] sm:$0xf]
        %v1066 = vunpack.c.l.b16 %v1050
        %v1067 = vunpack.c.l.b16 %v1051
        %v1068 = vunpack.c.l.b16 %v1052
        %v1069 = vunpack.c.l.b16 %v1053
        %v1070 = vunpack.c.l.b16 %v1054
        %v1071 = vunpack.c.l.b16 %v1055
        %v1072 = vunpack.c.l.b16 %v1056
        %v1073 = vunpack.c.l.b16 %v1057
        %v1074 = vpack.c.b16 %v1067, %v1066
        %v1075 = vpack.c.b16 %v1069, %v1068
        %v1076 = vpack.c.b16 %v1071, %v1070
        %v1077 = vpack.c.b16 %v1073, %v1072
        %1082 = vmatprep.subr.bf16.mxu0 0
        %1083 = vmatpush1.bf16.msra.mxu0 0
        %1084 = vmatprep.subr.bf16.mxu0 0
        %1085 = vmatpush1.bf16.msra.mxu0 0
        %1086 = vmatprep.subr.bf16.mxu0 0
        %1087 = vmatpush1.bf16.msra.mxu0 0
        %1088 = vmatprep.subr.bf16.mxu0 0
        %1089 = vmatpush1.bf16.msra.mxu0 0
        %1090 = vmatprep.subr.bf16.mxu0 0
        %1091 = vmatpush1.bf16.msra.mxu0 %v1077
        %1092 = vmatprep.subr.bf16.mxu0 0
        %1093 = vmatpush1.bf16.msra.mxu0 %v1076
        %1094 = vmatprep.subr.bf16.mxu0 0
        %1095 = vmatpush1.bf16.msra.mxu0 %v1075
        %1096 = vmatprep.subr.bf16.mxu0 0
        %1097 = vmatpush1.bf16.msra.mxu0 %v1074
        %1098 = vmatprep.subr.bf16.mxu0 0
        %1099 = vmatpush2.bf16.msra.mxu0 0
        %1100 = vmatprep.subr.bf16.mxu0 0
        %1101 = vmatpush2.bf16.msra.mxu0 0
        %1102 = vmatprep.subr.bf16.mxu0 0
        %1103 = vmatpush2.bf16.msra.mxu0 0
        %1104 = vmatprep.subr.bf16.mxu0 0
        %1105 = vmatpush2.bf16.msra.mxu0 0
        %1106 = vmatprep.subr.bf16.mxu0 0
        %1107 = vmatpush2.bf16.msra.mxu0 0
        %1108 = vmatprep.subr.bf16.mxu0 0
        %1109 = vmatpush2.bf16.msra.mxu0 0
        %1110 = vmatprep.subr.bf16.mxu0 0
        %1111 = vmatpush2.bf16.msra.mxu0 0
        %1112 = vmatprep.subr.bf16.mxu0 0
        %1113 = vmatpush2.bf16.msra.mxu0 0
        %1114 = vmatprep.mubr.bf16.mxu0 0
        %1115 = vmatmul.mubr.bf16.gmra.mxu0 %v328
        %v1116 = vpop.f32.mrf.mxu0
        %v1117 = vadd.f32 0.0, %v1116
        %v1118 = vpop.f32.mrf.mxu0
        %v1119 = vpop.f32.mrf.mxu0
        %v1120 = vpop.f32.mrf.mxu0
        %1121 = vdwg.mxu0
        %s1122 = scalar_lea.vmem %s3, 64
        %v1123 = vld [vmem:[%s1122] sm:$0xf]
        %v1124 = vld [vmem:[%s1122 + $0x4] sm:$0xf]
        %v1125 = vld [vmem:[%s1122 + $0x8] sm:$0xf]
        %v1126 = vld [vmem:[%s1122 + $0xc] sm:$0xf]
        %v1127 = vld [vmem:[%s1122 + $0x10] sm:$0xf]
        %v1128 = vld [vmem:[%s1122 + $0x14] sm:$0xf]
        %v1129 = vld [vmem:[%s1122 + $0x18] sm:$0xf]
        %v1130 = vld [vmem:[%s1122 + $0x1c] sm:$0xf]
        %v1139 = vunpack.c.l.b16 %v1123
        %v1140 = vunpack.c.l.b16 %v1124
        %v1141 = vunpack.c.l.b16 %v1125
        %v1142 = vunpack.c.l.b16 %v1126
        %v1143 = vunpack.c.l.b16 %v1127
        %v1144 = vunpack.c.l.b16 %v1128
        %v1145 = vunpack.c.l.b16 %v1129
        %v1146 = vunpack.c.l.b16 %v1130
        %v1147 = vpack.c.b16 %v1140, %v1139
        %v1148 = vpack.c.b16 %v1142, %v1141
        %v1149 = vpack.c.b16 %v1144, %v1143
        %v1150 = vpack.c.b16 %v1146, %v1145
        %1155 = vmatprep.subr.bf16.mxu0 0
        %1156 = vmatpush1.bf16.msra.mxu0 0
        %1157 = vmatprep.subr.bf16.mxu0 0
        %1158 = vmatpush1.bf16.msra.mxu0 0
        %1159 = vmatprep.subr.bf16.mxu0 0
        %1160 = vmatpush1.bf16.msra.mxu0 0
        %1161 = vmatprep.subr.bf16.mxu0 0
        %1162 = vmatpush1.bf16.msra.mxu0 0
        %1163 = vmatprep.subr.bf16.mxu0 0
        %1164 = vmatpush1.bf16.msra.mxu0 %v1150
        %1165 = vmatprep.subr.bf16.mxu0 0
        %1166 = vmatpush1.bf16.msra.mxu0 %v1149
        %1167 = vmatprep.subr.bf16.mxu0 0
        %1168 = vmatpush1.bf16.msra.mxu0 %v1148
        %1169 = vmatprep.subr.bf16.mxu0 0
        %1170 = vmatpush1.bf16.msra.mxu0 %v1147
        %1171 = vmatprep.subr.bf16.mxu0 0
        %1172 = vmatpush2.bf16.msra.mxu0 0
        %1173 = vmatprep.subr.bf16.mxu0 0
        %1174 = vmatpush2.bf16.msra.mxu0 0
        %1175 = vmatprep.subr.bf16.mxu0 0
        %1176 = vmatpush2.bf16.msra.mxu0 0
        %1177 = vmatprep.subr.bf16.mxu0 0
        %1178 = vmatpush2.bf16.msra.mxu0 0
        %1179 = vmatprep.subr.bf16.mxu0 0
        %1180 = vmatpush2.bf16.msra.mxu0 0
        %1181 = vmatprep.subr.bf16.mxu0 0
        %1182 = vmatpush2.bf16.msra.mxu0 0
        %1183 = vmatprep.subr.bf16.mxu0 0
        %1184 = vmatpush2.bf16.msra.mxu0 0
        %1185 = vmatprep.subr.bf16.mxu0 0
        %1186 = vmatpush2.bf16.msra.mxu0 0
        %1187 = vmatprep.mubr.bf16.mxu0 0
        %1188 = vmatmul.mubr.bf16.gmra.mxu0 %v403
        %v1189 = vpop.f32.mrf.mxu0
        %v1190 = vadd.f32 0.0, %v1189
        %v1191 = vpop.f32.mrf.mxu0
        %v1192 = vpop.f32.mrf.mxu0
        %v1193 = vpop.f32.mrf.mxu0
        %1194 = vdwg.mxu0
        %s1195 = scalar_lea.vmem %s4, 64
        %v1196 = vld [vmem:[%s1195] sm:$0xf]
        %v1197 = vld [vmem:[%s1195 + $0x4] sm:$0xf]
        %v1198 = vld [vmem:[%s1195 + $0x8] sm:$0xf]
        %v1199 = vld [vmem:[%s1195 + $0xc] sm:$0xf]
        %v1200 = vld [vmem:[%s1195 + $0x10] sm:$0xf]
        %v1201 = vld [vmem:[%s1195 + $0x14] sm:$0xf]
        %v1202 = vld [vmem:[%s1195 + $0x18] sm:$0xf]
        %v1203 = vld [vmem:[%s1195 + $0x1c] sm:$0xf]
        %v1212 = vunpack.c.l.b16 %v1196
        %v1213 = vunpack.c.l.b16 %v1197
        %v1214 = vunpack.c.l.b16 %v1198
        %v1215 = vunpack.c.l.b16 %v1199
        %v1216 = vunpack.c.l.b16 %v1200
        %v1217 = vunpack.c.l.b16 %v1201
        %v1218 = vunpack.c.l.b16 %v1202
        %v1219 = vunpack.c.l.b16 %v1203
        %v1220 = vpack.c.b16 %v1213, %v1212
        %v1221 = vpack.c.b16 %v1215, %v1214
        %v1222 = vpack.c.b16 %v1217, %v1216
        %v1223 = vpack.c.b16 %v1219, %v1218
        %1228 = vmatprep.subr.bf16.mxu0 0
        %1229 = vmatpush1.bf16.msra.mxu0 0
        %1230 = vmatprep.subr.bf16.mxu0 0
        %1231 = vmatpush1.bf16.msra.mxu0 0
        %1232 = vmatprep.subr.bf16.mxu0 0
        %1233 = vmatpush1.bf16.msra.mxu0 0
        %1234 = vmatprep.subr.bf16.mxu0 0
        %1235 = vmatpush1.bf16.msra.mxu0 0
        %1236 = vmatprep.subr.bf16.mxu0 0
        %1237 = vmatpush1.bf16.msra.mxu0 %v1223
        %1238 = vmatprep.subr.bf16.mxu0 0
        %1239 = vmatpush1.bf16.msra.mxu0 %v1222
        %1240 = vmatprep.subr.bf16.mxu0 0
        %1241 = vmatpush1.bf16.msra.mxu0 %v1221
        %1242 = vmatprep.subr.bf16.mxu0 0
        %1243 = vmatpush1.bf16.msra.mxu0 %v1220
        %1244 = vmatprep.subr.bf16.mxu0 0
        %1245 = vmatpush2.bf16.msra.mxu0 0
        %1246 = vmatprep.subr.bf16.mxu0 0
        %1247 = vmatpush2.bf16.msra.mxu0 0
        %1248 = vmatprep.subr.bf16.mxu0 0
        %1249 = vmatpush2.bf16.msra.mxu0 0
        %1250 = vmatprep.subr.bf16.mxu0 0
        %1251 = vmatpush2.bf16.msra.mxu0 0
        %1252 = vmatprep.subr.bf16.mxu0 0
        %1253 = vmatpush2.bf16.msra.mxu0 0
        %1254 = vmatprep.subr.bf16.mxu0 0
        %1255 = vmatpush2.bf16.msra.mxu0 0
        %1256 = vmatprep.subr.bf16.mxu0 0
        %1257 = vmatpush2.bf16.msra.mxu0 0
        %1258 = vmatprep.subr.bf16.mxu0 0
        %1259 = vmatpush2.bf16.msra.mxu0 0
        %1260 = vmatprep.mubr.bf16.mxu0 0
        %1261 = vmatmul.mubr.bf16.gmra.mxu0 %v403
        %v1262 = vpop.f32.mrf.mxu0
        %v1263 = vadd.f32 0.0, %v1262
        %v1264 = vpop.f32.mrf.mxu0
        %v1265 = vpop.f32.mrf.mxu0
        %v1266 = vpop.f32.mrf.mxu0
        %1267 = vdwg.mxu0
        %v1268 = vpack.c.bf16 %v1117, %v1117
        %v1269 = vpack.c.bf16 %v1190, %v1190
        %v1270 = vpack.c.bf16 %v1263, %v1263
        %v1272 = vsel %vm520, %v1268, 0
        %v1275 = vsel %vm520, %v1269, 0
        %1277 = vmatprep.subr.bf16.mxu0 0
        %1278 = vmatpush1.bf16.xpose.msra.mxu0 0
        %1279 = vmatprep.subr.bf16.mxu0 0
        %1280 = vmatpush1.bf16.xpose.msra.mxu0 0
        %1281 = vmatprep.subr.bf16.mxu0 0
        %1282 = vmatpush1.bf16.xpose.msra.mxu0 0
        %1283 = vmatprep.subr.bf16.mxu0 0
        %1284 = vmatpush1.bf16.xpose.msra.mxu0 0
        %1285 = vmatprep.subr.bf16.mxu0 0
        %1286 = vmatpush1.bf16.xpose.msra.mxu0 0
        %1287 = vmatprep.subr.bf16.mxu0 0
        %1288 = vmatpush1.bf16.xpose.msra.mxu0 0
        %1289 = vmatprep.subr.bf16.mxu0 0
        %1290 = vmatpush1.bf16.xpose.msra.mxu0 0
        %1291 = vmatprep.subr.bf16.mxu0 0
        %1292 = vmatpush1.bf16.xpose.msra.mxu0 %v1275
        %1293 = vmatprep.subr.bf16.mxu0 0
        %1294 = vmatpush2.bf16.xpose.msra.mxu0 0
        %1295 = vmatprep.subr.bf16.mxu0 0
        %1296 = vmatpush2.bf16.xpose.msra.mxu0 0
        %1297 = vmatprep.subr.bf16.mxu0 0
        %1298 = vmatpush2.bf16.xpose.msra.mxu0 0
        %1299 = vmatprep.subr.bf16.mxu0 0
        %1300 = vmatpush2.bf16.xpose.msra.mxu0 0
        %1301 = vmatprep.subr.bf16.mxu0 0
        %1302 = vmatpush2.bf16.xpose.msra.mxu0 0
        %1303 = vmatprep.subr.bf16.mxu0 0
        %1304 = vmatpush2.bf16.xpose.msra.mxu0 0
        %1305 = vmatprep.subr.bf16.mxu0 0
        %1306 = vmatpush2.bf16.xpose.msra.mxu0 0
        %1307 = vmatprep.subr.bf16.mxu0 0
        %1308 = vmatpush2.bf16.xpose.msra.mxu0 0
        %1309 = vmatprep.mubr.bf16.mxu0 0
        %1310 = vmatmul.mubr.bf16.gmra.mxu0 %v1272
        %v1311 = vpop.f32.mrf.mxu0
        %v1312 = vadd.f32 0.0, %v1311
        %v1313 = vpop.f32.mrf.mxu0
        %v1314 = vpop.f32.mrf.mxu0
        %v1315 = vpop.f32.mrf.mxu0
        %1316 = vdwg.mxu0
        %v1317 = vsel %vm520, %v1312, -inf
        %1318 = vmax.xlane.f32.xlu0 %v1317
        %v1319 = vpop.xlane.xlu0 %1318
        %v1320 = vsub.f32 %v1312, %v1319
        %v1321 = vmul.f32 %v1320, 1.442695
        %v1322 = vpow.pop %v1321
        %v1323 = vsel %vm520, %v1322, 0.0
        %1324 = vadd.xlane.f32.xlu0 %v1323
        %v1325 = vpop.xlane.xlu0 %1324
        %v1326 = vrcp.pop %v1325
        %v1327 = vmul.f32 %v1322, %v1326
        %v1328 = vpack.c.bf16 %v1327, %v1327
        %v1330 = vsel %vm520, %v1328, 0
        %v1333 = vsel %vm582, %v1270, 0
        %1335 = vmatprep.subr.bf16.mxu0 0
        %1336 = vmatpush1.bf16.msra.mxu0 0
        %1337 = vmatprep.subr.bf16.mxu0 0
        %1338 = vmatpush1.bf16.msra.mxu0 0
        %1339 = vmatprep.subr.bf16.mxu0 0
        %1340 = vmatpush1.bf16.msra.mxu0 0
        %1341 = vmatprep.subr.bf16.mxu0 0
        %1342 = vmatpush1.bf16.msra.mxu0 0
        %1343 = vmatprep.subr.bf16.mxu0 0
        %1344 = vmatpush1.bf16.msra.mxu0 0
        %1345 = vmatprep.subr.bf16.mxu0 0
        %1346 = vmatpush1.bf16.msra.mxu0 0
        %1347 = vmatprep.subr.bf16.mxu0 0
        %1348 = vmatpush1.bf16.msra.mxu0 0
        %1349 = vmatprep.subr.bf16.mxu0 0
        %1350 = vmatpush1.bf16.msra.mxu0 %v1333
        %1351 = vmatprep.subr.bf16.mxu0 0
        %1352 = vmatpush2.bf16.msra.mxu0 0
        %1353 = vmatprep.subr.bf16.mxu0 0
        %1354 = vmatpush2.bf16.msra.mxu0 0
        %1355 = vmatprep.subr.bf16.mxu0 0
        %1356 = vmatpush2.bf16.msra.mxu0 0
        %1357 = vmatprep.subr.bf16.mxu0 0
        %1358 = vmatpush2.bf16.msra.mxu0 0
        %1359 = vmatprep.subr.bf16.mxu0 0
        %1360 = vmatpush2.bf16.msra.mxu0 0
        %1361 = vmatprep.subr.bf16.mxu0 0
        %1362 = vmatpush2.bf16.msra.mxu0 0
        %1363 = vmatprep.subr.bf16.mxu0 0
        %1364 = vmatpush2.bf16.msra.mxu0 0
        %1365 = vmatprep.subr.bf16.mxu0 0
        %1366 = vmatpush2.bf16.msra.mxu0 0
        %1367 = vmatprep.mubr.bf16.mxu0 0
        %1368 = vmatmul.mubr.bf16.gmra.mxu0 %v1330
        %v1369 = vpop.f32.mrf.mxu0
        %v1370 = vadd.f32 0.0, %v1369
        %v1371 = vpop.f32.mrf.mxu0
        %v1372 = vpop.f32.mrf.mxu0
        %v1373 = vpop.f32.mrf.mxu0
        %1374 = vdwg.mxu0
        %v1375 = vpack.c.bf16 %v1370, %v1370
        %s1376 = scalar_lea.vmem %s5, 8
        %v1377 = vld [vmem:[%s1376] sm:$0xf]
        %v1379 = vsel %vm520, %v1375, 0
        %v1382 = vsel %vm582, %v1377, 0
        %1384 = vmatprep.subr.bf16.mxu0 0
        %1385 = vmatpush1.bf16.msra.mxu0 0
        %1386 = vmatprep.subr.bf16.mxu0 0
        %1387 = vmatpush1.bf16.msra.mxu0 0
        %1388 = vmatprep.subr.bf16.mxu0 0
        %1389 = vmatpush1.bf16.msra.mxu0 0
        %1390 = vmatprep.subr.bf16.mxu0 0
        %1391 = vmatpush1.bf16.msra.mxu0 0
        %1392 = vmatprep.subr.bf16.mxu0 0
        %1393 = vmatpush1.bf16.msra.mxu0 0
        %1394 = vmatprep.subr.bf16.mxu0 0
        %1395 = vmatpush1.bf16.msra.mxu0 0
        %1396 = vmatprep.subr.bf16.mxu0 0
        %1397 = vmatpush1.bf16.msra.mxu0 0
        %1398 = vmatprep.subr.bf16.mxu0 0
        %1399 = vmatpush1.bf16.msra.mxu0 %v1382
        %1400 = vmatprep.subr.bf16.mxu0 0
        %1401 = vmatpush2.bf16.msra.mxu0 0
        %1402 = vmatprep.subr.bf16.mxu0 0
        %1403 = vmatpush2.bf16.msra.mxu0 0
        %1404 = vmatprep.subr.bf16.mxu0 0
        %1405 = vmatpush2.bf16.msra.mxu0 0
        %1406 = vmatprep.subr.bf16.mxu0 0
        %1407 = vmatpush2.bf16.msra.mxu0 0
        %1408 = vmatprep.subr.bf16.mxu0 0
        %1409 = vmatpush2.bf16.msra.mxu0 0
        %1410 = vmatprep.subr.bf16.mxu0 0
        %1411 = vmatpush2.bf16.msra.mxu0 0
        %1412 = vmatprep.subr.bf16.mxu0 0
        %1413 = vmatpush2.bf16.msra.mxu0 0
        %1414 = vmatprep.subr.bf16.mxu0 0
        %1415 = vmatpush2.bf16.msra.mxu0 0
        %1416 = vmatprep.mubr.bf16.mxu0 0
        %1417 = vmatmul.mubr.bf16.gmra.mxu0 %v1379
        %v1418 = vpop.f32.mrf.mxu0
        %v1419 = vadd.f32 0.0, %v1418
        %v1420 = vpop.f32.mrf.mxu0
        %v1421 = vpop.f32.mrf.mxu0
        %v1422 = vpop.f32.mrf.mxu0
        %1423 = vdwg.mxu0
        %v1424 = vadd.f32 %v1044, %v1419
        %s1425 = scalar_lea.vmem %s2, 96
        %v1426 = vld [vmem:[%s1425] sm:$0xf]
        %v1427 = vld [vmem:[%s1425 + $0x4] sm:$0xf]
        %v1428 = vld [vmem:[%s1425 + $0x8] sm:$0xf]
        %v1429 = vld [vmem:[%s1425 + $0xc] sm:$0xf]
        %v1430 = vld [vmem:[%s1425 + $0x10] sm:$0xf]
        %v1431 = vld [vmem:[%s1425 + $0x14] sm:$0xf]
        %v1432 = vld [vmem:[%s1425 + $0x18] sm:$0xf]
        %v1433 = vld [vmem:[%s1425 + $0x1c] sm:$0xf]
        %v1442 = vunpack.c.l.b16 %v1426
        %v1443 = vunpack.c.l.b16 %v1427
        %v1444 = vunpack.c.l.b16 %v1428
        %v1445 = vunpack.c.l.b16 %v1429
        %v1446 = vunpack.c.l.b16 %v1430
        %v1447 = vunpack.c.l.b16 %v1431
        %v1448 = vunpack.c.l.b16 %v1432
        %v1449 = vunpack.c.l.b16 %v1433
        %v1450 = vpack.c.b16 %v1443, %v1442
        %v1451 = vpack.c.b16 %v1445, %v1444
        %v1452 = vpack.c.b16 %v1447, %v1446
        %v1453 = vpack.c.b16 %v1449, %v1448
        %1458 = vmatprep.subr.bf16.mxu0 0
        %1459 = vmatpush1.bf16.msra.mxu0 0
        %1460 = vmatprep.subr.bf16.mxu0 0
        %1461 = vmatpush1.bf16.msra.mxu0 0
        %1462 = vmatprep.subr.bf16.mxu0 0
        %1463 = vmatpush1.bf16.msra.mxu0 0
        %1464 = vmatprep.subr.bf16.mxu0 0
        %1465 = vmatpush1.bf16.msra.mxu0 0
        %1466 = vmatprep.subr.bf16.mxu0 0
        %1467 = vmatpush1.bf16.msra.mxu0 %v1453
        %1468 = vmatprep.subr.bf16.mxu0 0
        %1469 = vmatpush1.bf16.msra.mxu0 %v1452
        %1470 = vmatprep.subr.bf16.mxu0 0
        %1471 = vmatpush1.bf16.msra.mxu0 %v1451
        %1472 = vmatprep.subr.bf16.mxu0 0
        %1473 = vmatpush1.bf16.msra.mxu0 %v1450
        %1474 = vmatprep.subr.bf16.mxu0 0
        %1475 = vmatpush2.bf16.msra.mxu0 0
        %1476 = vmatprep.subr.bf16.mxu0 0
        %1477 = vmatpush2.bf16.msra.mxu0 0
        %1478 = vmatprep.subr.bf16.mxu0 0
        %1479 = vmatpush2.bf16.msra.mxu0 0
        %1480 = vmatprep.subr.bf16.mxu0 0
        %1481 = vmatpush2.bf16.msra.mxu0 0
        %1482 = vmatprep.subr.bf16.mxu0 0
        %1483 = vmatpush2.bf16.msra.mxu0 0
        %1484 = vmatprep.subr.bf16.mxu0 0
        %1485 = vmatpush2.bf16.msra.mxu0 0
        %1486 = vmatprep.subr.bf16.mxu0 0
        %1487 = vmatpush2.bf16.msra.mxu0 0
        %1488 = vmatprep.subr.bf16.mxu0 0
        %1489 = vmatpush2.bf16.msra.mxu0 0
        %1490 = vmatprep.mubr.bf16.mxu0 0
        %1491 = vmatmul.mubr.bf16.gmra.mxu0 %v328
        %v1492 = vpop.f32.mrf.mxu0
        %v1493 = vadd.f32 0.0, %v1492
        %v1494 = vpop.f32.mrf.mxu0
        %v1495 = vpop.f32.mrf.mxu0
        %v1496 = vpop.f32.mrf.mxu0
        %1497 = vdwg.mxu0
        %s1498 = scalar_lea.vmem %s3, 96
        %v1499 = vld [vmem:[%s1498] sm:$0xf]
        %v1500 = vld [vmem:[%s1498 + $0x4] sm:$0xf]
        %v1501 = vld [vmem:[%s1498 + $0x8] sm:$0xf]
        %v1502 = vld [vmem:[%s1498 + $0xc] sm:$0xf]
        %v1503 = vld [vmem:[%s1498 + $0x10] sm:$0xf]
        %v1504 = vld [vmem:[%s1498 + $0x14] sm:$0xf]
        %v1505 = vld [vmem:[%s1498 + $0x18] sm:$0xf]
        %v1506 = vld [vmem:[%s1498 + $0x1c] sm:$0xf]
        %v1515 = vunpack.c.l.b16 %v1499
        %v1516 = vunpack.c.l.b16 %v1500
        %v1517 = vunpack.c.l.b16 %v1501
        %v1518 = vunpack.c.l.b16 %v1502
        %v1519 = vunpack.c.l.b16 %v1503
        %v1520 = vunpack.c.l.b16 %v1504
        %v1521 = vunpack.c.l.b16 %v1505
        %v1522 = vunpack.c.l.b16 %v1506
        %v1523 = vpack.c.b16 %v1516, %v1515
        %v1524 = vpack.c.b16 %v1518, %v1517
        %v1525 = vpack.c.b16 %v1520, %v1519
        %v1526 = vpack.c.b16 %v1522, %v1521
        %1531 = vmatprep.subr.bf16.mxu0 0
        %1532 = vmatpush1.bf16.msra.mxu0 0
        %1533 = vmatprep.subr.bf16.mxu0 0
        %1534 = vmatpush1.bf16.msra.mxu0 0
        %1535 = vmatprep.subr.bf16.mxu0 0
        %1536 = vmatpush1.bf16.msra.mxu0 0
        %1537 = vmatprep.subr.bf16.mxu0 0
        %1538 = vmatpush1.bf16.msra.mxu0 0
        %1539 = vmatprep.subr.bf16.mxu0 0
        %1540 = vmatpush1.bf16.msra.mxu0 %v1526
        %1541 = vmatprep.subr.bf16.mxu0 0
        %1542 = vmatpush1.bf16.msra.mxu0 %v1525
        %1543 = vmatprep.subr.bf16.mxu0 0
        %1544 = vmatpush1.bf16.msra.mxu0 %v1524
        %1545 = vmatprep.subr.bf16.mxu0 0
        %1546 = vmatpush1.bf16.msra.mxu0 %v1523
        %1547 = vmatprep.subr.bf16.mxu0 0
        %1548 = vmatpush2.bf16.msra.mxu0 0
        %1549 = vmatprep.subr.bf16.mxu0 0
        %1550 = vmatpush2.bf16.msra.mxu0 0
        %1551 = vmatprep.subr.bf16.mxu0 0
        %1552 = vmatpush2.bf16.msra.mxu0 0
        %1553 = vmatprep.subr.bf16.mxu0 0
        %1554 = vmatpush2.bf16.msra.mxu0 0
        %1555 = vmatprep.subr.bf16.mxu0 0
        %1556 = vmatpush2.bf16.msra.mxu0 0
        %1557 = vmatprep.subr.bf16.mxu0 0
        %1558 = vmatpush2.bf16.msra.mxu0 0
        %1559 = vmatprep.subr.bf16.mxu0 0
        %1560 = vmatpush2.bf16.msra.mxu0 0
        %1561 = vmatprep.subr.bf16.mxu0 0
        %1562 = vmatpush2.bf16.msra.mxu0 0
        %1563 = vmatprep.mubr.bf16.mxu0 0
        %1564 = vmatmul.mubr.bf16.gmra.mxu0 %v403
        %v1565 = vpop.f32.mrf.mxu0
        %v1566 = vadd.f32 0.0, %v1565
        %v1567 = vpop.f32.mrf.mxu0
        %v1568 = vpop.f32.mrf.mxu0
        %v1569 = vpop.f32.mrf.mxu0
        %1570 = vdwg.mxu0
        %s1571 = scalar_lea.vmem %s4, 96
        %v1572 = vld [vmem:[%s1571] sm:$0xf]
        %v1573 = vld [vmem:[%s1571 + $0x4] sm:$0xf]
        %v1574 = vld [vmem:[%s1571 + $0x8] sm:$0xf]
        %v1575 = vld [vmem:[%s1571 + $0xc] sm:$0xf]
        %v1576 = vld [vmem:[%s1571 + $0x10] sm:$0xf]
        %v1577 = vld [vmem:[%s1571 + $0x14] sm:$0xf]
        %v1578 = vld [vmem:[%s1571 + $0x18] sm:$0xf]
        %v1579 = vld [vmem:[%s1571 + $0x1c] sm:$0xf]
        %v1588 = vunpack.c.l.b16 %v1572
        %v1589 = vunpack.c.l.b16 %v1573
        %v1590 = vunpack.c.l.b16 %v1574
        %v1591 = vunpack.c.l.b16 %v1575
        %v1592 = vunpack.c.l.b16 %v1576
        %v1593 = vunpack.c.l.b16 %v1577
        %v1594 = vunpack.c.l.b16 %v1578
        %v1595 = vunpack.c.l.b16 %v1579
        %v1596 = vpack.c.b16 %v1589, %v1588
        %v1597 = vpack.c.b16 %v1591, %v1590
        %v1598 = vpack.c.b16 %v1593, %v1592
        %v1599 = vpack.c.b16 %v1595, %v1594
        %1604 = vmatprep.subr.bf16.mxu0 0
        %1605 = vmatpush1.bf16.msra.mxu0 0
        %1606 = vmatprep.subr.bf16.mxu0 0
        %1607 = vmatpush1.bf16.msra.mxu0 0
        %1608 = vmatprep.subr.bf16.mxu0 0
        %1609 = vmatpush1.bf16.msra.mxu0 0
        %1610 = vmatprep.subr.bf16.mxu0 0
        %1611 = vmatpush1.bf16.msra.mxu0 0
        %1612 = vmatprep.subr.bf16.mxu0 0
        %1613 = vmatpush1.bf16.msra.mxu0 %v1599
        %1614 = vmatprep.subr.bf16.mxu0 0
        %1615 = vmatpush1.bf16.msra.mxu0 %v1598
        %1616 = vmatprep.subr.bf16.mxu0 0
        %1617 = vmatpush1.bf16.msra.mxu0 %v1597
        %1618 = vmatprep.subr.bf16.mxu0 0
        %1619 = vmatpush1.bf16.msra.mxu0 %v1596
        %1620 = vmatprep.subr.bf16.mxu0 0
        %1621 = vmatpush2.bf16.msra.mxu0 0
        %1622 = vmatprep.subr.bf16.mxu0 0
        %1623 = vmatpush2.bf16.msra.mxu0 0
        %1624 = vmatprep.subr.bf16.mxu0 0
        %1625 = vmatpush2.bf16.msra.mxu0 0
        %1626 = vmatprep.subr.bf16.mxu0 0
        %1627 = vmatpush2.bf16.msra.mxu0 0
        %1628 = vmatprep.subr.bf16.mxu0 0
        %1629 = vmatpush2.bf16.msra.mxu0 0
        %1630 = vmatprep.subr.bf16.mxu0 0
        %1631 = vmatpush2.bf16.msra.mxu0 0
        %1632 = vmatprep.subr.bf16.mxu0 0
        %1633 = vmatpush2.bf16.msra.mxu0 0
        %1634 = vmatprep.subr.bf16.mxu0 0
        %1635 = vmatpush2.bf16.msra.mxu0 0
        %1636 = vmatprep.mubr.bf16.mxu0 0
        %1637 = vmatmul.mubr.bf16.gmra.mxu0 %v403
        %v1638 = vpop.f32.mrf.mxu0
        %v1639 = vadd.f32 0.0, %v1638
        %v1640 = vpop.f32.mrf.mxu0
        %v1641 = vpop.f32.mrf.mxu0
        %v1642 = vpop.f32.mrf.mxu0
        %1643 = vdwg.mxu0
        %v1644 = vpack.c.bf16 %v1493, %v1493
        %v1645 = vpack.c.bf16 %v1566, %v1566
        %v1646 = vpack.c.bf16 %v1639, %v1639
        %v1648 = vsel %vm520, %v1644, 0
        %v1651 = vsel %vm520, %v1645, 0
        %1653 = vmatprep.subr.bf16.mxu0 0
        %1654 = vmatpush1.bf16.xpose.msra.mxu0 0
        %1655 = vmatprep.subr.bf16.mxu0 0
        %1656 = vmatpush1.bf16.xpose.msra.mxu0 0
        %1657 = vmatprep.subr.bf16.mxu0 0
        %1658 = vmatpush1.bf16.xpose.msra.mxu0 0
        %1659 = vmatprep.subr.bf16.mxu0 0
        %1660 = vmatpush1.bf16.xpose.msra.mxu0 0
        %1661 = vmatprep.subr.bf16.mxu0 0
        %1662 = vmatpush1.bf16.xpose.msra.mxu0 0
        %1663 = vmatprep.subr.bf16.mxu0 0
        %1664 = vmatpush1.bf16.xpose.msra.mxu0 0
        %1665 = vmatprep.subr.bf16.mxu0 0
        %1666 = vmatpush1.bf16.xpose.msra.mxu0 0
        %1667 = vmatprep.subr.bf16.mxu0 0
        %1668 = vmatpush1.bf16.xpose.msra.mxu0 %v1651
        %1669 = vmatprep.subr.bf16.mxu0 0
        %1670 = vmatpush2.bf16.xpose.msra.mxu0 0
        %1671 = vmatprep.subr.bf16.mxu0 0
        %1672 = vmatpush2.bf16.xpose.msra.mxu0 0
        %1673 = vmatprep.subr.bf16.mxu0 0
        %1674 = vmatpush2.bf16.xpose.msra.mxu0 0
        %1675 = vmatprep.subr.bf16.mxu0 0
        %1676 = vmatpush2.bf16.xpose.msra.mxu0 0
        %1677 = vmatprep.subr.bf16.mxu0 0
        %1678 = vmatpush2.bf16.xpose.msra.mxu0 0
        %1679 = vmatprep.subr.bf16.mxu0 0
        %1680 = vmatpush2.bf16.xpose.msra.mxu0 0
        %1681 = vmatprep.subr.bf16.mxu0 0
        %1682 = vmatpush2.bf16.xpose.msra.mxu0 0
        %1683 = vmatprep.subr.bf16.mxu0 0
        %1684 = vmatpush2.bf16.xpose.msra.mxu0 0
        %1685 = vmatprep.mubr.bf16.mxu0 0
        %1686 = vmatmul.mubr.bf16.gmra.mxu0 %v1648
        %v1687 = vpop.f32.mrf.mxu0
        %v1688 = vadd.f32 0.0, %v1687
        %v1689 = vpop.f32.mrf.mxu0
        %v1690 = vpop.f32.mrf.mxu0
        %v1691 = vpop.f32.mrf.mxu0
        %1692 = vdwg.mxu0
        %v1693 = vsel %vm520, %v1688, -inf
        %1694 = vmax.xlane.f32.xlu0 %v1693
        %v1695 = vpop.xlane.xlu0 %1694
        %v1696 = vsub.f32 %v1688, %v1695
        %v1697 = vmul.f32 %v1696, 1.442695
        %v1698 = vpow.pop %v1697
        %v1699 = vsel %vm520, %v1698, 0.0
        %1700 = vadd.xlane.f32.xlu0 %v1699
        %v1701 = vpop.xlane.xlu0 %1700
        %v1702 = vrcp.pop %v1701
        %v1703 = vmul.f32 %v1698, %v1702
        %v1704 = vpack.c.bf16 %v1703, %v1703
        %v1706 = vsel %vm520, %v1704, 0
        %v1709 = vsel %vm582, %v1646, 0
        %1711 = vmatprep.subr.bf16.mxu0 0
        %1712 = vmatpush1.bf16.msra.mxu0 0
        %1713 = vmatprep.subr.bf16.mxu0 0
        %1714 = vmatpush1.bf16.msra.mxu0 0
        %1715 = vmatprep.subr.bf16.mxu0 0
        %1716 = vmatpush1.bf16.msra.mxu0 0
        %1717 = vmatprep.subr.bf16.mxu0 0
        %1718 = vmatpush1.bf16.msra.mxu0 0
        %1719 = vmatprep.subr.bf16.mxu0 0
        %1720 = vmatpush1.bf16.msra.mxu0 0
        %1721 = vmatprep.subr.bf16.mxu0 0
        %1722 = vmatpush1.bf16.msra.mxu0 0
        %1723 = vmatprep.subr.bf16.mxu0 0
        %1724 = vmatpush1.bf16.msra.mxu0 0
        %1725 = vmatprep.subr.bf16.mxu0 0
        %1726 = vmatpush1.bf16.msra.mxu0 %v1709
        %1727 = vmatprep.subr.bf16.mxu0 0
        %1728 = vmatpush2.bf16.msra.mxu0 0
        %1729 = vmatprep.subr.bf16.mxu0 0
        %1730 = vmatpush2.bf16.msra.mxu0 0
        %1731 = vmatprep.subr.bf16.mxu0 0
        %1732 = vmatpush2.bf16.msra.mxu0 0
        %1733 = vmatprep.subr.bf16.mxu0 0
        %1734 = vmatpush2.bf16.msra.mxu0 0
        %1735 = vmatprep.subr.bf16.mxu0 0
        %1736 = vmatpush2.bf16.msra.mxu0 0
        %1737 = vmatprep.subr.bf16.mxu0 0
        %1738 = vmatpush2.bf16.msra.mxu0 0
        %1739 = vmatprep.subr.bf16.mxu0 0
        %1740 = vmatpush2.bf16.msra.mxu0 0
        %1741 = vmatprep.subr.bf16.mxu0 0
        %1742 = vmatpush2.bf16.msra.mxu0 0
        %1743 = vmatprep.mubr.bf16.mxu0 0
        %1744 = vmatmul.mubr.bf16.gmra.mxu0 %v1706
        %v1745 = vpop.f32.mrf.mxu0
        %v1746 = vadd.f32 0.0, %v1745
        %v1747 = vpop.f32.mrf.mxu0
        %v1748 = vpop.f32.mrf.mxu0
        %v1749 = vpop.f32.mrf.mxu0
        %1750 = vdwg.mxu0
        %v1751 = vpack.c.bf16 %v1746, %v1746
        %s1752 = scalar_lea.vmem %s5, 12
        %v1753 = vld [vmem:[%s1752] sm:$0xf]
        %v1755 = vsel %vm520, %v1751, 0
        %v1758 = vsel %vm582, %v1753, 0
        %1760 = vmatprep.subr.bf16.mxu0 0
        %1761 = vmatpush1.bf16.msra.mxu0 0
        %1762 = vmatprep.subr.bf16.mxu0 0
        %1763 = vmatpush1.bf16.msra.mxu0 0
        %1764 = vmatprep.subr.bf16.mxu0 0
        %1765 = vmatpush1.bf16.msra.mxu0 0
        %1766 = vmatprep.subr.bf16.mxu0 0
        %1767 = vmatpush1.bf16.msra.mxu0 0
        %1768 = vmatprep.subr.bf16.mxu0 0
        %1769 = vmatpush1.bf16.msra.mxu0 0
        %1770 = vmatprep.subr.bf16.mxu0 0
        %1771 = vmatpush1.bf16.msra.mxu0 0
        %1772 = vmatprep.subr.bf16.mxu0 0
        %1773 = vmatpush1.bf16.msra.mxu0 0
        %1774 = vmatprep.subr.bf16.mxu0 0
        %1775 = vmatpush1.bf16.msra.mxu0 %v1758
        %1776 = vmatprep.subr.bf16.mxu0 0
        %1777 = vmatpush2.bf16.msra.mxu0 0
        %1778 = vmatprep.subr.bf16.mxu0 0
        %1779 = vmatpush2.bf16.msra.mxu0 0
        %1780 = vmatprep.subr.bf16.mxu0 0
        %1781 = vmatpush2.bf16.msra.mxu0 0
        %1782 = vmatprep.subr.bf16.mxu0 0
        %1783 = vmatpush2.bf16.msra.mxu0 0
        %1784 = vmatprep.subr.bf16.mxu0 0
        %1785 = vmatpush2.bf16.msra.mxu0 0
        %1786 = vmatprep.subr.bf16.mxu0 0
        %1787 = vmatpush2.bf16.msra.mxu0 0
        %1788 = vmatprep.subr.bf16.mxu0 0
        %1789 = vmatpush2.bf16.msra.mxu0 0
        %1790 = vmatprep.subr.bf16.mxu0 0
        %1791 = vmatpush2.bf16.msra.mxu0 0
        %1792 = vmatprep.mubr.bf16.mxu0 0
        %1793 = vmatmul.mubr.bf16.gmra.mxu0 %v1755
        %v1794 = vpop.f32.mrf.mxu0
        %v1795 = vadd.f32 0.0, %v1794
        %v1796 = vpop.f32.mrf.mxu0
        %v1797 = vpop.f32.mrf.mxu0
        %v1798 = vpop.f32.mrf.mxu0
        %1799 = vdwg.mxu0
        %v1800 = vadd.f32 %v1424, %v1795
        %s1801 = scalar_lea.vmem %s2, 128
        %v1802 = vld [vmem:[%s1801] sm:$0xf]
        %v1803 = vld [vmem:[%s1801 + $0x4] sm:$0xf]
        %v1804 = vld [vmem:[%s1801 + $0x8] sm:$0xf]
        %v1805 = vld [vmem:[%s1801 + $0xc] sm:$0xf]
        %v1806 = vld [vmem:[%s1801 + $0x10] sm:$0xf]
        %v1807 = vld [vmem:[%s1801 + $0x14] sm:$0xf]
        %v1808 = vld [vmem:[%s1801 + $0x18] sm:$0xf]
        %v1809 = vld [vmem:[%s1801 + $0x1c] sm:$0xf]
        %v1818 = vunpack.c.l.b16 %v1802
        %v1819 = vunpack.c.l.b16 %v1803
        %v1820 = vunpack.c.l.b16 %v1804
        %v1821 = vunpack.c.l.b16 %v1805
        %v1822 = vunpack.c.l.b16 %v1806
        %v1823 = vunpack.c.l.b16 %v1807
        %v1824 = vunpack.c.l.b16 %v1808
        %v1825 = vunpack.c.l.b16 %v1809
        %v1826 = vpack.c.b16 %v1819, %v1818
        %v1827 = vpack.c.b16 %v1821, %v1820
        %v1828 = vpack.c.b16 %v1823, %v1822
        %v1829 = vpack.c.b16 %v1825, %v1824
        %1834 = vmatprep.subr.bf16.mxu0 0
        %1835 = vmatpush1.bf16.msra.mxu0 0
        %1836 = vmatprep.subr.bf16.mxu0 0
        %1837 = vmatpush1.bf16.msra.mxu0 0
        %1838 = vmatprep.subr.bf16.mxu0 0
        %1839 = vmatpush1.bf16.msra.mxu0 0
        %1840 = vmatprep.subr.bf16.mxu0 0
        %1841 = vmatpush1.bf16.msra.mxu0 0
        %1842 = vmatprep.subr.bf16.mxu0 0
        %1843 = vmatpush1.bf16.msra.mxu0 %v1829
        %1844 = vmatprep.subr.bf16.mxu0 0
        %1845 = vmatpush1.bf16.msra.mxu0 %v1828
        %1846 = vmatprep.subr.bf16.mxu0 0
        %1847 = vmatpush1.bf16.msra.mxu0 %v1827
        %1848 = vmatprep.subr.bf16.mxu0 0
        %1849 = vmatpush1.bf16.msra.mxu0 %v1826
        %1850 = vmatprep.subr.bf16.mxu0 0
        %1851 = vmatpush2.bf16.msra.mxu0 0
        %1852 = vmatprep.subr.bf16.mxu0 0
        %1853 = vmatpush2.bf16.msra.mxu0 0
        %1854 = vmatprep.subr.bf16.mxu0 0
        %1855 = vmatpush2.bf16.msra.mxu0 0
        %1856 = vmatprep.subr.bf16.mxu0 0
        %1857 = vmatpush2.bf16.msra.mxu0 0
        %1858 = vmatprep.subr.bf16.mxu0 0
        %1859 = vmatpush2.bf16.msra.mxu0 0
        %1860 = vmatprep.subr.bf16.mxu0 0
        %1861 = vmatpush2.bf16.msra.mxu0 0
        %1862 = vmatprep.subr.bf16.mxu0 0
        %1863 = vmatpush2.bf16.msra.mxu0 0
        %1864 = vmatprep.subr.bf16.mxu0 0
        %1865 = vmatpush2.bf16.msra.mxu0 0
        %1866 = vmatprep.mubr.bf16.mxu0 0
        %1867 = vmatmul.mubr.bf16.gmra.mxu0 %v328
        %v1868 = vpop.f32.mrf.mxu0
        %v1869 = vadd.f32 0.0, %v1868
        %v1870 = vpop.f32.mrf.mxu0
        %v1871 = vpop.f32.mrf.mxu0
        %v1872 = vpop.f32.mrf.mxu0
        %1873 = vdwg.mxu0
        %s1874 = scalar_lea.vmem %s3, 128
        %v1875 = vld [vmem:[%s1874] sm:$0xf]
        %v1876 = vld [vmem:[%s1874 + $0x4] sm:$0xf]
        %v1877 = vld [vmem:[%s1874 + $0x8] sm:$0xf]
        %v1878 = vld [vmem:[%s1874 + $0xc] sm:$0xf]
        %v1879 = vld [vmem:[%s1874 + $0x10] sm:$0xf]
        %v1880 = vld [vmem:[%s1874 + $0x14] sm:$0xf]
        %v1881 = vld [vmem:[%s1874 + $0x18] sm:$0xf]
        %v1882 = vld [vmem:[%s1874 + $0x1c] sm:$0xf]
        %v1891 = vunpack.c.l.b16 %v1875
        %v1892 = vunpack.c.l.b16 %v1876
        %v1893 = vunpack.c.l.b16 %v1877
        %v1894 = vunpack.c.l.b16 %v1878
        %v1895 = vunpack.c.l.b16 %v1879
        %v1896 = vunpack.c.l.b16 %v1880
        %v1897 = vunpack.c.l.b16 %v1881
        %v1898 = vunpack.c.l.b16 %v1882
        %v1899 = vpack.c.b16 %v1892, %v1891
        %v1900 = vpack.c.b16 %v1894, %v1893
        %v1901 = vpack.c.b16 %v1896, %v1895
        %v1902 = vpack.c.b16 %v1898, %v1897
        %1907 = vmatprep.subr.bf16.mxu0 0
        %1908 = vmatpush1.bf16.msra.mxu0 0
        %1909 = vmatprep.subr.bf16.mxu0 0
        %1910 = vmatpush1.bf16.msra.mxu0 0
        %1911 = vmatprep.subr.bf16.mxu0 0
        %1912 = vmatpush1.bf16.msra.mxu0 0
        %1913 = vmatprep.subr.bf16.mxu0 0
        %1914 = vmatpush1.bf16.msra.mxu0 0
        %1915 = vmatprep.subr.bf16.mxu0 0
        %1916 = vmatpush1.bf16.msra.mxu0 %v1902
        %1917 = vmatprep.subr.bf16.mxu0 0
        %1918 = vmatpush1.bf16.msra.mxu0 %v1901
        %1919 = vmatprep.subr.bf16.mxu0 0
        %1920 = vmatpush1.bf16.msra.mxu0 %v1900
        %1921 = vmatprep.subr.bf16.mxu0 0
        %1922 = vmatpush1.bf16.msra.mxu0 %v1899
        %1923 = vmatprep.subr.bf16.mxu0 0
        %1924 = vmatpush2.bf16.msra.mxu0 0
        %1925 = vmatprep.subr.bf16.mxu0 0
        %1926 = vmatpush2.bf16.msra.mxu0 0
        %1927 = vmatprep.subr.bf16.mxu0 0
        %1928 = vmatpush2.bf16.msra.mxu0 0
        %1929 = vmatprep.subr.bf16.mxu0 0
        %1930 = vmatpush2.bf16.msra.mxu0 0
        %1931 = vmatprep.subr.bf16.mxu0 0
        %1932 = vmatpush2.bf16.msra.mxu0 0
        %1933 = vmatprep.subr.bf16.mxu0 0
        %1934 = vmatpush2.bf16.msra.mxu0 0
        %1935 = vmatprep.subr.bf16.mxu0 0
        %1936 = vmatpush2.bf16.msra.mxu0 0
        %1937 = vmatprep.subr.bf16.mxu0 0
        %1938 = vmatpush2.bf16.msra.mxu0 0
        %1939 = vmatprep.mubr.bf16.mxu0 0
        %1940 = vmatmul.mubr.bf16.gmra.mxu0 %v403
        %v1941 = vpop.f32.mrf.mxu0
        %v1942 = vadd.f32 0.0, %v1941
        %v1943 = vpop.f32.mrf.mxu0
        %v1944 = vpop.f32.mrf.mxu0
        %v1945 = vpop.f32.mrf.mxu0
        %1946 = vdwg.mxu0
        %s1947 = scalar_lea.vmem %s4, 128
        %v1948 = vld [vmem:[%s1947] sm:$0xf]
        %v1949 = vld [vmem:[%s1947 + $0x4] sm:$0xf]
        %v1950 = vld [vmem:[%s1947 + $0x8] sm:$0xf]
        %v1951 = vld [vmem:[%s1947 + $0xc] sm:$0xf]
        %v1952 = vld [vmem:[%s1947 + $0x10] sm:$0xf]
        %v1953 = vld [vmem:[%s1947 + $0x14] sm:$0xf]
        %v1954 = vld [vmem:[%s1947 + $0x18] sm:$0xf]
        %v1955 = vld [vmem:[%s1947 + $0x1c] sm:$0xf]
        %v1964 = vunpack.c.l.b16 %v1948
        %v1965 = vunpack.c.l.b16 %v1949
        %v1966 = vunpack.c.l.b16 %v1950
        %v1967 = vunpack.c.l.b16 %v1951
        %v1968 = vunpack.c.l.b16 %v1952
        %v1969 = vunpack.c.l.b16 %v1953
        %v1970 = vunpack.c.l.b16 %v1954
        %v1971 = vunpack.c.l.b16 %v1955
        %v1972 = vpack.c.b16 %v1965, %v1964
        %v1973 = vpack.c.b16 %v1967, %v1966
        %v1974 = vpack.c.b16 %v1969, %v1968
        %v1975 = vpack.c.b16 %v1971, %v1970
        %1980 = vmatprep.subr.bf16.mxu0 0
        %1981 = vmatpush1.bf16.msra.mxu0 0
        %1982 = vmatprep.subr.bf16.mxu0 0
        %1983 = vmatpush1.bf16.msra.mxu0 0
        %1984 = vmatprep.subr.bf16.mxu0 0
        %1985 = vmatpush1.bf16.msra.mxu0 0
        %1986 = vmatprep.subr.bf16.mxu0 0
        %1987 = vmatpush1.bf16.msra.mxu0 0
        %1988 = vmatprep.subr.bf16.mxu0 0
        %1989 = vmatpush1.bf16.msra.mxu0 %v1975
        %1990 = vmatprep.subr.bf16.mxu0 0
        %1991 = vmatpush1.bf16.msra.mxu0 %v1974
        %1992 = vmatprep.subr.bf16.mxu0 0
        %1993 = vmatpush1.bf16.msra.mxu0 %v1973
        %1994 = vmatprep.subr.bf16.mxu0 0
        %1995 = vmatpush1.bf16.msra.mxu0 %v1972
        %1996 = vmatprep.subr.bf16.mxu0 0
        %1997 = vmatpush2.bf16.msra.mxu0 0
        %1998 = vmatprep.subr.bf16.mxu0 0
        %1999 = vmatpush2.bf16.msra.mxu0 0
        %2000 = vmatprep.subr.bf16.mxu0 0
        %2001 = vmatpush2.bf16.msra.mxu0 0
        %2002 = vmatprep.subr.bf16.mxu0 0
        %2003 = vmatpush2.bf16.msra.mxu0 0
        %2004 = vmatprep.subr.bf16.mxu0 0
        %2005 = vmatpush2.bf16.msra.mxu0 0
        %2006 = vmatprep.subr.bf16.mxu0 0
        %2007 = vmatpush2.bf16.msra.mxu0 0
        %2008 = vmatprep.subr.bf16.mxu0 0
        %2009 = vmatpush2.bf16.msra.mxu0 0
        %2010 = vmatprep.subr.bf16.mxu0 0
        %2011 = vmatpush2.bf16.msra.mxu0 0
        %2012 = vmatprep.mubr.bf16.mxu0 0
        %2013 = vmatmul.mubr.bf16.gmra.mxu0 %v403
        %v2014 = vpop.f32.mrf.mxu0
        %v2015 = vadd.f32 0.0, %v2014
        %v2016 = vpop.f32.mrf.mxu0
        %v2017 = vpop.f32.mrf.mxu0
        %v2018 = vpop.f32.mrf.mxu0
        %2019 = vdwg.mxu0
        %v2020 = vpack.c.bf16 %v1869, %v1869
        %v2021 = vpack.c.bf16 %v1942, %v1942
        %v2022 = vpack.c.bf16 %v2015, %v2015
        %v2024 = vsel %vm520, %v2020, 0
        %v2027 = vsel %vm520, %v2021, 0
        %2029 = vmatprep.subr.bf16.mxu0 0
        %2030 = vmatpush1.bf16.xpose.msra.mxu0 0
        %2031 = vmatprep.subr.bf16.mxu0 0
        %2032 = vmatpush1.bf16.xpose.msra.mxu0 0
        %2033 = vmatprep.subr.bf16.mxu0 0
        %2034 = vmatpush1.bf16.xpose.msra.mxu0 0
        %2035 = vmatprep.subr.bf16.mxu0 0
        %2036 = vmatpush1.bf16.xpose.msra.mxu0 0
        %2037 = vmatprep.subr.bf16.mxu0 0
        %2038 = vmatpush1.bf16.xpose.msra.mxu0 0
        %2039 = vmatprep.subr.bf16.mxu0 0
        %2040 = vmatpush1.bf16.xpose.msra.mxu0 0
        %2041 = vmatprep.subr.bf16.mxu0 0
        %2042 = vmatpush1.bf16.xpose.msra.mxu0 0
        %2043 = vmatprep.subr.bf16.mxu0 0
        %2044 = vmatpush1.bf16.xpose.msra.mxu0 %v2027
        %2045 = vmatprep.subr.bf16.mxu0 0
        %2046 = vmatpush2.bf16.xpose.msra.mxu0 0
        %2047 = vmatprep.subr.bf16.mxu0 0
        %2048 = vmatpush2.bf16.xpose.msra.mxu0 0
        %2049 = vmatprep.subr.bf16.mxu0 0
        %2050 = vmatpush2.bf16.xpose.msra.mxu0 0
        %2051 = vmatprep.subr.bf16.mxu0 0
        %2052 = vmatpush2.bf16.xpose.msra.mxu0 0
        %2053 = vmatprep.subr.bf16.mxu0 0
        %2054 = vmatpush2.bf16.xpose.msra.mxu0 0
        %2055 = vmatprep.subr.bf16.mxu0 0
        %2056 = vmatpush2.bf16.xpose.msra.mxu0 0
        %2057 = vmatprep.subr.bf16.mxu0 0
        %2058 = vmatpush2.bf16.xpose.msra.mxu0 0
        %2059 = vmatprep.subr.bf16.mxu0 0
        %2060 = vmatpush2.bf16.xpose.msra.mxu0 0
        %2061 = vmatprep.mubr.bf16.mxu0 0
        %2062 = vmatmul.mubr.bf16.gmra.mxu0 %v2024
        %v2063 = vpop.f32.mrf.mxu0
        %v2064 = vadd.f32 0.0, %v2063
        %v2065 = vpop.f32.mrf.mxu0
        %v2066 = vpop.f32.mrf.mxu0
        %v2067 = vpop.f32.mrf.mxu0
        %2068 = vdwg.mxu0
        %v2069 = vsel %vm520, %v2064, -inf
        %2070 = vmax.xlane.f32.xlu0 %v2069
        %v2071 = vpop.xlane.xlu0 %2070
        %v2072 = vsub.f32 %v2064, %v2071
        %v2073 = vmul.f32 %v2072, 1.442695
        %v2074 = vpow.pop %v2073
        %v2075 = vsel %vm520, %v2074, 0.0
        %2076 = vadd.xlane.f32.xlu0 %v2075
        %v2077 = vpop.xlane.xlu0 %2076
        %v2078 = vrcp.pop %v2077
        %v2079 = vmul.f32 %v2074, %v2078
        %v2080 = vpack.c.bf16 %v2079, %v2079
        %v2082 = vsel %vm520, %v2080, 0
        %v2085 = vsel %vm582, %v2022, 0
        %2087 = vmatprep.subr.bf16.mxu0 0
        %2088 = vmatpush1.bf16.msra.mxu0 0
        %2089 = vmatprep.subr.bf16.mxu0 0
        %2090 = vmatpush1.bf16.msra.mxu0 0
        %2091 = vmatprep.subr.bf16.mxu0 0
        %2092 = vmatpush1.bf16.msra.mxu0 0
        %2093 = vmatprep.subr.bf16.mxu0 0
        %2094 = vmatpush1.bf16.msra.mxu0 0
        %2095 = vmatprep.subr.bf16.mxu0 0
        %2096 = vmatpush1.bf16.msra.mxu0 0
        %2097 = vmatprep.subr.bf16.mxu0 0
        %2098 = vmatpush1.bf16.msra.mxu0 0
        %2099 = vmatprep.subr.bf16.mxu0 0
        %2100 = vmatpush1.bf16.msra.mxu0 0
        %2101 = vmatprep.subr.bf16.mxu0 0
        %2102 = vmatpush1.bf16.msra.mxu0 %v2085
        %2103 = vmatprep.subr.bf16.mxu0 0
        %2104 = vmatpush2.bf16.msra.mxu0 0
        %2105 = vmatprep.subr.bf16.mxu0 0
        %2106 = vmatpush2.bf16.msra.mxu0 0
        %2107 = vmatprep.subr.bf16.mxu0 0
        %2108 = vmatpush2.bf16.msra.mxu0 0
        %2109 = vmatprep.subr.bf16.mxu0 0
        %2110 = vmatpush2.bf16.msra.mxu0 0
        %2111 = vmatprep.subr.bf16.mxu0 0
        %2112 = vmatpush2.bf16.msra.mxu0 0
        %2113 = vmatprep.subr.bf16.mxu0 0
        %2114 = vmatpush2.bf16.msra.mxu0 0
        %2115 = vmatprep.subr.bf16.mxu0 0
        %2116 = vmatpush2.bf16.msra.mxu0 0
        %2117 = vmatprep.subr.bf16.mxu0 0
        %2118 = vmatpush2.bf16.msra.mxu0 0
        %2119 = vmatprep.mubr.bf16.mxu0 0
        %2120 = vmatmul.mubr.bf16.gmra.mxu0 %v2082
        %v2121 = vpop.f32.mrf.mxu0
        %v2122 = vadd.f32 0.0, %v2121
        %v2123 = vpop.f32.mrf.mxu0
        %v2124 = vpop.f32.mrf.mxu0
        %v2125 = vpop.f32.mrf.mxu0
        %2126 = vdwg.mxu0
        %v2127 = vpack.c.bf16 %v2122, %v2122
        %s2128 = scalar_lea.vmem %s5, 16
        %v2129 = vld [vmem:[%s2128] sm:$0xf]
        %v2131 = vsel %vm520, %v2127, 0
        %v2134 = vsel %vm582, %v2129, 0
        %2136 = vmatprep.subr.bf16.mxu0 0
        %2137 = vmatpush1.bf16.msra.mxu0 0
        %2138 = vmatprep.subr.bf16.mxu0 0
        %2139 = vmatpush1.bf16.msra.mxu0 0
        %2140 = vmatprep.subr.bf16.mxu0 0
        %2141 = vmatpush1.bf16.msra.mxu0 0
        %2142 = vmatprep.subr.bf16.mxu0 0
        %2143 = vmatpush1.bf16.msra.mxu0 0
        %2144 = vmatprep.subr.bf16.mxu0 0
        %2145 = vmatpush1.bf16.msra.mxu0 0
        %2146 = vmatprep.subr.bf16.mxu0 0
        %2147 = vmatpush1.bf16.msra.mxu0 0
        %2148 = vmatprep.subr.bf16.mxu0 0
        %2149 = vmatpush1.bf16.msra.mxu0 0
        %2150 = vmatprep.subr.bf16.mxu0 0
        %2151 = vmatpush1.bf16.msra.mxu0 %v2134
        %2152 = vmatprep.subr.bf16.mxu0 0
        %2153 = vmatpush2.bf16.msra.mxu0 0
        %2154 = vmatprep.subr.bf16.mxu0 0
        %2155 = vmatpush2.bf16.msra.mxu0 0
        %2156 = vmatprep.subr.bf16.mxu0 0
        %2157 = vmatpush2.bf16.msra.mxu0 0
        %2158 = vmatprep.subr.bf16.mxu0 0
        %2159 = vmatpush2.bf16.msra.mxu0 0
        %2160 = vmatprep.subr.bf16.mxu0 0
        %2161 = vmatpush2.bf16.msra.mxu0 0
        %2162 = vmatprep.subr.bf16.mxu0 0
        %2163 = vmatpush2.bf16.msra.mxu0 0
        %2164 = vmatprep.subr.bf16.mxu0 0
        %2165 = vmatpush2.bf16.msra.mxu0 0
        %2166 = vmatprep.subr.bf16.mxu0 0
        %2167 = vmatpush2.bf16.msra.mxu0 0
        %2168 = vmatprep.mubr.bf16.mxu0 0
        %2169 = vmatmul.mubr.bf16.gmra.mxu0 %v2131
        %v2170 = vpop.f32.mrf.mxu0
        %v2171 = vadd.f32 0.0, %v2170
        %v2172 = vpop.f32.mrf.mxu0
        %v2173 = vpop.f32.mrf.mxu0
        %v2174 = vpop.f32.mrf.mxu0
        %2175 = vdwg.mxu0
        %v2176 = vadd.f32 %v1800, %v2171
        %s2177 = scalar_lea.vmem %s2, 160
        %v2178 = vld [vmem:[%s2177] sm:$0xf]
        %v2179 = vld [vmem:[%s2177 + $0x4] sm:$0xf]
        %v2180 = vld [vmem:[%s2177 + $0x8] sm:$0xf]
        %v2181 = vld [vmem:[%s2177 + $0xc] sm:$0xf]
        %v2182 = vld [vmem:[%s2177 + $0x10] sm:$0xf]
        %v2183 = vld [vmem:[%s2177 + $0x14] sm:$0xf]
        %v2184 = vld [vmem:[%s2177 + $0x18] sm:$0xf]
        %v2185 = vld [vmem:[%s2177 + $0x1c] sm:$0xf]
        %v2194 = vunpack.c.l.b16 %v2178
        %v2195 = vunpack.c.l.b16 %v2179
        %v2196 = vunpack.c.l.b16 %v2180
        %v2197 = vunpack.c.l.b16 %v2181
        %v2198 = vunpack.c.l.b16 %v2182
        %v2199 = vunpack.c.l.b16 %v2183
        %v2200 = vunpack.c.l.b16 %v2184
        %v2201 = vunpack.c.l.b16 %v2185
        %v2202 = vpack.c.b16 %v2195, %v2194
        %v2203 = vpack.c.b16 %v2197, %v2196
        %v2204 = vpack.c.b16 %v2199, %v2198
        %v2205 = vpack.c.b16 %v2201, %v2200
        %2210 = vmatprep.subr.bf16.mxu0 0
        %2211 = vmatpush1.bf16.msra.mxu0 0
        %2212 = vmatprep.subr.bf16.mxu0 0
        %2213 = vmatpush1.bf16.msra.mxu0 0
        %2214 = vmatprep.subr.bf16.mxu0 0
        %2215 = vmatpush1.bf16.msra.mxu0 0
        %2216 = vmatprep.subr.bf16.mxu0 0
        %2217 = vmatpush1.bf16.msra.mxu0 0
        %2218 = vmatprep.subr.bf16.mxu0 0
        %2219 = vmatpush1.bf16.msra.mxu0 %v2205
        %2220 = vmatprep.subr.bf16.mxu0 0
        %2221 = vmatpush1.bf16.msra.mxu0 %v2204
        %2222 = vmatprep.subr.bf16.mxu0 0
        %2223 = vmatpush1.bf16.msra.mxu0 %v2203
        %2224 = vmatprep.subr.bf16.mxu0 0
        %2225 = vmatpush1.bf16.msra.mxu0 %v2202
        %2226 = vmatprep.subr.bf16.mxu0 0
        %2227 = vmatpush2.bf16.msra.mxu0 0
        %2228 = vmatprep.subr.bf16.mxu0 0
        %2229 = vmatpush2.bf16.msra.mxu0 0
        %2230 = vmatprep.subr.bf16.mxu0 0
        %2231 = vmatpush2.bf16.msra.mxu0 0
        %2232 = vmatprep.subr.bf16.mxu0 0
        %2233 = vmatpush2.bf16.msra.mxu0 0
        %2234 = vmatprep.subr.bf16.mxu0 0
        %2235 = vmatpush2.bf16.msra.mxu0 0
        %2236 = vmatprep.subr.bf16.mxu0 0
        %2237 = vmatpush2.bf16.msra.mxu0 0
        %2238 = vmatprep.subr.bf16.mxu0 0
        %2239 = vmatpush2.bf16.msra.mxu0 0
        %2240 = vmatprep.subr.bf16.mxu0 0
        %2241 = vmatpush2.bf16.msra.mxu0 0
        %2242 = vmatprep.mubr.bf16.mxu0 0
        %2243 = vmatmul.mubr.bf16.gmra.mxu0 %v328
        %v2244 = vpop.f32.mrf.mxu0
        %v2245 = vadd.f32 0.0, %v2244
        %v2246 = vpop.f32.mrf.mxu0
        %v2247 = vpop.f32.mrf.mxu0
        %v2248 = vpop.f32.mrf.mxu0
        %2249 = vdwg.mxu0
        %s2250 = scalar_lea.vmem %s3, 160
        %v2251 = vld [vmem:[%s2250] sm:$0xf]
        %v2252 = vld [vmem:[%s2250 + $0x4] sm:$0xf]
        %v2253 = vld [vmem:[%s2250 + $0x8] sm:$0xf]
        %v2254 = vld [vmem:[%s2250 + $0xc] sm:$0xf]
        %v2255 = vld [vmem:[%s2250 + $0x10] sm:$0xf]
        %v2256 = vld [vmem:[%s2250 + $0x14] sm:$0xf]
        %v2257 = vld [vmem:[%s2250 + $0x18] sm:$0xf]
        %v2258 = vld [vmem:[%s2250 + $0x1c] sm:$0xf]
        %v2267 = vunpack.c.l.b16 %v2251
        %v2268 = vunpack.c.l.b16 %v2252
        %v2269 = vunpack.c.l.b16 %v2253
        %v2270 = vunpack.c.l.b16 %v2254
        %v2271 = vunpack.c.l.b16 %v2255
        %v2272 = vunpack.c.l.b16 %v2256
        %v2273 = vunpack.c.l.b16 %v2257
        %v2274 = vunpack.c.l.b16 %v2258
        %v2275 = vpack.c.b16 %v2268, %v2267
        %v2276 = vpack.c.b16 %v2270, %v2269
        %v2277 = vpack.c.b16 %v2272, %v2271
        %v2278 = vpack.c.b16 %v2274, %v2273
        %2283 = vmatprep.subr.bf16.mxu0 0
        %2284 = vmatpush1.bf16.msra.mxu0 0
        %2285 = vmatprep.subr.bf16.mxu0 0
        %2286 = vmatpush1.bf16.msra.mxu0 0
        %2287 = vmatprep.subr.bf16.mxu0 0
        %2288 = vmatpush1.bf16.msra.mxu0 0
        %2289 = vmatprep.subr.bf16.mxu0 0
        %2290 = vmatpush1.bf16.msra.mxu0 0
        %2291 = vmatprep.subr.bf16.mxu0 0
        %2292 = vmatpush1.bf16.msra.mxu0 %v2278
        %2293 = vmatprep.subr.bf16.mxu0 0
        %2294 = vmatpush1.bf16.msra.mxu0 %v2277
        %2295 = vmatprep.subr.bf16.mxu0 0
        %2296 = vmatpush1.bf16.msra.mxu0 %v2276
        %2297 = vmatprep.subr.bf16.mxu0 0
        %2298 = vmatpush1.bf16.msra.mxu0 %v2275
        %2299 = vmatprep.subr.bf16.mxu0 0
        %2300 = vmatpush2.bf16.msra.mxu0 0
        %2301 = vmatprep.subr.bf16.mxu0 0
        %2302 = vmatpush2.bf16.msra.mxu0 0
        %2303 = vmatprep.subr.bf16.mxu0 0
        %2304 = vmatpush2.bf16.msra.mxu0 0
        %2305 = vmatprep.subr.bf16.mxu0 0
        %2306 = vmatpush2.bf16.msra.mxu0 0
        %2307 = vmatprep.subr.bf16.mxu0 0
        %2308 = vmatpush2.bf16.msra.mxu0 0
        %2309 = vmatprep.subr.bf16.mxu0 0
        %2310 = vmatpush2.bf16.msra.mxu0 0
        %2311 = vmatprep.subr.bf16.mxu0 0
        %2312 = vmatpush2.bf16.msra.mxu0 0
        %2313 = vmatprep.subr.bf16.mxu0 0
        %2314 = vmatpush2.bf16.msra.mxu0 0
        %2315 = vmatprep.mubr.bf16.mxu0 0
        %2316 = vmatmul.mubr.bf16.gmra.mxu0 %v403
        %v2317 = vpop.f32.mrf.mxu0
        %v2318 = vadd.f32 0.0, %v2317
        %v2319 = vpop.f32.mrf.mxu0
        %v2320 = vpop.f32.mrf.mxu0
        %v2321 = vpop.f32.mrf.mxu0
        %2322 = vdwg.mxu0
        %s2323 = scalar_lea.vmem %s4, 160
        %v2324 = vld [vmem:[%s2323] sm:$0xf]
        %v2325 = vld [vmem:[%s2323 + $0x4] sm:$0xf]
        %v2326 = vld [vmem:[%s2323 + $0x8] sm:$0xf]
        %v2327 = vld [vmem:[%s2323 + $0xc] sm:$0xf]
        %v2328 = vld [vmem:[%s2323 + $0x10] sm:$0xf]
        %v2329 = vld [vmem:[%s2323 + $0x14] sm:$0xf]
        %v2330 = vld [vmem:[%s2323 + $0x18] sm:$0xf]
        %v2331 = vld [vmem:[%s2323 + $0x1c] sm:$0xf]
        %v2340 = vunpack.c.l.b16 %v2324
        %v2341 = vunpack.c.l.b16 %v2325
        %v2342 = vunpack.c.l.b16 %v2326
        %v2343 = vunpack.c.l.b16 %v2327
        %v2344 = vunpack.c.l.b16 %v2328
        %v2345 = vunpack.c.l.b16 %v2329
        %v2346 = vunpack.c.l.b16 %v2330
        %v2347 = vunpack.c.l.b16 %v2331
        %v2348 = vpack.c.b16 %v2341, %v2340
        %v2349 = vpack.c.b16 %v2343, %v2342
        %v2350 = vpack.c.b16 %v2345, %v2344
        %v2351 = vpack.c.b16 %v2347, %v2346
        %2356 = vmatprep.subr.bf16.mxu0 0
        %2357 = vmatpush1.bf16.msra.mxu0 0
        %2358 = vmatprep.subr.bf16.mxu0 0
        %2359 = vmatpush1.bf16.msra.mxu0 0
        %2360 = vmatprep.subr.bf16.mxu0 0
        %2361 = vmatpush1.bf16.msra.mxu0 0
        %2362 = vmatprep.subr.bf16.mxu0 0
        %2363 = vmatpush1.bf16.msra.mxu0 0
        %2364 = vmatprep.subr.bf16.mxu0 0
        %2365 = vmatpush1.bf16.msra.mxu0 %v2351
        %2366 = vmatprep.subr.bf16.mxu0 0
        %2367 = vmatpush1.bf16.msra.mxu0 %v2350
        %2368 = vmatprep.subr.bf16.mxu0 0
        %2369 = vmatpush1.bf16.msra.mxu0 %v2349
        %2370 = vmatprep.subr.bf16.mxu0 0
        %2371 = vmatpush1.bf16.msra.mxu0 %v2348
        %2372 = vmatprep.subr.bf16.mxu0 0
        %2373 = vmatpush2.bf16.msra.mxu0 0
        %2374 = vmatprep.subr.bf16.mxu0 0
        %2375 = vmatpush2.bf16.msra.mxu0 0
        %2376 = vmatprep.subr.bf16.mxu0 0
        %2377 = vmatpush2.bf16.msra.mxu0 0
        %2378 = vmatprep.subr.bf16.mxu0 0
        %2379 = vmatpush2.bf16.msra.mxu0 0
        %2380 = vmatprep.subr.bf16.mxu0 0
        %2381 = vmatpush2.bf16.msra.mxu0 0
        %2382 = vmatprep.subr.bf16.mxu0 0
        %2383 = vmatpush2.bf16.msra.mxu0 0
        %2384 = vmatprep.subr.bf16.mxu0 0
        %2385 = vmatpush2.bf16.msra.mxu0 0
        %2386 = vmatprep.subr.bf16.mxu0 0
        %2387 = vmatpush2.bf16.msra.mxu0 0
        %2388 = vmatprep.mubr.bf16.mxu0 0
        %2389 = vmatmul.mubr.bf16.gmra.mxu0 %v403
        %v2390 = vpop.f32.mrf.mxu0
        %v2391 = vadd.f32 0.0, %v2390
        %v2392 = vpop.f32.mrf.mxu0
        %v2393 = vpop.f32.mrf.mxu0
        %v2394 = vpop.f32.mrf.mxu0
        %2395 = vdwg.mxu0
        %v2396 = vpack.c.bf16 %v2245, %v2245
        %v2397 = vpack.c.bf16 %v2318, %v2318
        %v2398 = vpack.c.bf16 %v2391, %v2391
        %v2400 = vsel %vm520, %v2396, 0
        %v2403 = vsel %vm520, %v2397, 0
        %2405 = vmatprep.subr.bf16.mxu0 0
        %2406 = vmatpush1.bf16.xpose.msra.mxu0 0
        %2407 = vmatprep.subr.bf16.mxu0 0
        %2408 = vmatpush1.bf16.xpose.msra.mxu0 0
        %2409 = vmatprep.subr.bf16.mxu0 0
        %2410 = vmatpush1.bf16.xpose.msra.mxu0 0
        %2411 = vmatprep.subr.bf16.mxu0 0
        %2412 = vmatpush1.bf16.xpose.msra.mxu0 0
        %2413 = vmatprep.subr.bf16.mxu0 0
        %2414 = vmatpush1.bf16.xpose.msra.mxu0 0
        %2415 = vmatprep.subr.bf16.mxu0 0
        %2416 = vmatpush1.bf16.xpose.msra.mxu0 0
        %2417 = vmatprep.subr.bf16.mxu0 0
        %2418 = vmatpush1.bf16.xpose.msra.mxu0 0
        %2419 = vmatprep.subr.bf16.mxu0 0
        %2420 = vmatpush1.bf16.xpose.msra.mxu0 %v2403
        %2421 = vmatprep.subr.bf16.mxu0 0
        %2422 = vmatpush2.bf16.xpose.msra.mxu0 0
        %2423 = vmatprep.subr.bf16.mxu0 0
        %2424 = vmatpush2.bf16.xpose.msra.mxu0 0
        %2425 = vmatprep.subr.bf16.mxu0 0
        %2426 = vmatpush2.bf16.xpose.msra.mxu0 0
        %2427 = vmatprep.subr.bf16.mxu0 0
        %2428 = vmatpush2.bf16.xpose.msra.mxu0 0
        %2429 = vmatprep.subr.bf16.mxu0 0
        %2430 = vmatpush2.bf16.xpose.msra.mxu0 0
        %2431 = vmatprep.subr.bf16.mxu0 0
        %2432 = vmatpush2.bf16.xpose.msra.mxu0 0
        %2433 = vmatprep.subr.bf16.mxu0 0
        %2434 = vmatpush2.bf16.xpose.msra.mxu0 0
        %2435 = vmatprep.subr.bf16.mxu0 0
        %2436 = vmatpush2.bf16.xpose.msra.mxu0 0
        %2437 = vmatprep.mubr.bf16.mxu0 0
        %2438 = vmatmul.mubr.bf16.gmra.mxu0 %v2400
        %v2439 = vpop.f32.mrf.mxu0
        %v2440 = vadd.f32 0.0, %v2439
        %v2441 = vpop.f32.mrf.mxu0
        %v2442 = vpop.f32.mrf.mxu0
        %v2443 = vpop.f32.mrf.mxu0
        %2444 = vdwg.mxu0
        %v2445 = vsel %vm520, %v2440, -inf
        %2446 = vmax.xlane.f32.xlu0 %v2445
        %v2447 = vpop.xlane.xlu0 %2446
        %v2448 = vsub.f32 %v2440, %v2447
        %v2449 = vmul.f32 %v2448, 1.442695
        %v2450 = vpow.pop %v2449
        %v2451 = vsel %vm520, %v2450, 0.0
        %2452 = vadd.xlane.f32.xlu0 %v2451
        %v2453 = vpop.xlane.xlu0 %2452
        %v2454 = vrcp.pop %v2453
        %v2455 = vmul.f32 %v2450, %v2454
        %v2456 = vpack.c.bf16 %v2455, %v2455
        %v2458 = vsel %vm520, %v2456, 0
        %v2461 = vsel %vm582, %v2398, 0
        %2463 = vmatprep.subr.bf16.mxu0 0
        %2464 = vmatpush1.bf16.msra.mxu0 0
        %2465 = vmatprep.subr.bf16.mxu0 0
        %2466 = vmatpush1.bf16.msra.mxu0 0
        %2467 = vmatprep.subr.bf16.mxu0 0
        %2468 = vmatpush1.bf16.msra.mxu0 0
        %2469 = vmatprep.subr.bf16.mxu0 0
        %2470 = vmatpush1.bf16.msra.mxu0 0
        %2471 = vmatprep.subr.bf16.mxu0 0
        %2472 = vmatpush1.bf16.msra.mxu0 0
        %2473 = vmatprep.subr.bf16.mxu0 0
        %2474 = vmatpush1.bf16.msra.mxu0 0
        %2475 = vmatprep.subr.bf16.mxu0 0
        %2476 = vmatpush1.bf16.msra.mxu0 0
        %2477 = vmatprep.subr.bf16.mxu0 0
        %2478 = vmatpush1.bf16.msra.mxu0 %v2461
        %2479 = vmatprep.subr.bf16.mxu0 0
        %2480 = vmatpush2.bf16.msra.mxu0 0
        %2481 = vmatprep.subr.bf16.mxu0 0
        %2482 = vmatpush2.bf16.msra.mxu0 0
        %2483 = vmatprep.subr.bf16.mxu0 0
        %2484 = vmatpush2.bf16.msra.mxu0 0
        %2485 = vmatprep.subr.bf16.mxu0 0
        %2486 = vmatpush2.bf16.msra.mxu0 0
        %2487 = vmatprep.subr.bf16.mxu0 0
        %2488 = vmatpush2.bf16.msra.mxu0 0
        %2489 = vmatprep.subr.bf16.mxu0 0
        %2490 = vmatpush2.bf16.msra.mxu0 0
        %2491 = vmatprep.subr.bf16.mxu0 0
        %2492 = vmatpush2.bf16.msra.mxu0 0
        %2493 = vmatprep.subr.bf16.mxu0 0
        %2494 = vmatpush2.bf16.msra.mxu0 0
        %2495 = vmatprep.mubr.bf16.mxu0 0
        %2496 = vmatmul.mubr.bf16.gmra.mxu0 %v2458
        %v2497 = vpop.f32.mrf.mxu0
        %v2498 = vadd.f32 0.0, %v2497
        %v2499 = vpop.f32.mrf.mxu0
        %v2500 = vpop.f32.mrf.mxu0
        %v2501 = vpop.f32.mrf.mxu0
        %2502 = vdwg.mxu0
        %v2503 = vpack.c.bf16 %v2498, %v2498
        %s2504 = scalar_lea.vmem %s5, 20
        %v2505 = vld [vmem:[%s2504] sm:$0xf]
        %v2507 = vsel %vm520, %v2503, 0
        %v2510 = vsel %vm582, %v2505, 0
        %2512 = vmatprep.subr.bf16.mxu0 0
        %2513 = vmatpush1.bf16.msra.mxu0 0
        %2514 = vmatprep.subr.bf16.mxu0 0
        %2515 = vmatpush1.bf16.msra.mxu0 0
        %2516 = vmatprep.subr.bf16.mxu0 0
        %2517 = vmatpush1.bf16.msra.mxu0 0
        %2518 = vmatprep.subr.bf16.mxu0 0
        %2519 = vmatpush1.bf16.msra.mxu0 0
        %2520 = vmatprep.subr.bf16.mxu0 0
        %2521 = vmatpush1.bf16.msra.mxu0 0
        %2522 = vmatprep.subr.bf16.mxu0 0
        %2523 = vmatpush1.bf16.msra.mxu0 0
        %2524 = vmatprep.subr.bf16.mxu0 0
        %2525 = vmatpush1.bf16.msra.mxu0 0
        %2526 = vmatprep.subr.bf16.mxu0 0
        %2527 = vmatpush1.bf16.msra.mxu0 %v2510
        %2528 = vmatprep.subr.bf16.mxu0 0
        %2529 = vmatpush2.bf16.msra.mxu0 0
        %2530 = vmatprep.subr.bf16.mxu0 0
        %2531 = vmatpush2.bf16.msra.mxu0 0
        %2532 = vmatprep.subr.bf16.mxu0 0
        %2533 = vmatpush2.bf16.msra.mxu0 0
        %2534 = vmatprep.subr.bf16.mxu0 0
        %2535 = vmatpush2.bf16.msra.mxu0 0
        %2536 = vmatprep.subr.bf16.mxu0 0
        %2537 = vmatpush2.bf16.msra.mxu0 0
        %2538 = vmatprep.subr.bf16.mxu0 0
        %2539 = vmatpush2.bf16.msra.mxu0 0
        %2540 = vmatprep.subr.bf16.mxu0 0
        %2541 = vmatpush2.bf16.msra.mxu0 0
        %2542 = vmatprep.subr.bf16.mxu0 0
        %2543 = vmatpush2.bf16.msra.mxu0 0
        %2544 = vmatprep.mubr.bf16.mxu0 0
        %2545 = vmatmul.mubr.bf16.gmra.mxu0 %v2507
        %v2546 = vpop.f32.mrf.mxu0
        %v2547 = vadd.f32 0.0, %v2546
        %v2548 = vpop.f32.mrf.mxu0
        %v2549 = vpop.f32.mrf.mxu0
        %v2550 = vpop.f32.mrf.mxu0
        %2551 = vdwg.mxu0
        %v2552 = vadd.f32 %v2176, %v2547
        %s2553 = scalar_lea.vmem %s2, 192
        %v2554 = vld [vmem:[%s2553] sm:$0xf]
        %v2555 = vld [vmem:[%s2553 + $0x4] sm:$0xf]
        %v2556 = vld [vmem:[%s2553 + $0x8] sm:$0xf]
        %v2557 = vld [vmem:[%s2553 + $0xc] sm:$0xf]
        %v2558 = vld [vmem:[%s2553 + $0x10] sm:$0xf]
        %v2559 = vld [vmem:[%s2553 + $0x14] sm:$0xf]
        %v2560 = vld [vmem:[%s2553 + $0x18] sm:$0xf]
        %v2561 = vld [vmem:[%s2553 + $0x1c] sm:$0xf]
        %v2570 = vunpack.c.l.b16 %v2554
        %v2571 = vunpack.c.l.b16 %v2555
        %v2572 = vunpack.c.l.b16 %v2556
        %v2573 = vunpack.c.l.b16 %v2557
        %v2574 = vunpack.c.l.b16 %v2558
        %v2575 = vunpack.c.l.b16 %v2559
        %v2576 = vunpack.c.l.b16 %v2560
        %v2577 = vunpack.c.l.b16 %v2561
        %v2578 = vpack.c.b16 %v2571, %v2570
        %v2579 = vpack.c.b16 %v2573, %v2572
        %v2580 = vpack.c.b16 %v2575, %v2574
        %v2581 = vpack.c.b16 %v2577, %v2576
        %2586 = vmatprep.subr.bf16.mxu0 0
        %2587 = vmatpush1.bf16.msra.mxu0 0
        %2588 = vmatprep.subr.bf16.mxu0 0
        %2589 = vmatpush1.bf16.msra.mxu0 0
        %2590 = vmatprep.subr.bf16.mxu0 0
        %2591 = vmatpush1.bf16.msra.mxu0 0
        %2592 = vmatprep.subr.bf16.mxu0 0
        %2593 = vmatpush1.bf16.msra.mxu0 0
        %2594 = vmatprep.subr.bf16.mxu0 0
        %2595 = vmatpush1.bf16.msra.mxu0 %v2581
        %2596 = vmatprep.subr.bf16.mxu0 0
        %2597 = vmatpush1.bf16.msra.mxu0 %v2580
        %2598 = vmatprep.subr.bf16.mxu0 0
        %2599 = vmatpush1.bf16.msra.mxu0 %v2579
        %2600 = vmatprep.subr.bf16.mxu0 0
        %2601 = vmatpush1.bf16.msra.mxu0 %v2578
        %2602 = vmatprep.subr.bf16.mxu0 0
        %2603 = vmatpush2.bf16.msra.mxu0 0
        %2604 = vmatprep.subr.bf16.mxu0 0
        %2605 = vmatpush2.bf16.msra.mxu0 0
        %2606 = vmatprep.subr.bf16.mxu0 0
        %2607 = vmatpush2.bf16.msra.mxu0 0
        %2608 = vmatprep.subr.bf16.mxu0 0
        %2609 = vmatpush2.bf16.msra.mxu0 0
        %2610 = vmatprep.subr.bf16.mxu0 0
        %2611 = vmatpush2.bf16.msra.mxu0 0
        %2612 = vmatprep.subr.bf16.mxu0 0
        %2613 = vmatpush2.bf16.msra.mxu0 0
        %2614 = vmatprep.subr.bf16.mxu0 0
        %2615 = vmatpush2.bf16.msra.mxu0 0
        %2616 = vmatprep.subr.bf16.mxu0 0
        %2617 = vmatpush2.bf16.msra.mxu0 0
        %2618 = vmatprep.mubr.bf16.mxu0 0
        %2619 = vmatmul.mubr.bf16.gmra.mxu0 %v328
        %v2620 = vpop.f32.mrf.mxu0
        %v2621 = vadd.f32 0.0, %v2620
        %v2622 = vpop.f32.mrf.mxu0
        %v2623 = vpop.f32.mrf.mxu0
        %v2624 = vpop.f32.mrf.mxu0
        %2625 = vdwg.mxu0
        %s2626 = scalar_lea.vmem %s3, 192
        %v2627 = vld [vmem:[%s2626] sm:$0xf]
        %v2628 = vld [vmem:[%s2626 + $0x4] sm:$0xf]
        %v2629 = vld [vmem:[%s2626 + $0x8] sm:$0xf]
        %v2630 = vld [vmem:[%s2626 + $0xc] sm:$0xf]
        %v2631 = vld [vmem:[%s2626 + $0x10] sm:$0xf]
        %v2632 = vld [vmem:[%s2626 + $0x14] sm:$0xf]
        %v2633 = vld [vmem:[%s2626 + $0x18] sm:$0xf]
        %v2634 = vld [vmem:[%s2626 + $0x1c] sm:$0xf]
        %v2643 = vunpack.c.l.b16 %v2627
        %v2644 = vunpack.c.l.b16 %v2628
        %v2645 = vunpack.c.l.b16 %v2629
        %v2646 = vunpack.c.l.b16 %v2630
        %v2647 = vunpack.c.l.b16 %v2631
        %v2648 = vunpack.c.l.b16 %v2632
        %v2649 = vunpack.c.l.b16 %v2633
        %v2650 = vunpack.c.l.b16 %v2634
        %v2651 = vpack.c.b16 %v2644, %v2643
        %v2652 = vpack.c.b16 %v2646, %v2645
        %v2653 = vpack.c.b16 %v2648, %v2647
        %v2654 = vpack.c.b16 %v2650, %v2649
        %2659 = vmatprep.subr.bf16.mxu0 0
        %2660 = vmatpush1.bf16.msra.mxu0 0
        %2661 = vmatprep.subr.bf16.mxu0 0
        %2662 = vmatpush1.bf16.msra.mxu0 0
        %2663 = vmatprep.subr.bf16.mxu0 0
        %2664 = vmatpush1.bf16.msra.mxu0 0
        %2665 = vmatprep.subr.bf16.mxu0 0
        %2666 = vmatpush1.bf16.msra.mxu0 0
        %2667 = vmatprep.subr.bf16.mxu0 0
        %2668 = vmatpush1.bf16.msra.mxu0 %v2654
        %2669 = vmatprep.subr.bf16.mxu0 0
        %2670 = vmatpush1.bf16.msra.mxu0 %v2653
        %2671 = vmatprep.subr.bf16.mxu0 0
        %2672 = vmatpush1.bf16.msra.mxu0 %v2652
        %2673 = vmatprep.subr.bf16.mxu0 0
        %2674 = vmatpush1.bf16.msra.mxu0 %v2651
        %2675 = vmatprep.subr.bf16.mxu0 0
        %2676 = vmatpush2.bf16.msra.mxu0 0
        %2677 = vmatprep.subr.bf16.mxu0 0
        %2678 = vmatpush2.bf16.msra.mxu0 0
        %2679 = vmatprep.subr.bf16.mxu0 0
        %2680 = vmatpush2.bf16.msra.mxu0 0
        %2681 = vmatprep.subr.bf16.mxu0 0
        %2682 = vmatpush2.bf16.msra.mxu0 0
        %2683 = vmatprep.subr.bf16.mxu0 0
        %2684 = vmatpush2.bf16.msra.mxu0 0
        %2685 = vmatprep.subr.bf16.mxu0 0
        %2686 = vmatpush2.bf16.msra.mxu0 0
        %2687 = vmatprep.subr.bf16.mxu0 0
        %2688 = vmatpush2.bf16.msra.mxu0 0
        %2689 = vmatprep.subr.bf16.mxu0 0
        %2690 = vmatpush2.bf16.msra.mxu0 0
        %2691 = vmatprep.mubr.bf16.mxu0 0
        %2692 = vmatmul.mubr.bf16.gmra.mxu0 %v403
        %v2693 = vpop.f32.mrf.mxu0
        %v2694 = vadd.f32 0.0, %v2693
        %v2695 = vpop.f32.mrf.mxu0
        %v2696 = vpop.f32.mrf.mxu0
        %v2697 = vpop.f32.mrf.mxu0
        %2698 = vdwg.mxu0
        %s2699 = scalar_lea.vmem %s4, 192
        %v2700 = vld [vmem:[%s2699] sm:$0xf]
        %v2701 = vld [vmem:[%s2699 + $0x4] sm:$0xf]
        %v2702 = vld [vmem:[%s2699 + $0x8] sm:$0xf]
        %v2703 = vld [vmem:[%s2699 + $0xc] sm:$0xf]
        %v2704 = vld [vmem:[%s2699 + $0x10] sm:$0xf]
        %v2705 = vld [vmem:[%s2699 + $0x14] sm:$0xf]
        %v2706 = vld [vmem:[%s2699 + $0x18] sm:$0xf]
        %v2707 = vld [vmem:[%s2699 + $0x1c] sm:$0xf]
        %v2716 = vunpack.c.l.b16 %v2700
        %v2717 = vunpack.c.l.b16 %v2701
        %v2718 = vunpack.c.l.b16 %v2702
        %v2719 = vunpack.c.l.b16 %v2703
        %v2720 = vunpack.c.l.b16 %v2704
        %v2721 = vunpack.c.l.b16 %v2705
        %v2722 = vunpack.c.l.b16 %v2706
        %v2723 = vunpack.c.l.b16 %v2707
        %v2724 = vpack.c.b16 %v2717, %v2716
        %v2725 = vpack.c.b16 %v2719, %v2718
        %v2726 = vpack.c.b16 %v2721, %v2720
        %v2727 = vpack.c.b16 %v2723, %v2722
        %2732 = vmatprep.subr.bf16.mxu0 0
        %2733 = vmatpush1.bf16.msra.mxu0 0
        %2734 = vmatprep.subr.bf16.mxu0 0
        %2735 = vmatpush1.bf16.msra.mxu0 0
        %2736 = vmatprep.subr.bf16.mxu0 0
        %2737 = vmatpush1.bf16.msra.mxu0 0
        %2738 = vmatprep.subr.bf16.mxu0 0
        %2739 = vmatpush1.bf16.msra.mxu0 0
        %2740 = vmatprep.subr.bf16.mxu0 0
        %2741 = vmatpush1.bf16.msra.mxu0 %v2727
        %2742 = vmatprep.subr.bf16.mxu0 0
        %2743 = vmatpush1.bf16.msra.mxu0 %v2726
        %2744 = vmatprep.subr.bf16.mxu0 0
        %2745 = vmatpush1.bf16.msra.mxu0 %v2725
        %2746 = vmatprep.subr.bf16.mxu0 0
        %2747 = vmatpush1.bf16.msra.mxu0 %v2724
        %2748 = vmatprep.subr.bf16.mxu0 0
        %2749 = vmatpush2.bf16.msra.mxu0 0
        %2750 = vmatprep.subr.bf16.mxu0 0
        %2751 = vmatpush2.bf16.msra.mxu0 0
        %2752 = vmatprep.subr.bf16.mxu0 0
        %2753 = vmatpush2.bf16.msra.mxu0 0
        %2754 = vmatprep.subr.bf16.mxu0 0
        %2755 = vmatpush2.bf16.msra.mxu0 0
        %2756 = vmatprep.subr.bf16.mxu0 0
        %2757 = vmatpush2.bf16.msra.mxu0 0
        %2758 = vmatprep.subr.bf16.mxu0 0
        %2759 = vmatpush2.bf16.msra.mxu0 0
        %2760 = vmatprep.subr.bf16.mxu0 0
        %2761 = vmatpush2.bf16.msra.mxu0 0
        %2762 = vmatprep.subr.bf16.mxu0 0
        %2763 = vmatpush2.bf16.msra.mxu0 0
        %2764 = vmatprep.mubr.bf16.mxu0 0
        %2765 = vmatmul.mubr.bf16.gmra.mxu0 %v403
        %v2766 = vpop.f32.mrf.mxu0
        %v2767 = vadd.f32 0.0, %v2766
        %v2768 = vpop.f32.mrf.mxu0
        %v2769 = vpop.f32.mrf.mxu0
        %v2770 = vpop.f32.mrf.mxu0
        %2771 = vdwg.mxu0
        %v2772 = vpack.c.bf16 %v2621, %v2621
        %v2773 = vpack.c.bf16 %v2694, %v2694
        %v2774 = vpack.c.bf16 %v2767, %v2767
        %v2776 = vsel %vm520, %v2772, 0
        %v2779 = vsel %vm520, %v2773, 0
        %2781 = vmatprep.subr.bf16.mxu0 0
        %2782 = vmatpush1.bf16.xpose.msra.mxu0 0
        %2783 = vmatprep.subr.bf16.mxu0 0
        %2784 = vmatpush1.bf16.xpose.msra.mxu0 0
        %2785 = vmatprep.subr.bf16.mxu0 0
        %2786 = vmatpush1.bf16.xpose.msra.mxu0 0
        %2787 = vmatprep.subr.bf16.mxu0 0
        %2788 = vmatpush1.bf16.xpose.msra.mxu0 0
        %2789 = vmatprep.subr.bf16.mxu0 0
        %2790 = vmatpush1.bf16.xpose.msra.mxu0 0
        %2791 = vmatprep.subr.bf16.mxu0 0
        %2792 = vmatpush1.bf16.xpose.msra.mxu0 0
        %2793 = vmatprep.subr.bf16.mxu0 0
        %2794 = vmatpush1.bf16.xpose.msra.mxu0 0
        %2795 = vmatprep.subr.bf16.mxu0 0
        %2796 = vmatpush1.bf16.xpose.msra.mxu0 %v2779
        %2797 = vmatprep.subr.bf16.mxu0 0
        %2798 = vmatpush2.bf16.xpose.msra.mxu0 0
        %2799 = vmatprep.subr.bf16.mxu0 0
        %2800 = vmatpush2.bf16.xpose.msra.mxu0 0
        %2801 = vmatprep.subr.bf16.mxu0 0
        %2802 = vmatpush2.bf16.xpose.msra.mxu0 0
        %2803 = vmatprep.subr.bf16.mxu0 0
        %2804 = vmatpush2.bf16.xpose.msra.mxu0 0
        %2805 = vmatprep.subr.bf16.mxu0 0
        %2806 = vmatpush2.bf16.xpose.msra.mxu0 0
        %2807 = vmatprep.subr.bf16.mxu0 0
        %2808 = vmatpush2.bf16.xpose.msra.mxu0 0
        %2809 = vmatprep.subr.bf16.mxu0 0
        %2810 = vmatpush2.bf16.xpose.msra.mxu0 0
        %2811 = vmatprep.subr.bf16.mxu0 0
        %2812 = vmatpush2.bf16.xpose.msra.mxu0 0
        %2813 = vmatprep.mubr.bf16.mxu0 0
        %2814 = vmatmul.mubr.bf16.gmra.mxu0 %v2776
        %v2815 = vpop.f32.mrf.mxu0
        %v2816 = vadd.f32 0.0, %v2815
        %v2817 = vpop.f32.mrf.mxu0
        %v2818 = vpop.f32.mrf.mxu0
        %v2819 = vpop.f32.mrf.mxu0
        %2820 = vdwg.mxu0
        %v2821 = vsel %vm520, %v2816, -inf
        %2822 = vmax.xlane.f32.xlu0 %v2821
        %v2823 = vpop.xlane.xlu0 %2822
        %v2824 = vsub.f32 %v2816, %v2823
        %v2825 = vmul.f32 %v2824, 1.442695
        %v2826 = vpow.pop %v2825
        %v2827 = vsel %vm520, %v2826, 0.0
        %2828 = vadd.xlane.f32.xlu0 %v2827
        %v2829 = vpop.xlane.xlu0 %2828
        %v2830 = vrcp.pop %v2829
        %v2831 = vmul.f32 %v2826, %v2830
        %v2832 = vpack.c.bf16 %v2831, %v2831
        %v2834 = vsel %vm520, %v2832, 0
        %v2837 = vsel %vm582, %v2774, 0
        %2839 = vmatprep.subr.bf16.mxu0 0
        %2840 = vmatpush1.bf16.msra.mxu0 0
        %2841 = vmatprep.subr.bf16.mxu0 0
        %2842 = vmatpush1.bf16.msra.mxu0 0
        %2843 = vmatprep.subr.bf16.mxu0 0
        %2844 = vmatpush1.bf16.msra.mxu0 0
        %2845 = vmatprep.subr.bf16.mxu0 0
        %2846 = vmatpush1.bf16.msra.mxu0 0
        %2847 = vmatprep.subr.bf16.mxu0 0
        %2848 = vmatpush1.bf16.msra.mxu0 0
        %2849 = vmatprep.subr.bf16.mxu0 0
        %2850 = vmatpush1.bf16.msra.mxu0 0
        %2851 = vmatprep.subr.bf16.mxu0 0
        %2852 = vmatpush1.bf16.msra.mxu0 0
        %2853 = vmatprep.subr.bf16.mxu0 0
        %2854 = vmatpush1.bf16.msra.mxu0 %v2837
        %2855 = vmatprep.subr.bf16.mxu0 0
        %2856 = vmatpush2.bf16.msra.mxu0 0
        %2857 = vmatprep.subr.bf16.mxu0 0
        %2858 = vmatpush2.bf16.msra.mxu0 0
        %2859 = vmatprep.subr.bf16.mxu0 0
        %2860 = vmatpush2.bf16.msra.mxu0 0
        %2861 = vmatprep.subr.bf16.mxu0 0
        %2862 = vmatpush2.bf16.msra.mxu0 0
        %2863 = vmatprep.subr.bf16.mxu0 0
        %2864 = vmatpush2.bf16.msra.mxu0 0
        %2865 = vmatprep.subr.bf16.mxu0 0
        %2866 = vmatpush2.bf16.msra.mxu0 0
        %2867 = vmatprep.subr.bf16.mxu0 0
        %2868 = vmatpush2.bf16.msra.mxu0 0
        %2869 = vmatprep.subr.bf16.mxu0 0
        %2870 = vmatpush2.bf16.msra.mxu0 0
        %2871 = vmatprep.mubr.bf16.mxu0 0
        %2872 = vmatmul.mubr.bf16.gmra.mxu0 %v2834
        %v2873 = vpop.f32.mrf.mxu0
        %v2874 = vadd.f32 0.0, %v2873
        %v2875 = vpop.f32.mrf.mxu0
        %v2876 = vpop.f32.mrf.mxu0
        %v2877 = vpop.f32.mrf.mxu0
        %2878 = vdwg.mxu0
        %v2879 = vpack.c.bf16 %v2874, %v2874
        %s2880 = scalar_lea.vmem %s5, 24
        %v2881 = vld [vmem:[%s2880] sm:$0xf]
        %v2883 = vsel %vm520, %v2879, 0
        %v2886 = vsel %vm582, %v2881, 0
        %2888 = vmatprep.subr.bf16.mxu0 0
        %2889 = vmatpush1.bf16.msra.mxu0 0
        %2890 = vmatprep.subr.bf16.mxu0 0
        %2891 = vmatpush1.bf16.msra.mxu0 0
        %2892 = vmatprep.subr.bf16.mxu0 0
        %2893 = vmatpush1.bf16.msra.mxu0 0
        %2894 = vmatprep.subr.bf16.mxu0 0
        %2895 = vmatpush1.bf16.msra.mxu0 0
        %2896 = vmatprep.subr.bf16.mxu0 0
        %2897 = vmatpush1.bf16.msra.mxu0 0
        %2898 = vmatprep.subr.bf16.mxu0 0
        %2899 = vmatpush1.bf16.msra.mxu0 0
        %2900 = vmatprep.subr.bf16.mxu0 0
        %2901 = vmatpush1.bf16.msra.mxu0 0
        %2902 = vmatprep.subr.bf16.mxu0 0
        %2903 = vmatpush1.bf16.msra.mxu0 %v2886
        %2904 = vmatprep.subr.bf16.mxu0 0
        %2905 = vmatpush2.bf16.msra.mxu0 0
        %2906 = vmatprep.subr.bf16.mxu0 0
        %2907 = vmatpush2.bf16.msra.mxu0 0
        %2908 = vmatprep.subr.bf16.mxu0 0
        %2909 = vmatpush2.bf16.msra.mxu0 0
        %2910 = vmatprep.subr.bf16.mxu0 0
        %2911 = vmatpush2.bf16.msra.mxu0 0
        %2912 = vmatprep.subr.bf16.mxu0 0
        %2913 = vmatpush2.bf16.msra.mxu0 0
        %2914 = vmatprep.subr.bf16.mxu0 0
        %2915 = vmatpush2.bf16.msra.mxu0 0
        %2916 = vmatprep.subr.bf16.mxu0 0
        %2917 = vmatpush2.bf16.msra.mxu0 0
        %2918 = vmatprep.subr.bf16.mxu0 0
        %2919 = vmatpush2.bf16.msra.mxu0 0
        %2920 = vmatprep.mubr.bf16.mxu0 0
        %2921 = vmatmul.mubr.bf16.gmra.mxu0 %v2883
        %v2922 = vpop.f32.mrf.mxu0
        %v2923 = vadd.f32 0.0, %v2922
        %v2924 = vpop.f32.mrf.mxu0
        %v2925 = vpop.f32.mrf.mxu0
        %v2926 = vpop.f32.mrf.mxu0
        %2927 = vdwg.mxu0
        %v2928 = vadd.f32 %v2552, %v2923
        %s2929 = scalar_lea.vmem %s2, 224
        %v2930 = vld [vmem:[%s2929] sm:$0xf]
        %v2931 = vld [vmem:[%s2929 + $0x4] sm:$0xf]
        %v2932 = vld [vmem:[%s2929 + $0x8] sm:$0xf]
        %v2933 = vld [vmem:[%s2929 + $0xc] sm:$0xf]
        %v2934 = vld [vmem:[%s2929 + $0x10] sm:$0xf]
        %v2935 = vld [vmem:[%s2929 + $0x14] sm:$0xf]
        %v2936 = vld [vmem:[%s2929 + $0x18] sm:$0xf]
        %v2937 = vld [vmem:[%s2929 + $0x1c] sm:$0xf]
        %v2946 = vunpack.c.l.b16 %v2930
        %v2947 = vunpack.c.l.b16 %v2931
        %v2948 = vunpack.c.l.b16 %v2932
        %v2949 = vunpack.c.l.b16 %v2933
        %v2950 = vunpack.c.l.b16 %v2934
        %v2951 = vunpack.c.l.b16 %v2935
        %v2952 = vunpack.c.l.b16 %v2936
        %v2953 = vunpack.c.l.b16 %v2937
        %v2954 = vpack.c.b16 %v2947, %v2946
        %v2955 = vpack.c.b16 %v2949, %v2948
        %v2956 = vpack.c.b16 %v2951, %v2950
        %v2957 = vpack.c.b16 %v2953, %v2952
        %2962 = vmatprep.subr.bf16.mxu0 0
        %2963 = vmatpush1.bf16.msra.mxu0 0
        %2964 = vmatprep.subr.bf16.mxu0 0
        %2965 = vmatpush1.bf16.msra.mxu0 0
        %2966 = vmatprep.subr.bf16.mxu0 0
        %2967 = vmatpush1.bf16.msra.mxu0 0
        %2968 = vmatprep.subr.bf16.mxu0 0
        %2969 = vmatpush1.bf16.msra.mxu0 0
        %2970 = vmatprep.subr.bf16.mxu0 0
        %2971 = vmatpush1.bf16.msra.mxu0 %v2957
        %2972 = vmatprep.subr.bf16.mxu0 0
        %2973 = vmatpush1.bf16.msra.mxu0 %v2956
        %2974 = vmatprep.subr.bf16.mxu0 0
        %2975 = vmatpush1.bf16.msra.mxu0 %v2955
        %2976 = vmatprep.subr.bf16.mxu0 0
        %2977 = vmatpush1.bf16.msra.mxu0 %v2954
        %2978 = vmatprep.subr.bf16.mxu0 0
        %2979 = vmatpush2.bf16.msra.mxu0 0
        %2980 = vmatprep.subr.bf16.mxu0 0
        %2981 = vmatpush2.bf16.msra.mxu0 0
        %2982 = vmatprep.subr.bf16.mxu0 0
        %2983 = vmatpush2.bf16.msra.mxu0 0
        %2984 = vmatprep.subr.bf16.mxu0 0
        %2985 = vmatpush2.bf16.msra.mxu0 0
        %2986 = vmatprep.subr.bf16.mxu0 0
        %2987 = vmatpush2.bf16.msra.mxu0 0
        %2988 = vmatprep.subr.bf16.mxu0 0
        %2989 = vmatpush2.bf16.msra.mxu0 0
        %2990 = vmatprep.subr.bf16.mxu0 0
        %2991 = vmatpush2.bf16.msra.mxu0 0
        %2992 = vmatprep.subr.bf16.mxu0 0
        %2993 = vmatpush2.bf16.msra.mxu0 0
        %2994 = vmatprep.mubr.bf16.mxu0 0
        %2995 = vmatmul.mubr.bf16.gmra.mxu0 %v328
        %v2996 = vpop.f32.mrf.mxu0
        %v2997 = vadd.f32 0.0, %v2996
        %v2998 = vpop.f32.mrf.mxu0
        %v2999 = vpop.f32.mrf.mxu0
        %v3000 = vpop.f32.mrf.mxu0
        %3001 = vdwg.mxu0
        %s3002 = scalar_lea.vmem %s3, 224
        %v3003 = vld [vmem:[%s3002] sm:$0xf]
        %v3004 = vld [vmem:[%s3002 + $0x4] sm:$0xf]
        %v3005 = vld [vmem:[%s3002 + $0x8] sm:$0xf]
        %v3006 = vld [vmem:[%s3002 + $0xc] sm:$0xf]
        %v3007 = vld [vmem:[%s3002 + $0x10] sm:$0xf]
        %v3008 = vld [vmem:[%s3002 + $0x14] sm:$0xf]
        %v3009 = vld [vmem:[%s3002 + $0x18] sm:$0xf]
        %v3010 = vld [vmem:[%s3002 + $0x1c] sm:$0xf]
        %v3019 = vunpack.c.l.b16 %v3003
        %v3020 = vunpack.c.l.b16 %v3004
        %v3021 = vunpack.c.l.b16 %v3005
        %v3022 = vunpack.c.l.b16 %v3006
        %v3023 = vunpack.c.l.b16 %v3007
        %v3024 = vunpack.c.l.b16 %v3008
        %v3025 = vunpack.c.l.b16 %v3009
        %v3026 = vunpack.c.l.b16 %v3010
        %v3027 = vpack.c.b16 %v3020, %v3019
        %v3028 = vpack.c.b16 %v3022, %v3021
        %v3029 = vpack.c.b16 %v3024, %v3023
        %v3030 = vpack.c.b16 %v3026, %v3025
        %3035 = vmatprep.subr.bf16.mxu0 0
        %3036 = vmatpush1.bf16.msra.mxu0 0
        %3037 = vmatprep.subr.bf16.mxu0 0
        %3038 = vmatpush1.bf16.msra.mxu0 0
        %3039 = vmatprep.subr.bf16.mxu0 0
        %3040 = vmatpush1.bf16.msra.mxu0 0
        %3041 = vmatprep.subr.bf16.mxu0 0
        %3042 = vmatpush1.bf16.msra.mxu0 0
        %3043 = vmatprep.subr.bf16.mxu0 0
        %3044 = vmatpush1.bf16.msra.mxu0 %v3030
        %3045 = vmatprep.subr.bf16.mxu0 0
        %3046 = vmatpush1.bf16.msra.mxu0 %v3029
        %3047 = vmatprep.subr.bf16.mxu0 0
        %3048 = vmatpush1.bf16.msra.mxu0 %v3028
        %3049 = vmatprep.subr.bf16.mxu0 0
        %3050 = vmatpush1.bf16.msra.mxu0 %v3027
        %3051 = vmatprep.subr.bf16.mxu0 0
        %3052 = vmatpush2.bf16.msra.mxu0 0
        %3053 = vmatprep.subr.bf16.mxu0 0
        %3054 = vmatpush2.bf16.msra.mxu0 0
        %3055 = vmatprep.subr.bf16.mxu0 0
        %3056 = vmatpush2.bf16.msra.mxu0 0
        %3057 = vmatprep.subr.bf16.mxu0 0
        %3058 = vmatpush2.bf16.msra.mxu0 0
        %3059 = vmatprep.subr.bf16.mxu0 0
        %3060 = vmatpush2.bf16.msra.mxu0 0
        %3061 = vmatprep.subr.bf16.mxu0 0
        %3062 = vmatpush2.bf16.msra.mxu0 0
        %3063 = vmatprep.subr.bf16.mxu0 0
        %3064 = vmatpush2.bf16.msra.mxu0 0
        %3065 = vmatprep.subr.bf16.mxu0 0
        %3066 = vmatpush2.bf16.msra.mxu0 0
        %3067 = vmatprep.mubr.bf16.mxu0 0
        %3068 = vmatmul.mubr.bf16.gmra.mxu0 %v403
        %v3069 = vpop.f32.mrf.mxu0
        %v3070 = vadd.f32 0.0, %v3069
        %v3071 = vpop.f32.mrf.mxu0
        %v3072 = vpop.f32.mrf.mxu0
        %v3073 = vpop.f32.mrf.mxu0
        %3074 = vdwg.mxu0
        %s3075 = scalar_lea.vmem %s4, 224
        %v3076 = vld [vmem:[%s3075] sm:$0xf]
        %v3077 = vld [vmem:[%s3075 + $0x4] sm:$0xf]
        %v3078 = vld [vmem:[%s3075 + $0x8] sm:$0xf]
        %v3079 = vld [vmem:[%s3075 + $0xc] sm:$0xf]
        %v3080 = vld [vmem:[%s3075 + $0x10] sm:$0xf]
        %v3081 = vld [vmem:[%s3075 + $0x14] sm:$0xf]
        %v3082 = vld [vmem:[%s3075 + $0x18] sm:$0xf]
        %v3083 = vld [vmem:[%s3075 + $0x1c] sm:$0xf]
        %v3092 = vunpack.c.l.b16 %v3076
        %v3093 = vunpack.c.l.b16 %v3077
        %v3094 = vunpack.c.l.b16 %v3078
        %v3095 = vunpack.c.l.b16 %v3079
        %v3096 = vunpack.c.l.b16 %v3080
        %v3097 = vunpack.c.l.b16 %v3081
        %v3098 = vunpack.c.l.b16 %v3082
        %v3099 = vunpack.c.l.b16 %v3083
        %v3100 = vpack.c.b16 %v3093, %v3092
        %v3101 = vpack.c.b16 %v3095, %v3094
        %v3102 = vpack.c.b16 %v3097, %v3096
        %v3103 = vpack.c.b16 %v3099, %v3098
        %3108 = vmatprep.subr.bf16.mxu0 0
        %3109 = vmatpush1.bf16.msra.mxu0 0
        %3110 = vmatprep.subr.bf16.mxu0 0
        %3111 = vmatpush1.bf16.msra.mxu0 0
        %3112 = vmatprep.subr.bf16.mxu0 0
        %3113 = vmatpush1.bf16.msra.mxu0 0
        %3114 = vmatprep.subr.bf16.mxu0 0
        %3115 = vmatpush1.bf16.msra.mxu0 0
        %3116 = vmatprep.subr.bf16.mxu0 0
        %3117 = vmatpush1.bf16.msra.mxu0 %v3103
        %3118 = vmatprep.subr.bf16.mxu0 0
        %3119 = vmatpush1.bf16.msra.mxu0 %v3102
        %3120 = vmatprep.subr.bf16.mxu0 0
        %3121 = vmatpush1.bf16.msra.mxu0 %v3101
        %3122 = vmatprep.subr.bf16.mxu0 0
        %3123 = vmatpush1.bf16.msra.mxu0 %v3100
        %3124 = vmatprep.subr.bf16.mxu0 0
        %3125 = vmatpush2.bf16.msra.mxu0 0
        %3126 = vmatprep.subr.bf16.mxu0 0
        %3127 = vmatpush2.bf16.msra.mxu0 0
        %3128 = vmatprep.subr.bf16.mxu0 0
        %3129 = vmatpush2.bf16.msra.mxu0 0
        %3130 = vmatprep.subr.bf16.mxu0 0
        %3131 = vmatpush2.bf16.msra.mxu0 0
        %3132 = vmatprep.subr.bf16.mxu0 0
        %3133 = vmatpush2.bf16.msra.mxu0 0
        %3134 = vmatprep.subr.bf16.mxu0 0
        %3135 = vmatpush2.bf16.msra.mxu0 0
        %3136 = vmatprep.subr.bf16.mxu0 0
        %3137 = vmatpush2.bf16.msra.mxu0 0
        %3138 = vmatprep.subr.bf16.mxu0 0
        %3139 = vmatpush2.bf16.msra.mxu0 0
        %3140 = vmatprep.mubr.bf16.mxu0 0
        %3141 = vmatmul.mubr.bf16.gmra.mxu0 %v403
        %v3142 = vpop.f32.mrf.mxu0
        %v3143 = vadd.f32 0.0, %v3142
        %v3144 = vpop.f32.mrf.mxu0
        %v3145 = vpop.f32.mrf.mxu0
        %v3146 = vpop.f32.mrf.mxu0
        %3147 = vdwg.mxu0
        %v3148 = vpack.c.bf16 %v2997, %v2997
        %v3149 = vpack.c.bf16 %v3070, %v3070
        %v3150 = vpack.c.bf16 %v3143, %v3143
        %v3152 = vsel %vm520, %v3148, 0
        %v3155 = vsel %vm520, %v3149, 0
        %3157 = vmatprep.subr.bf16.mxu0 0
        %3158 = vmatpush1.bf16.xpose.msra.mxu0 0
        %3159 = vmatprep.subr.bf16.mxu0 0
        %3160 = vmatpush1.bf16.xpose.msra.mxu0 0
        %3161 = vmatprep.subr.bf16.mxu0 0
        %3162 = vmatpush1.bf16.xpose.msra.mxu0 0
        %3163 = vmatprep.subr.bf16.mxu0 0
        %3164 = vmatpush1.bf16.xpose.msra.mxu0 0
        %3165 = vmatprep.subr.bf16.mxu0 0
        %3166 = vmatpush1.bf16.xpose.msra.mxu0 0
        %3167 = vmatprep.subr.bf16.mxu0 0
        %3168 = vmatpush1.bf16.xpose.msra.mxu0 0
        %3169 = vmatprep.subr.bf16.mxu0 0
        %3170 = vmatpush1.bf16.xpose.msra.mxu0 0
        %3171 = vmatprep.subr.bf16.mxu0 0
        %3172 = vmatpush1.bf16.xpose.msra.mxu0 %v3155
        %3173 = vmatprep.subr.bf16.mxu0 0
        %3174 = vmatpush2.bf16.xpose.msra.mxu0 0
        %3175 = vmatprep.subr.bf16.mxu0 0
        %3176 = vmatpush2.bf16.xpose.msra.mxu0 0
        %3177 = vmatprep.subr.bf16.mxu0 0
        %3178 = vmatpush2.bf16.xpose.msra.mxu0 0
        %3179 = vmatprep.subr.bf16.mxu0 0
        %3180 = vmatpush2.bf16.xpose.msra.mxu0 0
        %3181 = vmatprep.subr.bf16.mxu0 0
        %3182 = vmatpush2.bf16.xpose.msra.mxu0 0
        %3183 = vmatprep.subr.bf16.mxu0 0
        %3184 = vmatpush2.bf16.xpose.msra.mxu0 0
        %3185 = vmatprep.subr.bf16.mxu0 0
        %3186 = vmatpush2.bf16.xpose.msra.mxu0 0
        %3187 = vmatprep.subr.bf16.mxu0 0
        %3188 = vmatpush2.bf16.xpose.msra.mxu0 0
        %3189 = vmatprep.mubr.bf16.mxu0 0
        %3190 = vmatmul.mubr.bf16.gmra.mxu0 %v3152
        %v3191 = vpop.f32.mrf.mxu0
        %v3192 = vadd.f32 0.0, %v3191
        %v3193 = vpop.f32.mrf.mxu0
        %v3194 = vpop.f32.mrf.mxu0
        %v3195 = vpop.f32.mrf.mxu0
        %3196 = vdwg.mxu0
        %v3197 = vsel %vm520, %v3192, -inf
        %3198 = vmax.xlane.f32.xlu0 %v3197
        %v3199 = vpop.xlane.xlu0 %3198
        %v3200 = vsub.f32 %v3192, %v3199
        %v3201 = vmul.f32 %v3200, 1.442695
        %v3202 = vpow.pop %v3201
        %v3203 = vsel %vm520, %v3202, 0.0
        %3204 = vadd.xlane.f32.xlu0 %v3203
        %v3205 = vpop.xlane.xlu0 %3204
        %v3206 = vrcp.pop %v3205
        %v3207 = vmul.f32 %v3202, %v3206
        %v3208 = vpack.c.bf16 %v3207, %v3207
        %v3210 = vsel %vm520, %v3208, 0
        %v3213 = vsel %vm582, %v3150, 0
        %3215 = vmatprep.subr.bf16.mxu0 0
        %3216 = vmatpush1.bf16.msra.mxu0 0
        %3217 = vmatprep.subr.bf16.mxu0 0
        %3218 = vmatpush1.bf16.msra.mxu0 0
        %3219 = vmatprep.subr.bf16.mxu0 0
        %3220 = vmatpush1.bf16.msra.mxu0 0
        %3221 = vmatprep.subr.bf16.mxu0 0
        %3222 = vmatpush1.bf16.msra.mxu0 0
        %3223 = vmatprep.subr.bf16.mxu0 0
        %3224 = vmatpush1.bf16.msra.mxu0 0
        %3225 = vmatprep.subr.bf16.mxu0 0
        %3226 = vmatpush1.bf16.msra.mxu0 0
        %3227 = vmatprep.subr.bf16.mxu0 0
        %3228 = vmatpush1.bf16.msra.mxu0 0
        %3229 = vmatprep.subr.bf16.mxu0 0
        %3230 = vmatpush1.bf16.msra.mxu0 %v3213
        %3231 = vmatprep.subr.bf16.mxu0 0
        %3232 = vmatpush2.bf16.msra.mxu0 0
        %3233 = vmatprep.subr.bf16.mxu0 0
        %3234 = vmatpush2.bf16.msra.mxu0 0
        %3235 = vmatprep.subr.bf16.mxu0 0
        %3236 = vmatpush2.bf16.msra.mxu0 0
        %3237 = vmatprep.subr.bf16.mxu0 0
        %3238 = vmatpush2.bf16.msra.mxu0 0
        %3239 = vmatprep.subr.bf16.mxu0 0
        %3240 = vmatpush2.bf16.msra.mxu0 0
        %3241 = vmatprep.subr.bf16.mxu0 0
        %3242 = vmatpush2.bf16.msra.mxu0 0
        %3243 = vmatprep.subr.bf16.mxu0 0
        %3244 = vmatpush2.bf16.msra.mxu0 0
        %3245 = vmatprep.subr.bf16.mxu0 0
        %3246 = vmatpush2.bf16.msra.mxu0 0
        %3247 = vmatprep.mubr.bf16.mxu0 0
        %3248 = vmatmul.mubr.bf16.gmra.mxu0 %v3210
        %v3249 = vpop.f32.mrf.mxu0
        %v3250 = vadd.f32 0.0, %v3249
        %v3251 = vpop.f32.mrf.mxu0
        %v3252 = vpop.f32.mrf.mxu0
        %v3253 = vpop.f32.mrf.mxu0
        %3254 = vdwg.mxu0
        %v3255 = vpack.c.bf16 %v3250, %v3250
        %s3256 = scalar_lea.vmem %s5, 28
        %v3257 = vld [vmem:[%s3256] sm:$0xf]
        %v3259 = vsel %vm520, %v3255, 0
        %v3262 = vsel %vm582, %v3257, 0
        %3264 = vmatprep.subr.bf16.mxu0 0
        %3265 = vmatpush1.bf16.msra.mxu0 0
        %3266 = vmatprep.subr.bf16.mxu0 0
        %3267 = vmatpush1.bf16.msra.mxu0 0
        %3268 = vmatprep.subr.bf16.mxu0 0
        %3269 = vmatpush1.bf16.msra.mxu0 0
        %3270 = vmatprep.subr.bf16.mxu0 0
        %3271 = vmatpush1.bf16.msra.mxu0 0
        %3272 = vmatprep.subr.bf16.mxu0 0
        %3273 = vmatpush1.bf16.msra.mxu0 0
        %3274 = vmatprep.subr.bf16.mxu0 0
        %3275 = vmatpush1.bf16.msra.mxu0 0
        %3276 = vmatprep.subr.bf16.mxu0 0
        %3277 = vmatpush1.bf16.msra.mxu0 0
        %3278 = vmatprep.subr.bf16.mxu0 0
        %3279 = vmatpush1.bf16.msra.mxu0 %v3262
        %3280 = vmatprep.subr.bf16.mxu0 0
        %3281 = vmatpush2.bf16.msra.mxu0 0
        %3282 = vmatprep.subr.bf16.mxu0 0
        %3283 = vmatpush2.bf16.msra.mxu0 0
        %3284 = vmatprep.subr.bf16.mxu0 0
        %3285 = vmatpush2.bf16.msra.mxu0 0
        %3286 = vmatprep.subr.bf16.mxu0 0
        %3287 = vmatpush2.bf16.msra.mxu0 0
        %3288 = vmatprep.subr.bf16.mxu0 0
        %3289 = vmatpush2.bf16.msra.mxu0 0
        %3290 = vmatprep.subr.bf16.mxu0 0
        %3291 = vmatpush2.bf16.msra.mxu0 0
        %3292 = vmatprep.subr.bf16.mxu0 0
        %3293 = vmatpush2.bf16.msra.mxu0 0
        %3294 = vmatprep.subr.bf16.mxu0 0
        %3295 = vmatpush2.bf16.msra.mxu0 0
        %3296 = vmatprep.mubr.bf16.mxu0 0
        %3297 = vmatmul.mubr.bf16.gmra.mxu0 %v3259
        %v3298 = vpop.f32.mrf.mxu0
        %v3299 = vadd.f32 0.0, %v3298
        %v3300 = vpop.f32.mrf.mxu0
        %v3301 = vpop.f32.mrf.mxu0
        %v3302 = vpop.f32.mrf.mxu0
        %3303 = vdwg.mxu0
        %v3304 = vadd.f32 %v2928, %v3299
        %v3305 = vld [vmem:[%s6] sm:$0x1]
        %v3307 = vlaneseq
        %v3308 = vshrl.u32 %v3307, 7
        %v3309 = vsub.s32 0, %v3308
        %v3310 = vrot.slane %v3305, %v3309
        %v3312 = vadd.f32 %v3304, %v3310
        %3313 = vst.msk [vmem:[%s282] sm:$0xff] %vm326, %v3312
        %s3314 = sand.u32 %s186, 1
        %s3315 = scalar_lea.sflag [#allocation3], %s3314
        %s3316 = sand.u32 %s186, 1
        %s3317 = smul.addr %s3316, 8
        %s3318 = scalar_lea.vmem [#allocation2], %s3317
        // Predicated region
        $region49: #{tpu_custom_call.1} parent=47 // pred_check
          %p3319 = pneg %p196
        $region50: #{tpu_custom_call.1} parent=47 // pred_check_branch
          %3321 = sbr.rel (%p3319) target = $region52
        $region51: #{tpu_custom_call.1} parent=47 // pred_region
          %s3323 = ssub.s32 128, 128
          %3324 = vsyncadd %s3315, %s3323
          %s3325 = smul.addr %s21, 128
          %s3326 = scalar_lea.hbm %s7, %s3325
          %s3328 = sshll.u32 %s3318, 4
          %s3329 = int_to_ptr.vmem [resolvable:$true] %s3328
          %3331 = dma.vmem_to_hbm [thread:$0]  %s3329, 128, %s3326, %s3315
        $region52: #{tpu_custom_call.1} parent=47 // pred_fallthru
          _
      $region48: #{tpu_custom_call.1} parent=5 // pred_fallthru
        _
      %p3332 = scmp.le.s32.totalorder 2, %s16
      // Predicated region
      $region53: #{tpu_custom_call.1} parent=5 // pred_check
        %p3333 = pneg %p3332
      $region54: #{tpu_custom_call.1} parent=5 // pred_check_branch
        %3335 = sbr.rel (%p3333) target = $region56
      $region55: #{tpu_custom_call.1} parent=5 // pred_region
        %s3336 = ssub.s32 %s16, 2
        // Predicated region
        $region57: #{tpu_custom_call.1} parent=55 // pred_check
          %p3337 = pneg %p202
        $region58: #{tpu_custom_call.1} parent=55 // pred_check_branch
          %3339 = sbr.rel (%p3337) target = $region60
        $region59: #{tpu_custom_call.1} parent=55 // pred_region
          %s3340 = sand.u32 %s187, 1
          %s3341 = scalar_lea.sflag [#allocation3], %s3340
          %s3342 = sand.u32 %s187, 1
          %s3343 = smul.addr %s3342, 8
          %s3344 = scalar_lea.vmem [#allocation2], %s3343
          %3345 = dma.done %s3341, 128
        $region60: #{tpu_custom_call.1} parent=55 // pred_fallthru
          _
      $region56: #{tpu_custom_call.1} parent=5 // pred_fallthru
        _
    $region6: #{tpu_custom_call.1} parent=1 // loop_footer
      %s20 = sadd.s32 1, %s16
    $region7: #{tpu_custom_call.1} parent=1 // loop_footer_branch
      %15 = sbr.rel target = $region3
    $region8: #{tpu_custom_call.1} parent=1 // loop_exit
      _
    %3346 = vsyncpa [#allocation3], 1
    %s3347 = scalar_lea.sflag [#allocation3], 1
    %3348 = vsyncpa %s3347, 1

</llo_original>
